<compile_context>
chip_gen: v7x
topology: tpu7x:2x2x1
jax: 0.10.0
libtpu: 0.0.40
codegen_flags: <defaults>
</compile_context>

<pallas_src>
import jax
import jax.numpy as jnp
from jax.experimental import pallas as pl
from jax.experimental.pallas import tpu as pltpu

LATENT_DIMS = 32          # params['latent_dims'] (synthetic choice)
OUT_FEATURES = 8673       # 1 * 177 * 49
UNFLAT = (1, 177, 49)
N_PAD = ((OUT_FEATURES + 127) // 128) * 128   # 8673 -> 8704 (lane-dense)


def _fc_relu_kernel(x_ref, w_ref, b_ref, o_ref):
    # x_ref: (B, K), w_ref: (K, tn) lane-dense, b_ref: (1, tn), o_ref: (B, tn)
    acc = jnp.dot(x_ref[...], w_ref[...], preferred_element_type=jnp.float32)
    acc = acc + b_ref[...]                            # broadcast bias over rows
    o_ref[...] = jnp.maximum(acc, 0.0).astype(o_ref.dtype)


def prepare_graph_decoder_params(weight, bias):
    """One-time (init-path) transpose + padding of the nn.Linear params.

    weight: (OUT_FEATURES, LATENT_DIMS) — stored as (K, N_pad) so kernel tiles
            are lane-dense and in native MXU RHS orientation.
    bias:   (OUT_FEATURES,)
    Returns (w_pad (K, N_pad), b_pad (1, N_pad)).
    """
    N, K = weight.shape
    n_pad = ((N + 127) // 128) * 128
    w_pad = jnp.zeros((K, n_pad), weight.dtype).at[:, :N].set(weight.T)
    b_pad = jnp.zeros((1, n_pad), bias.dtype).at[0, :N].set(bias)
    return w_pad, b_pad


def _default_grid_steps():
    """2 parallel steps on v7x (2 TensorCores/chip), else 1 (v5e/v6e)."""
    try:
        kind = jax.devices()[0].device_kind.lower()
        if "v7" in kind:
            return 2
    except Exception:
        pass
    return 1


def graph_decoder_forward(x, w_pad, b_pad, *, grid_steps=None, n_out=OUT_FEATURES):
    """x: (B, LATENT_DIMS) f32; w_pad/b_pad from prepare_graph_decoder_params.
    Returns (B, 1, 177, 49) f32, matching the PyTorch module semantics."""
    B, K = x.shape
    n_pad = w_pad.shape[1]
    steps = _default_grid_steps() if grid_steps is None else grid_steps
    assert n_pad % (steps * 128) == 0
    tn = n_pad // steps                               # 8704 or 4352, lane-dense

    cost = pl.CostEstimate(
        flops=2 * B * K * n_pad,
        transcendentals=0,
        bytes_accessed=(B * K + K * n_pad + n_pad + B * n_pad) * 4,
    )

    out = pl.pallas_call(
        _fc_relu_kernel,
        out_shape=jax.ShapeDtypeStruct((B, n_pad), jnp.float32),
        grid_spec=pltpu.PrefetchScalarGridSpec(
            num_scalar_prefetch=0,
            grid=(steps,),
            in_specs=[
                pl.BlockSpec((B, K), lambda j: (0, 0)),    # x: full, resident
                pl.BlockSpec((K, tn), lambda j: (0, j)),   # W column tile (K, tn)
                pl.BlockSpec((1, tn), lambda j: (0, j)),   # bias tile
            ],
            out_specs=pl.BlockSpec((B, tn), lambda j: (0, j)),
        ),
        compiler_params=pltpu.CompilerParams(
            dimension_semantics=("parallel",)),
        cost_estimate=cost,
    )(x, w_pad, b_pad)

    y = out[:, :n_out]                                # (B, 8673)
    return y.reshape((B,) + UNFLAT)                   # nn.Unflatten(1, [1, 177, 49])


if __name__ == "__main__":
    key = jax.random.PRNGKey(0)
    k_x, k_w, k_b = jax.random.split(key, 3)

    B = 2
    x = jax.random.normal(k_x, (B, LATENT_DIMS), dtype=jnp.float32)

    # Deterministic synthetic parameters (shapes from nn.Linear(latent_dims, 8673)).
    bound = 1.0 / (LATENT_DIMS ** 0.5)
    weight = jax.random.uniform(k_w, (OUT_FEATURES, LATENT_DIMS),
                                minval=-bound, maxval=bound, dtype=jnp.float32)
    bias = jax.random.uniform(k_b, (OUT_FEATURES,),
                              minval=-bound, maxval=bound, dtype=jnp.float32)

    # One-time param prep (outside the hot path).
    w_pad, b_pad = prepare_graph_decoder_params(weight, bias)
    w_pad, b_pad = jax.block_until_ready((w_pad, b_pad))

    forward = jax.jit(graph_decoder_forward)
    out = forward(x, w_pad, b_pad)
    out = jax.block_until_ready(out)

    # Sanity check against plain-JAX reference.
    ref = jnp.maximum(x @ weight.T + bias, 0.0).reshape((B,) + UNFLAT)
    assert out.shape == (B, 1, 177, 49), out.shape
    assert jnp.allclose(out, ref, atol=1e-5, rtol=1e-5)

    print("KERNEL_OK")
</pallas_src>

<mosaic_0001>
module attributes {stable_mosaic.version = 11 : i64} {
  func.func @_fc_relu_kernel(%arg0: i32, %arg1: memref<2x32xf32, #tpu.memory_space<vmem>>, %arg2: memref<32x8704xf32, #tpu.memory_space<vmem>>, %arg3: memref<1x8704xf32, #tpu.memory_space<vmem>>, %arg4: memref<2x8704xf32, #tpu.memory_space<vmem>>) attributes {dimension_semantics = [#tpu.dimension_semantics<parallel>], iteration_bounds = array<i64: 1>, scalar_prefetch = 0 : i64, scratch_operands = 0 : i64, tpu.core_type = #tpu.core_type<tc>, window_params = [{pipeline_mode = #tpu.pipeline_mode<synchronous>, transform_indices = @transform_0, window_bounds = array<i64: 2, 32>}, {transform_indices = @transform_1, window_bounds = array<i64: 32, 8704>}, {transform_indices = @transform_2, window_bounds = array<i64: 1, 8704>}, {transform_indices = @transform_3, window_bounds = array<i64: 2, 8704>}]} {
    %c0 = arith.constant 0 : index
    %c0_0 = arith.constant 0 : index
    %0 = vector.load %arg1[%c0, %c0_0] : memref<2x32xf32, #tpu.memory_space<vmem>>, vector<2x32xf32>
    %c0_1 = arith.constant 0 : index
    %c0_2 = arith.constant 0 : index
    %1 = vector.load %arg2[%c0_1, %c0_2] : memref<32x8704xf32, #tpu.memory_space<vmem>>, vector<32x8704xf32>
    %cst = arith.constant dense<0.000000e+00> : vector<2x8704xf32>
    %2 = tpu.matmul %0, %1, %cst {dimension_numbers = #tpu.dot_dimension_numbers<[1], [0], [0], [1], [0, 0, 1, 1], [], []>} : vector<2x32xf32>, vector<32x8704xf32>, vector<2x8704xf32> -> vector<2x8704xf32>
    %c0_3 = arith.constant 0 : index
    %c0_4 = arith.constant 0 : index
    %3 = vector.load %arg3[%c0_3, %c0_4] : memref<1x8704xf32, #tpu.memory_space<vmem>>, vector<1x8704xf32>
    %4 = vector.broadcast %3 : vector<1x8704xf32> to vector<2x8704xf32>
    %5 = arith.addf %2, %4 : vector<2x8704xf32>
    %cst_5 = arith.constant 0.000000e+00 : f32
    %6 = vector.broadcast %cst_5 : f32 to vector<2x8704xf32>
    %7 = arith.maximumf %5, %6 : vector<2x8704xf32>
    %c0_6 = arith.constant 0 : index
    %c0_7 = arith.constant 0 : index
    %8 = vector.load %arg4[%c0_6, %c0_7] : memref<2x8704xf32, #tpu.memory_space<vmem>>, vector<2x8704xf32>
    tpu.vector_store %arg4[%c0_6, %c0_7], %7 {strides = array<i32>} : memref<2x8704xf32, #tpu.memory_space<vmem>>, vector<2x8704xf32>,
    return
  }
  func.func @transform_0(%arg0: i32) -> (i32, i32) {
    %c0_i32 = arith.constant 0 : i32
    %c0_i32_0 = arith.constant 0 : i32
    %c0_i32_1 = arith.constant 0 : i32
    return %c0_i32, %c0_i32_0 : i32, i32
  }
  func.func @transform_1(%arg0: i32) -> (i32, i32) {
    %c0_i32 = arith.constant 0 : i32
    %c0_i32_0 = arith.constant 0 : i32
    return %c0_i32, %arg0 : i32, i32
  }
  func.func @transform_2(%arg0: i32) -> (i32, i32) {
    %c0_i32 = arith.constant 0 : i32
    %c0_i32_0 = arith.constant 0 : i32
    return %c0_i32, %arg0 : i32, i32
  }
  func.func @transform_3(%arg0: i32) -> (i32, i32) {
    %c0_i32 = arith.constant 0 : i32
    %c0_i32_0 = arith.constant 0 : i32
    return %c0_i32, %arg0 : i32, i32
  }
}

</mosaic_0001>

<llo_original>
// kernel: graph_decoder_forward.1
$region0: #{graph_decoder_forward.1}
  #allocation0 [shape = 'u32[]', space=smem, size = 0x4, offset = 0x4, fixed_abs, tag = 'smem constant byte address 0x4 - core index']
  #allocation1 [shape = 'u32[144,128]{1,0:T(1,128)}', space=vmem, size = 0x12000, scoped, tag = 'internal scratch']
  %s0 = inlined_call_operand.hbm [shape: f32[2,32], index: 0, kind: input, shape index: {}]
  %s1 = inlined_call_operand.hbm [shape: f32[32,8704], index: 1, kind: input, shape index: {}]
  %s2 = inlined_call_operand.hbm [shape: f32[1,8704], index: 2, kind: input, shape index: {}]
  %s3 = inlined_call_operand.vmem [shape: f32[2,8704], index: 3, kind: output, shape index: {}]
  %s4 = sld [smem:[#allocation0]]
  $region34: #{graph_decoder_forward.1} parent=0
    _
  %s6 = ssub.s32 1, %s4
  %s7 = scalar_select 0, %s6, %s4
  $region1: #{graph_decoder_forward.1} parent=0
    #allocation2 [shape = 'u8[1024]{0}', space=vmem, size = 0x400, scoped, tag = 'input window, operand 0, single buffered']
    #allocation3 [shape = 's32[1]{0}', space=sflag, size = 0x4, scoped, tag = 'scoped memory for graph_decoder_forward.1']
    #allocation4 [shape = 'u8[1114112]{0}', space=vmem, size = 0x110000, scoped, tag = 'input window, operand 1, single buffered']
    #allocation5 [shape = 's32[1]{0}', space=sflag, size = 0x4, scoped, tag = 'scoped memory for graph_decoder_forward.1']
    #allocation6 [shape = 'u8[34816]{0}', space=vmem, size = 0x8800, scoped, tag = 'input window, operand 2, single buffered']
    %8 = vsyncpa [#allocation3], 0
    %9 = vsyncpa [#allocation5], 0
    // Predicated region
    $region2: #{graph_decoder_forward.1} parent=1 // pred_check
      _
    $region3: #{graph_decoder_forward.1} parent=1 // pred_check_branch
      %11 = sbr.rel (0) target = $region5
    $region4: #{graph_decoder_forward.1} parent=1 // pred_region
      %s13 = ssub.s32 32, 32
      %14 = vsyncadd [#allocation3], %s13
      %s16 = sshll.u32 [#allocation2], 4
      %s17 = int_to_ptr.vmem [resolvable:$true] %s16
      %19 = dma.hbm_to_vmem [thread:$0]  %s0, 32, %s17, [#allocation3]
    $region5: #{graph_decoder_forward.1} parent=1 // pred_fallthru
      _
    // Predicated region
    $region6: #{graph_decoder_forward.1} parent=1 // pred_check
      _
    $region7: #{graph_decoder_forward.1} parent=1 // pred_check_branch
      %21 = sbr.rel (0) target = $region9
    $region8: #{graph_decoder_forward.1} parent=1 // pred_region
      %s23 = ssub.s32 34816, 34816
      %24 = vsyncadd [#allocation5], %s23
      %s25 = sshll.u32 [#allocation4], 4
      %s26 = int_to_ptr.vmem [resolvable:$true] %s25
      %31 = dma.hbm_to_vmem [thread:$0]  %s1, 34816, %s26, [#allocation5], 8704, 8704, 544
    $region9: #{graph_decoder_forward.1} parent=1 // pred_fallthru
      _
    // Predicated region
    $region10: #{graph_decoder_forward.1} parent=1 // pred_check
      _
    $region11: #{graph_decoder_forward.1} parent=1 // pred_check_branch
      %33 = sbr.rel (0) target = $region13
    $region12: #{graph_decoder_forward.1} parent=1 // pred_region
      %s35 = ssub.s32 1088, 1088
      %36 = vsyncadd [#allocation5], %s35
      %s38 = sshll.u32 [#allocation6], 4
      %s39 = int_to_ptr.vmem [resolvable:$true] %s38
      %41 = dma.hbm_to_vmem [thread:$0]  %s2, 1088, %s39, [#allocation5]
    $region13: #{graph_decoder_forward.1} parent=1 // pred_fallthru
      _
    // Predicated region
    $region14: #{graph_decoder_forward.1} parent=1 // pred_check
      _
    $region15: #{graph_decoder_forward.1} parent=1 // pred_check_branch
      %43 = sbr.rel (0) target = $region17
    $region16: #{graph_decoder_forward.1} parent=1 // pred_region
      %44 = dma.done [#allocation3], 32
    $region17: #{graph_decoder_forward.1} parent=1 // pred_fallthru
      _
    // Predicated region
    $region18: #{graph_decoder_forward.1} parent=1 // pred_check
      _
    $region19: #{graph_decoder_forward.1} parent=1 // pred_check_branch
      %46 = sbr.rel (0) target = $region21
    $region20: #{graph_decoder_forward.1} parent=1 // pred_region
      %47 = dma.done [#allocation5], 34816
    $region21: #{graph_decoder_forward.1} parent=1 // pred_fallthru
      _
    // Predicated region
    $region22: #{graph_decoder_forward.1} parent=1 // pred_check
      _
    $region23: #{graph_decoder_forward.1} parent=1 // pred_check_branch
      %49 = sbr.rel (0) target = $region25
    $region24: #{graph_decoder_forward.1} parent=1 // pred_region
      %50 = dma.done [#allocation5], 1088
    $region25: #{graph_decoder_forward.1} parent=1 // pred_fallthru
      _
    %v51 = vld [vmem:[#allocation2] sm:$0x3]
    %v52 = vld [vmem:[#allocation4] sm:$0xff]
    %v53 = vld [vmem:[#allocation4 + $0x8] sm:$0xff]
    %v54 = vld [vmem:[#allocation4 + $0x10] sm:$0xff]
    %v55 = vld [vmem:[#allocation4 + $0x18] sm:$0xff]
    %v56 = vld [vmem:[#allocation4 + $0x20] sm:$0xff]
    %v57 = vld [vmem:[#allocation4 + $0x28] sm:$0xff]
    %v58 = vld [vmem:[#allocation4 + $0x30] sm:$0xff]
    %v59 = vld [vmem:[#allocation4 + $0x38] sm:$0xff]
    %v60 = vld [vmem:[#allocation4 + $0x40] sm:$0xff]
    %v61 = vld [vmem:[#allocation4 + $0x48] sm:$0xff]
    %v62 = vld [vmem:[#allocation4 + $0x50] sm:$0xff]
    %v63 = vld [vmem:[#allocation4 + $0x58] sm:$0xff]
    %v64 = vld [vmem:[#allocation4 + $0x60] sm:$0xff]
    %v65 = vld [vmem:[#allocation4 + $0x68] sm:$0xff]
    %v66 = vld [vmem:[#allocation4 + $0x70] sm:$0xff]
    %v67 = vld [vmem:[#allocation4 + $0x78] sm:$0xff]
    %v68 = vld [vmem:[#allocation4 + $0x80] sm:$0xff]
    %v69 = vld [vmem:[#allocation4 + $0x88] sm:$0xff]
    %v70 = vld [vmem:[#allocation4 + $0x90] sm:$0xff]
    %v71 = vld [vmem:[#allocation4 + $0x98] sm:$0xff]
    %v72 = vld [vmem:[#allocation4 + $0xa0] sm:$0xff]
    %v73 = vld [vmem:[#allocation4 + $0xa8] sm:$0xff]
    %v74 = vld [vmem:[#allocation4 + $0xb0] sm:$0xff]
    %v75 = vld [vmem:[#allocation4 + $0xb8] sm:$0xff]
    %v76 = vld [vmem:[#allocation4 + $0xc0] sm:$0xff]
    %v77 = vld [vmem:[#allocation4 + $0xc8] sm:$0xff]
    %v78 = vld [vmem:[#allocation4 + $0xd0] sm:$0xff]
    %v79 = vld [vmem:[#allocation4 + $0xd8] sm:$0xff]
    %v80 = vld [vmem:[#allocation4 + $0xe0] sm:$0xff]
    %v81 = vld [vmem:[#allocation4 + $0xe8] sm:$0xff]
    %v82 = vld [vmem:[#allocation4 + $0xf0] sm:$0xff]
    %v83 = vld [vmem:[#allocation4 + $0xf8] sm:$0xff]
    %v84 = vld [vmem:[#allocation4 + $0x100] sm:$0xff]
    %v85 = vld [vmem:[#allocation4 + $0x108] sm:$0xff]
    %v86 = vld [vmem:[#allocation4 + $0x110] sm:$0xff]
    %v87 = vld [vmem:[#allocation4 + $0x118] sm:$0xff]
    %v88 = vld [vmem:[#allocation4 + $0x120] sm:$0xff]
    %v89 = vld [vmem:[#allocation4 + $0x128] sm:$0xff]
    %v90 = vld [vmem:[#allocation4 + $0x130] sm:$0xff]
    %v91 = vld [vmem:[#allocation4 + $0x138] sm:$0xff]
    %v92 = vld [vmem:[#allocation4 + $0x140] sm:$0xff]
    %v93 = vld [vmem:[#allocation4 + $0x148] sm:$0xff]
    %v94 = vld [vmem:[#allocation4 + $0x150] sm:$0xff]
    %v95 = vld [vmem:[#allocation4 + $0x158] sm:$0xff]
    %v96 = vld [vmem:[#allocation4 + $0x160] sm:$0xff]
    %v97 = vld [vmem:[#allocation4 + $0x168] sm:$0xff]
    %v98 = vld [vmem:[#allocation4 + $0x170] sm:$0xff]
    %v99 = vld [vmem:[#allocation4 + $0x178] sm:$0xff]
    %v100 = vld [vmem:[#allocation4 + $0x180] sm:$0xff]
    %v101 = vld [vmem:[#allocation4 + $0x188] sm:$0xff]
    %v102 = vld [vmem:[#allocation4 + $0x190] sm:$0xff]
    %v103 = vld [vmem:[#allocation4 + $0x198] sm:$0xff]
    %v104 = vld [vmem:[#allocation4 + $0x1a0] sm:$0xff]
    %v105 = vld [vmem:[#allocation4 + $0x1a8] sm:$0xff]
    %v106 = vld [vmem:[#allocation4 + $0x1b0] sm:$0xff]
    %v107 = vld [vmem:[#allocation4 + $0x1b8] sm:$0xff]
    %v108 = vld [vmem:[#allocation4 + $0x1c0] sm:$0xff]
    %v109 = vld [vmem:[#allocation4 + $0x1c8] sm:$0xff]
    %v110 = vld [vmem:[#allocation4 + $0x1d0] sm:$0xff]
    %v111 = vld [vmem:[#allocation4 + $0x1d8] sm:$0xff]
    %v112 = vld [vmem:[#allocation4 + $0x1e0] sm:$0xff]
    %v113 = vld [vmem:[#allocation4 + $0x1e8] sm:$0xff]
    %v114 = vld [vmem:[#allocation4 + $0x1f0] sm:$0xff]
    %v115 = vld [vmem:[#allocation4 + $0x1f8] sm:$0xff]
    %v116 = vld [vmem:[#allocation4 + $0x200] sm:$0xff]
    %v117 = vld [vmem:[#allocation4 + $0x208] sm:$0xff]
    %v118 = vld [vmem:[#allocation4 + $0x210] sm:$0xff]
    %v119 = vld [vmem:[#allocation4 + $0x218] sm:$0xff]
    %v120 = vld [vmem:[#allocation4 + $0x220] sm:$0xff]
    %v121 = vld [vmem:[#allocation4 + $0x228] sm:$0xff]
    %v122 = vld [vmem:[#allocation4 + $0x230] sm:$0xff]
    %v123 = vld [vmem:[#allocation4 + $0x238] sm:$0xff]
    %v124 = vld [vmem:[#allocation4 + $0x240] sm:$0xff]
    %v125 = vld [vmem:[#allocation4 + $0x248] sm:$0xff]
    %v126 = vld [vmem:[#allocation4 + $0x250] sm:$0xff]
    %v127 = vld [vmem:[#allocation4 + $0x258] sm:$0xff]
    %v128 = vld [vmem:[#allocation4 + $0x260] sm:$0xff]
    %v129 = vld [vmem:[#allocation4 + $0x268] sm:$0xff]
    %v130 = vld [vmem:[#allocation4 + $0x270] sm:$0xff]
    %v131 = vld [vmem:[#allocation4 + $0x278] sm:$0xff]
    %v132 = vld [vmem:[#allocation4 + $0x280] sm:$0xff]
    %v133 = vld [vmem:[#allocation4 + $0x288] sm:$0xff]
    %v134 = vld [vmem:[#allocation4 + $0x290] sm:$0xff]
    %v135 = vld [vmem:[#allocation4 + $0x298] sm:$0xff]
    %v136 = vld [vmem:[#allocation4 + $0x2a0] sm:$0xff]
    %v137 = vld [vmem:[#allocation4 + $0x2a8] sm:$0xff]
    %v138 = vld [vmem:[#allocation4 + $0x2b0] sm:$0xff]
    %v139 = vld [vmem:[#allocation4 + $0x2b8] sm:$0xff]
    %v140 = vld [vmem:[#allocation4 + $0x2c0] sm:$0xff]
    %v141 = vld [vmem:[#allocation4 + $0x2c8] sm:$0xff]
    %v142 = vld [vmem:[#allocation4 + $0x2d0] sm:$0xff]
    %v143 = vld [vmem:[#allocation4 + $0x2d8] sm:$0xff]
    %v144 = vld [vmem:[#allocation4 + $0x2e0] sm:$0xff]
    %v145 = vld [vmem:[#allocation4 + $0x2e8] sm:$0xff]
    %v146 = vld [vmem:[#allocation4 + $0x2f0] sm:$0xff]
    %v147 = vld [vmem:[#allocation4 + $0x2f8] sm:$0xff]
    %v148 = vld [vmem:[#allocation4 + $0x300] sm:$0xff]
    %v149 = vld [vmem:[#allocation4 + $0x308] sm:$0xff]
    %v150 = vld [vmem:[#allocation4 + $0x310] sm:$0xff]
    %v151 = vld [vmem:[#allocation4 + $0x318] sm:$0xff]
    %v152 = vld [vmem:[#allocation4 + $0x320] sm:$0xff]
    %v153 = vld [vmem:[#allocation4 + $0x328] sm:$0xff]
    %v154 = vld [vmem:[#allocation4 + $0x330] sm:$0xff]
    %v155 = vld [vmem:[#allocation4 + $0x338] sm:$0xff]
    %v156 = vld [vmem:[#allocation4 + $0x340] sm:$0xff]
    %v157 = vld [vmem:[#allocation4 + $0x348] sm:$0xff]
    %v158 = vld [vmem:[#allocation4 + $0x350] sm:$0xff]
    %v159 = vld [vmem:[#allocation4 + $0x358] sm:$0xff]
    %v160 = vld [vmem:[#allocation4 + $0x360] sm:$0xff]
    %v161 = vld [vmem:[#allocation4 + $0x368] sm:$0xff]
    %v162 = vld [vmem:[#allocation4 + $0x370] sm:$0xff]
    %v163 = vld [vmem:[#allocation4 + $0x378] sm:$0xff]
    %v164 = vld [vmem:[#allocation4 + $0x380] sm:$0xff]
    %v165 = vld [vmem:[#allocation4 + $0x388] sm:$0xff]
    %v166 = vld [vmem:[#allocation4 + $0x390] sm:$0xff]
    %v167 = vld [vmem:[#allocation4 + $0x398] sm:$0xff]
    %v168 = vld [vmem:[#allocation4 + $0x3a0] sm:$0xff]
    %v169 = vld [vmem:[#allocation4 + $0x3a8] sm:$0xff]
    %v170 = vld [vmem:[#allocation4 + $0x3b0] sm:$0xff]
    %v171 = vld [vmem:[#allocation4 + $0x3b8] sm:$0xff]
    %v172 = vld [vmem:[#allocation4 + $0x3c0] sm:$0xff]
    %v173 = vld [vmem:[#allocation4 + $0x3c8] sm:$0xff]
    %v174 = vld [vmem:[#allocation4 + $0x3d0] sm:$0xff]
    %v175 = vld [vmem:[#allocation4 + $0x3d8] sm:$0xff]
    %v176 = vld [vmem:[#allocation4 + $0x3e0] sm:$0xff]
    %v177 = vld [vmem:[#allocation4 + $0x3e8] sm:$0xff]
    %v178 = vld [vmem:[#allocation4 + $0x3f0] sm:$0xff]
    %v179 = vld [vmem:[#allocation4 + $0x3f8] sm:$0xff]
    %v180 = vld [vmem:[#allocation4 + $0x400] sm:$0xff]
    %v181 = vld [vmem:[#allocation4 + $0x408] sm:$0xff]
    %v182 = vld [vmem:[#allocation4 + $0x410] sm:$0xff]
    %v183 = vld [vmem:[#allocation4 + $0x418] sm:$0xff]
    %v184 = vld [vmem:[#allocation4 + $0x420] sm:$0xff]
    %v185 = vld [vmem:[#allocation4 + $0x428] sm:$0xff]
    %v186 = vld [vmem:[#allocation4 + $0x430] sm:$0xff]
    %v187 = vld [vmem:[#allocation4 + $0x438] sm:$0xff]
    %v188 = vld [vmem:[#allocation4 + $0x440] sm:$0xff]
    %v189 = vld [vmem:[#allocation4 + $0x448] sm:$0xff]
    %v190 = vld [vmem:[#allocation4 + $0x450] sm:$0xff]
    %v191 = vld [vmem:[#allocation4 + $0x458] sm:$0xff]
    %v192 = vld [vmem:[#allocation4 + $0x460] sm:$0xff]
    %v193 = vld [vmem:[#allocation4 + $0x468] sm:$0xff]
    %v194 = vld [vmem:[#allocation4 + $0x470] sm:$0xff]
    %v195 = vld [vmem:[#allocation4 + $0x478] sm:$0xff]
    %v196 = vld [vmem:[#allocation4 + $0x480] sm:$0xff]
    %v197 = vld [vmem:[#allocation4 + $0x488] sm:$0xff]
    %v198 = vld [vmem:[#allocation4 + $0x490] sm:$0xff]
    %v199 = vld [vmem:[#allocation4 + $0x498] sm:$0xff]
    %v200 = vld [vmem:[#allocation4 + $0x4a0] sm:$0xff]
    %v201 = vld [vmem:[#allocation4 + $0x4a8] sm:$0xff]
    %v202 = vld [vmem:[#allocation4 + $0x4b0] sm:$0xff]
    %v203 = vld [vmem:[#allocation4 + $0x4b8] sm:$0xff]
    %v204 = vld [vmem:[#allocation4 + $0x4c0] sm:$0xff]
    %v205 = vld [vmem:[#allocation4 + $0x4c8] sm:$0xff]
    %v206 = vld [vmem:[#allocation4 + $0x4d0] sm:$0xff]
    %v207 = vld [vmem:[#allocation4 + $0x4d8] sm:$0xff]
    %v208 = vld [vmem:[#allocation4 + $0x4e0] sm:$0xff]
    %v209 = vld [vmem:[#allocation4 + $0x4e8] sm:$0xff]
    %v210 = vld [vmem:[#allocation4 + $0x4f0] sm:$0xff]
    %v211 = vld [vmem:[#allocation4 + $0x4f8] sm:$0xff]
    %v212 = vld [vmem:[#allocation4 + $0x500] sm:$0xff]
    %v213 = vld [vmem:[#allocation4 + $0x508] sm:$0xff]
    %v214 = vld [vmem:[#allocation4 + $0x510] sm:$0xff]
    %v215 = vld [vmem:[#allocation4 + $0x518] sm:$0xff]
    %v216 = vld [vmem:[#allocation4 + $0x520] sm:$0xff]
    %v217 = vld [vmem:[#allocation4 + $0x528] sm:$0xff]
    %v218 = vld [vmem:[#allocation4 + $0x530] sm:$0xff]
    %v219 = vld [vmem:[#allocation4 + $0x538] sm:$0xff]
    %v220 = vld [vmem:[#allocation4 + $0x540] sm:$0xff]
    %v221 = vld [vmem:[#allocation4 + $0x548] sm:$0xff]
    %v222 = vld [vmem:[#allocation4 + $0x550] sm:$0xff]
    %v223 = vld [vmem:[#allocation4 + $0x558] sm:$0xff]
    %v224 = vld [vmem:[#allocation4 + $0x560] sm:$0xff]
    %v225 = vld [vmem:[#allocation4 + $0x568] sm:$0xff]
    %v226 = vld [vmem:[#allocation4 + $0x570] sm:$0xff]
    %v227 = vld [vmem:[#allocation4 + $0x578] sm:$0xff]
    %v228 = vld [vmem:[#allocation4 + $0x580] sm:$0xff]
    %v229 = vld [vmem:[#allocation4 + $0x588] sm:$0xff]
    %v230 = vld [vmem:[#allocation4 + $0x590] sm:$0xff]
    %v231 = vld [vmem:[#allocation4 + $0x598] sm:$0xff]
    %v232 = vld [vmem:[#allocation4 + $0x5a0] sm:$0xff]
    %v233 = vld [vmem:[#allocation4 + $0x5a8] sm:$0xff]
    %v234 = vld [vmem:[#allocation4 + $0x5b0] sm:$0xff]
    %v235 = vld [vmem:[#allocation4 + $0x5b8] sm:$0xff]
    %v236 = vld [vmem:[#allocation4 + $0x5c0] sm:$0xff]
    %v237 = vld [vmem:[#allocation4 + $0x5c8] sm:$0xff]
    %v238 = vld [vmem:[#allocation4 + $0x5d0] sm:$0xff]
    %v239 = vld [vmem:[#allocation4 + $0x5d8] sm:$0xff]
    %v240 = vld [vmem:[#allocation4 + $0x5e0] sm:$0xff]
    %v241 = vld [vmem:[#allocation4 + $0x5e8] sm:$0xff]
    %v242 = vld [vmem:[#allocation4 + $0x5f0] sm:$0xff]
    %v243 = vld [vmem:[#allocation4 + $0x5f8] sm:$0xff]
    %v244 = vld [vmem:[#allocation4 + $0x600] sm:$0xff]
    %v245 = vld [vmem:[#allocation4 + $0x608] sm:$0xff]
    %v246 = vld [vmem:[#allocation4 + $0x610] sm:$0xff]
    %v247 = vld [vmem:[#allocation4 + $0x618] sm:$0xff]
    %v248 = vld [vmem:[#allocation4 + $0x620] sm:$0xff]
    %v249 = vld [vmem:[#allocation4 + $0x628] sm:$0xff]
    %v250 = vld [vmem:[#allocation4 + $0x630] sm:$0xff]
    %v251 = vld [vmem:[#allocation4 + $0x638] sm:$0xff]
    %v252 = vld [vmem:[#allocation4 + $0x640] sm:$0xff]
    %v253 = vld [vmem:[#allocation4 + $0x648] sm:$0xff]
    %v254 = vld [vmem:[#allocation4 + $0x650] sm:$0xff]
    %v255 = vld [vmem:[#allocation4 + $0x658] sm:$0xff]
    %v256 = vld [vmem:[#allocation4 + $0x660] sm:$0xff]
    %v257 = vld [vmem:[#allocation4 + $0x668] sm:$0xff]
    %v258 = vld [vmem:[#allocation4 + $0x670] sm:$0xff]
    %v259 = vld [vmem:[#allocation4 + $0x678] sm:$0xff]
    %v260 = vld [vmem:[#allocation4 + $0x680] sm:$0xff]
    %v261 = vld [vmem:[#allocation4 + $0x688] sm:$0xff]
    %v262 = vld [vmem:[#allocation4 + $0x690] sm:$0xff]
    %v263 = vld [vmem:[#allocation4 + $0x698] sm:$0xff]
    %v264 = vld [vmem:[#allocation4 + $0x6a0] sm:$0xff]
    %v265 = vld [vmem:[#allocation4 + $0x6a8] sm:$0xff]
    %v266 = vld [vmem:[#allocation4 + $0x6b0] sm:$0xff]
    %v267 = vld [vmem:[#allocation4 + $0x6b8] sm:$0xff]
    %v268 = vld [vmem:[#allocation4 + $0x6c0] sm:$0xff]
    %v269 = vld [vmem:[#allocation4 + $0x6c8] sm:$0xff]
    %v270 = vld [vmem:[#allocation4 + $0x6d0] sm:$0xff]
    %v271 = vld [vmem:[#allocation4 + $0x6d8] sm:$0xff]
    %v272 = vld [vmem:[#allocation4 + $0x6e0] sm:$0xff]
    %v273 = vld [vmem:[#allocation4 + $0x6e8] sm:$0xff]
    %v274 = vld [vmem:[#allocation4 + $0x6f0] sm:$0xff]
    %v275 = vld [vmem:[#allocation4 + $0x6f8] sm:$0xff]
    %v276 = vld [vmem:[#allocation4 + $0x700] sm:$0xff]
    %v277 = vld [vmem:[#allocation4 + $0x708] sm:$0xff]
    %v278 = vld [vmem:[#allocation4 + $0x710] sm:$0xff]
    %v279 = vld [vmem:[#allocation4 + $0x718] sm:$0xff]
    %v280 = vld [vmem:[#allocation4 + $0x720] sm:$0xff]
    %v281 = vld [vmem:[#allocation4 + $0x728] sm:$0xff]
    %v282 = vld [vmem:[#allocation4 + $0x730] sm:$0xff]
    %v283 = vld [vmem:[#allocation4 + $0x738] sm:$0xff]
    %v284 = vld [vmem:[#allocation4 + $0x740] sm:$0xff]
    %v285 = vld [vmem:[#allocation4 + $0x748] sm:$0xff]
    %v286 = vld [vmem:[#allocation4 + $0x750] sm:$0xff]
    %v287 = vld [vmem:[#allocation4 + $0x758] sm:$0xff]
    %v288 = vld [vmem:[#allocation4 + $0x760] sm:$0xff]
    %v289 = vld [vmem:[#allocation4 + $0x768] sm:$0xff]
    %v290 = vld [vmem:[#allocation4 + $0x770] sm:$0xff]
    %v291 = vld [vmem:[#allocation4 + $0x778] sm:$0xff]
    %v292 = vld [vmem:[#allocation4 + $0x780] sm:$0xff]
    %v293 = vld [vmem:[#allocation4 + $0x788] sm:$0xff]
    %v294 = vld [vmem:[#allocation4 + $0x790] sm:$0xff]
    %v295 = vld [vmem:[#allocation4 + $0x798] sm:$0xff]
    %v296 = vld [vmem:[#allocation4 + $0x7a0] sm:$0xff]
    %v297 = vld [vmem:[#allocation4 + $0x7a8] sm:$0xff]
    %v298 = vld [vmem:[#allocation4 + $0x7b0] sm:$0xff]
    %v299 = vld [vmem:[#allocation4 + $0x7b8] sm:$0xff]
    %v300 = vld [vmem:[#allocation4 + $0x7c0] sm:$0xff]
    %v301 = vld [vmem:[#allocation4 + $0x7c8] sm:$0xff]
    %v302 = vld [vmem:[#allocation4 + $0x7d0] sm:$0xff]
    %v303 = vld [vmem:[#allocation4 + $0x7d8] sm:$0xff]
    %v304 = vld [vmem:[#allocation4 + $0x7e0] sm:$0xff]
    %v305 = vld [vmem:[#allocation4 + $0x7e8] sm:$0xff]
    %v306 = vld [vmem:[#allocation4 + $0x7f0] sm:$0xff]
    %v307 = vld [vmem:[#allocation4 + $0x7f8] sm:$0xff]
    %v308 = vld [vmem:[#allocation4 + $0x800] sm:$0xff]
    %v309 = vld [vmem:[#allocation4 + $0x808] sm:$0xff]
    %v310 = vld [vmem:[#allocation4 + $0x810] sm:$0xff]
    %v311 = vld [vmem:[#allocation4 + $0x818] sm:$0xff]
    %v312 = vld [vmem:[#allocation4 + $0x820] sm:$0xff]
    %v313 = vld [vmem:[#allocation4 + $0x828] sm:$0xff]
    %v314 = vld [vmem:[#allocation4 + $0x830] sm:$0xff]
    %v315 = vld [vmem:[#allocation4 + $0x838] sm:$0xff]
    %v316 = vld [vmem:[#allocation4 + $0x840] sm:$0xff]
    %v317 = vld [vmem:[#allocation4 + $0x848] sm:$0xff]
    %v318 = vld [vmem:[#allocation4 + $0x850] sm:$0xff]
    %v319 = vld [vmem:[#allocation4 + $0x858] sm:$0xff]
    %v320 = vld [vmem:[#allocation4 + $0x860] sm:$0xff]
    %v321 = vld [vmem:[#allocation4 + $0x868] sm:$0xff]
    %v322 = vld [vmem:[#allocation4 + $0x870] sm:$0xff]
    %v323 = vld [vmem:[#allocation4 + $0x878] sm:$0xff]
    %v324 = vld [vmem:[#allocation6] sm:$0xff]
    %v325 = vld [vmem:[#allocation6 + $0x8] sm:$0xff]
    %v326 = vld [vmem:[#allocation6 + $0x10] sm:$0xff]
    %v327 = vld [vmem:[#allocation6 + $0x18] sm:$0xff]
    %v328 = vld [vmem:[#allocation6 + $0x20] sm:$0xff]
    %v329 = vld [vmem:[#allocation6 + $0x28] sm:$0xff]
    %v330 = vld [vmem:[#allocation6 + $0x30] sm:$0xff]
    %v331 = vld [vmem:[#allocation6 + $0x38] sm:$0xff]
    %v332 = vld [vmem:[#allocation6 + $0x40] sm:$0xf]
    %v342 = vlaneseq
    %v343 = vshrl.u32 %v342, 7
    %v344 = vsub.s32 0, %v343
    %v345 = vrot.slane %v324, %v344
    %v346 = vlaneseq
    %v347 = vshrl.u32 %v346, 7
    %v348 = vsub.s32 1, %v347
    %v349 = vrot.slane %v324, %v348
    %v350 = vlaneseq
    %v351 = vshrl.u32 %v350, 7
    %v352 = vsub.s32 2, %v351
    %v353 = vrot.slane %v324, %v352
    %v354 = vlaneseq
    %v355 = vshrl.u32 %v354, 7
    %v356 = vsub.s32 3, %v355
    %v357 = vrot.slane %v324, %v356
    %v358 = vlaneseq
    %v359 = vshrl.u32 %v358, 7
    %v360 = vsub.s32 4, %v359
    %v361 = vrot.slane %v324, %v360
    %v362 = vlaneseq
    %v363 = vshrl.u32 %v362, 7
    %v364 = vsub.s32 5, %v363
    %v365 = vrot.slane %v324, %v364
    %v366 = vlaneseq
    %v367 = vshrl.u32 %v366, 7
    %v368 = vsub.s32 6, %v367
    %v369 = vrot.slane %v324, %v368
    %v370 = vlaneseq
    %v371 = vshrl.u32 %v370, 7
    %v372 = vsub.s32 7, %v371
    %v373 = vrot.slane %v324, %v372
    %v374 = vlaneseq
    %v375 = vshrl.u32 %v374, 7
    %v376 = vsub.s32 0, %v375
    %v377 = vrot.slane %v325, %v376
    %v378 = vlaneseq
    %v379 = vshrl.u32 %v378, 7
    %v380 = vsub.s32 1, %v379
    %v381 = vrot.slane %v325, %v380
    %v382 = vlaneseq
    %v383 = vshrl.u32 %v382, 7
    %v384 = vsub.s32 2, %v383
    %v385 = vrot.slane %v325, %v384
    %v386 = vlaneseq
    %v387 = vshrl.u32 %v386, 7
    %v388 = vsub.s32 3, %v387
    %v389 = vrot.slane %v325, %v388
    %v390 = vlaneseq
    %v391 = vshrl.u32 %v390, 7
    %v392 = vsub.s32 4, %v391
    %v393 = vrot.slane %v325, %v392
    %v394 = vlaneseq
    %v395 = vshrl.u32 %v394, 7
    %v396 = vsub.s32 5, %v395
    %v397 = vrot.slane %v325, %v396
    %v398 = vlaneseq
    %v399 = vshrl.u32 %v398, 7
    %v400 = vsub.s32 6, %v399
    %v401 = vrot.slane %v325, %v400
    %v402 = vlaneseq
    %v403 = vshrl.u32 %v402, 7
    %v404 = vsub.s32 7, %v403
    %v405 = vrot.slane %v325, %v404
    %v406 = vlaneseq
    %v407 = vshrl.u32 %v406, 7
    %v408 = vsub.s32 0, %v407
    %v409 = vrot.slane %v326, %v408
    %v410 = vlaneseq
    %v411 = vshrl.u32 %v410, 7
    %v412 = vsub.s32 1, %v411
    %v413 = vrot.slane %v326, %v412
    %v414 = vlaneseq
    %v415 = vshrl.u32 %v414, 7
    %v416 = vsub.s32 2, %v415
    %v417 = vrot.slane %v326, %v416
    %v418 = vlaneseq
    %v419 = vshrl.u32 %v418, 7
    %v420 = vsub.s32 3, %v419
    %v421 = vrot.slane %v326, %v420
    %v422 = vlaneseq
    %v423 = vshrl.u32 %v422, 7
    %v424 = vsub.s32 4, %v423
    %v425 = vrot.slane %v326, %v424
    %v426 = vlaneseq
    %v427 = vshrl.u32 %v426, 7
    %v428 = vsub.s32 5, %v427
    %v429 = vrot.slane %v326, %v428
    %v430 = vlaneseq
    %v431 = vshrl.u32 %v430, 7
    %v432 = vsub.s32 6, %v431
    %v433 = vrot.slane %v326, %v432
    %v434 = vlaneseq
    %v435 = vshrl.u32 %v434, 7
    %v436 = vsub.s32 7, %v435
    %v437 = vrot.slane %v326, %v436
    %v438 = vlaneseq
    %v439 = vshrl.u32 %v438, 7
    %v440 = vsub.s32 0, %v439
    %v441 = vrot.slane %v327, %v440
    %v442 = vlaneseq
    %v443 = vshrl.u32 %v442, 7
    %v444 = vsub.s32 1, %v443
    %v445 = vrot.slane %v327, %v444
    %v446 = vlaneseq
    %v447 = vshrl.u32 %v446, 7
    %v448 = vsub.s32 2, %v447
    %v449 = vrot.slane %v327, %v448
    %v450 = vlaneseq
    %v451 = vshrl.u32 %v450, 7
    %v452 = vsub.s32 3, %v451
    %v453 = vrot.slane %v327, %v452
    %v454 = vlaneseq
    %v455 = vshrl.u32 %v454, 7
    %v456 = vsub.s32 4, %v455
    %v457 = vrot.slane %v327, %v456
    %v458 = vlaneseq
    %v459 = vshrl.u32 %v458, 7
    %v460 = vsub.s32 5, %v459
    %v461 = vrot.slane %v327, %v460
    %v462 = vlaneseq
    %v463 = vshrl.u32 %v462, 7
    %v464 = vsub.s32 6, %v463
    %v465 = vrot.slane %v327, %v464
    %v466 = vlaneseq
    %v467 = vshrl.u32 %v466, 7
    %v468 = vsub.s32 7, %v467
    %v469 = vrot.slane %v327, %v468
    %v470 = vlaneseq
    %v471 = vshrl.u32 %v470, 7
    %v472 = vsub.s32 0, %v471
    %v473 = vrot.slane %v328, %v472
    %v474 = vlaneseq
    %v475 = vshrl.u32 %v474, 7
    %v476 = vsub.s32 1, %v475
    %v477 = vrot.slane %v328, %v476
    %v478 = vlaneseq
    %v479 = vshrl.u32 %v478, 7
    %v480 = vsub.s32 2, %v479
    %v481 = vrot.slane %v328, %v480
    %v482 = vlaneseq
    %v483 = vshrl.u32 %v482, 7
    %v484 = vsub.s32 3, %v483
    %v485 = vrot.slane %v328, %v484
    %v486 = vlaneseq
    %v487 = vshrl.u32 %v486, 7
    %v488 = vsub.s32 4, %v487
    %v489 = vrot.slane %v328, %v488
    %v490 = vlaneseq
    %v491 = vshrl.u32 %v490, 7
    %v492 = vsub.s32 5, %v491
    %v493 = vrot.slane %v328, %v492
    %v494 = vlaneseq
    %v495 = vshrl.u32 %v494, 7
    %v496 = vsub.s32 6, %v495
    %v497 = vrot.slane %v328, %v496
    %v498 = vlaneseq
    %v499 = vshrl.u32 %v498, 7
    %v500 = vsub.s32 7, %v499
    %v501 = vrot.slane %v328, %v500
    %v502 = vlaneseq
    %v503 = vshrl.u32 %v502, 7
    %v504 = vsub.s32 0, %v503
    %v505 = vrot.slane %v329, %v504
    %v506 = vlaneseq
    %v507 = vshrl.u32 %v506, 7
    %v508 = vsub.s32 1, %v507
    %v509 = vrot.slane %v329, %v508
    %v510 = vlaneseq
    %v511 = vshrl.u32 %v510, 7
    %v512 = vsub.s32 2, %v511
    %v513 = vrot.slane %v329, %v512
    %v514 = vlaneseq
    %v515 = vshrl.u32 %v514, 7
    %v516 = vsub.s32 3, %v515
    %v517 = vrot.slane %v329, %v516
    %v518 = vlaneseq
    %v519 = vshrl.u32 %v518, 7
    %v520 = vsub.s32 4, %v519
    %v521 = vrot.slane %v329, %v520
    %v522 = vlaneseq
    %v523 = vshrl.u32 %v522, 7
    %v524 = vsub.s32 5, %v523
    %v525 = vrot.slane %v329, %v524
    %v526 = vlaneseq
    %v527 = vshrl.u32 %v526, 7
    %v528 = vsub.s32 6, %v527
    %v529 = vrot.slane %v329, %v528
    %v530 = vlaneseq
    %v531 = vshrl.u32 %v530, 7
    %v532 = vsub.s32 7, %v531
    %v533 = vrot.slane %v329, %v532
    %v534 = vlaneseq
    %v535 = vshrl.u32 %v534, 7
    %v536 = vsub.s32 0, %v535
    %v537 = vrot.slane %v330, %v536
    %v538 = vlaneseq
    %v539 = vshrl.u32 %v538, 7
    %v540 = vsub.s32 1, %v539
    %v541 = vrot.slane %v330, %v540
    %v542 = vlaneseq
    %v543 = vshrl.u32 %v542, 7
    %v544 = vsub.s32 2, %v543
    %v545 = vrot.slane %v330, %v544
    %v546 = vlaneseq
    %v547 = vshrl.u32 %v546, 7
    %v548 = vsub.s32 3, %v547
    %v549 = vrot.slane %v330, %v548
    %v550 = vlaneseq
    %v551 = vshrl.u32 %v550, 7
    %v552 = vsub.s32 4, %v551
    %v553 = vrot.slane %v330, %v552
    %v554 = vlaneseq
    %v555 = vshrl.u32 %v554, 7
    %v556 = vsub.s32 5, %v555
    %v557 = vrot.slane %v330, %v556
    %v558 = vlaneseq
    %v559 = vshrl.u32 %v558, 7
    %v560 = vsub.s32 6, %v559
    %v561 = vrot.slane %v330, %v560
    %v562 = vlaneseq
    %v563 = vshrl.u32 %v562, 7
    %v564 = vsub.s32 7, %v563
    %v565 = vrot.slane %v330, %v564
    %v566 = vlaneseq
    %v567 = vshrl.u32 %v566, 7
    %v568 = vsub.s32 0, %v567
    %v569 = vrot.slane %v331, %v568
    %v570 = vlaneseq
    %v571 = vshrl.u32 %v570, 7
    %v572 = vsub.s32 1, %v571
    %v573 = vrot.slane %v331, %v572
    %v574 = vlaneseq
    %v575 = vshrl.u32 %v574, 7
    %v576 = vsub.s32 2, %v575
    %v577 = vrot.slane %v331, %v576
    %v578 = vlaneseq
    %v579 = vshrl.u32 %v578, 7
    %v580 = vsub.s32 3, %v579
    %v581 = vrot.slane %v331, %v580
    %v582 = vlaneseq
    %v583 = vshrl.u32 %v582, 7
    %v584 = vsub.s32 4, %v583
    %v585 = vrot.slane %v331, %v584
    %v586 = vlaneseq
    %v587 = vshrl.u32 %v586, 7
    %v588 = vsub.s32 5, %v587
    %v589 = vrot.slane %v331, %v588
    %v590 = vlaneseq
    %v591 = vshrl.u32 %v590, 7
    %v592 = vsub.s32 6, %v591
    %v593 = vrot.slane %v331, %v592
    %v594 = vlaneseq
    %v595 = vshrl.u32 %v594, 7
    %v596 = vsub.s32 7, %v595
    %v597 = vrot.slane %v331, %v596
    %v598 = vlaneseq
    %v599 = vshrl.u32 %v598, 7
    %v600 = vsub.s32 0, %v599
    %v601 = vrot.slane %v332, %v600
    %v602 = vlaneseq
    %v603 = vshrl.u32 %v602, 7
    %v604 = vsub.s32 1, %v603
    %v605 = vrot.slane %v332, %v604
    %v606 = vlaneseq
    %v607 = vshrl.u32 %v606, 7
    %v608 = vsub.s32 2, %v607
    %v609 = vrot.slane %v332, %v608
    %v610 = vlaneseq
    %v611 = vshrl.u32 %v610, 7
    %v612 = vsub.s32 3, %v611
    %v613 = vrot.slane %v332, %v612
    %vm682 = vcmask 261120
    %v684 = vsel %vm682, %v51, 0
    %686 = vmatprep.subr.mxu0 %v53
    %687 = vmatpush1.msra.mxu0 %v52
    %688 = vmatprep.subr.mxu0 %v121
    %689 = vmatpush1.msra.mxu0 %v120
    %690 = vmatprep.subr.mxu0 %v189
    %691 = vmatpush1.msra.mxu0 %v188
    %692 = vmatprep.subr.mxu0 %v257
    %693 = vmatpush1.msra.mxu0 %v256
    %694 = vmatprep.subr.mxu0 0.0
    %695 = vmatpush1.msra.mxu0 0.0
    %696 = vmatprep.subr.mxu0 0.0
    %697 = vmatpush1.msra.mxu0 0.0
    %698 = vmatprep.subr.mxu0 0.0
    %699 = vmatpush1.msra.mxu0 0.0
    %700 = vmatprep.subr.mxu0 0.0
    %701 = vmatpush1.msra.mxu0 0.0
    %702 = vmatprep.subr.mxu0 0.0
    %703 = vmatpush1.msra.mxu0 0.0
    %704 = vmatprep.subr.mxu0 0.0
    %705 = vmatpush1.msra.mxu0 0.0
    %706 = vmatprep.subr.mxu0 0.0
    %707 = vmatpush1.msra.mxu0 0.0
    %708 = vmatprep.subr.mxu0 0.0
    %709 = vmatpush1.msra.mxu0 0.0
    %710 = vmatprep.subr.mxu0 0.0
    %711 = vmatpush1.msra.mxu0 0.0
    %712 = vmatprep.subr.mxu0 0.0
    %713 = vmatpush1.msra.mxu0 0.0
    %714 = vmatprep.subr.mxu0 0.0
    %715 = vmatpush1.msra.mxu0 0.0
    %716 = vmatprep.subr.mxu0 0.0
    %717 = vmatpush1.msra.mxu0 0.0
    %718 = vmatprep.subr.mxu0 0.0
    %719 = vmatpush1.msra.mxu0 0.0
    %720 = vmatprep.subr.mxu0 0.0
    %721 = vmatpush1.msra.mxu0 0.0
    %722 = vmatprep.subr.mxu0 0.0
    %723 = vmatpush1.msra.mxu0 0.0
    %724 = vmatprep.subr.mxu0 0.0
    %725 = vmatpush1.msra.mxu0 0.0
    %726 = vmatprep.subr.mxu0 0.0
    %727 = vmatpush1.msra.mxu0 0.0
    %728 = vmatprep.subr.mxu0 0.0
    %729 = vmatpush1.msra.mxu0 0.0
    %730 = vmatprep.subr.mxu0 0.0
    %731 = vmatpush1.msra.mxu0 0.0
    %732 = vmatprep.subr.mxu0 0.0
    %733 = vmatpush1.msra.mxu0 0.0
    %734 = vmatprep.subr.mxu0 0.0
    %735 = vmatpush1.msra.mxu0 0.0
    %736 = vmatprep.subr.mxu0 0.0
    %737 = vmatpush1.msra.mxu0 0.0
    %738 = vmatprep.subr.mxu0 0.0
    %739 = vmatpush1.msra.mxu0 0.0
    %740 = vmatprep.subr.mxu0 0.0
    %741 = vmatpush1.msra.mxu0 0.0
    %742 = vmatprep.subr.mxu0 0.0
    %743 = vmatpush1.msra.mxu0 0.0
    %744 = vmatprep.subr.mxu0 0.0
    %745 = vmatpush1.msra.mxu0 0.0
    %746 = vmatprep.subr.mxu0 0.0
    %747 = vmatpush1.msra.mxu0 0.0
    %748 = vmatprep.subr.mxu0 0.0
    %749 = vmatpush1.msra.mxu0 0.0
    %750 = vmatprep.mubr.f32.mxu0 0.0
    %751 = vmatmul.mubr.f32.gmra.mrb[0].mxu0 %v684
    %v752 = vpop.f32.mrb[0].mxu0
    %v753 = vadd.f32 %v345, %v752
    %v754 = vpop.f32.mrb[0].mxu0
    %v755 = vadd.f32 %v349, %v754
    %756 = vdwg.mxu0
    %757 = vmatprep.subr.mxu0 %v55
    %758 = vmatpush1.msra.mxu0 %v54
    %759 = vmatprep.subr.mxu0 %v123
    %760 = vmatpush1.msra.mxu0 %v122
    %761 = vmatprep.subr.mxu0 %v191
    %762 = vmatpush1.msra.mxu0 %v190
    %763 = vmatprep.subr.mxu0 %v259
    %764 = vmatpush1.msra.mxu0 %v258
    %765 = vmatprep.subr.mxu0 0.0
    %766 = vmatpush1.msra.mxu0 0.0
    %767 = vmatprep.subr.mxu0 0.0
    %768 = vmatpush1.msra.mxu0 0.0
    %769 = vmatprep.subr.mxu0 0.0
    %770 = vmatpush1.msra.mxu0 0.0
    %771 = vmatprep.subr.mxu0 0.0
    %772 = vmatpush1.msra.mxu0 0.0
    %773 = vmatprep.subr.mxu0 0.0
    %774 = vmatpush1.msra.mxu0 0.0
    %775 = vmatprep.subr.mxu0 0.0
    %776 = vmatpush1.msra.mxu0 0.0
    %777 = vmatprep.subr.mxu0 0.0
    %778 = vmatpush1.msra.mxu0 0.0
    %779 = vmatprep.subr.mxu0 0.0
    %780 = vmatpush1.msra.mxu0 0.0
    %781 = vmatprep.subr.mxu0 0.0
    %782 = vmatpush1.msra.mxu0 0.0
    %783 = vmatprep.subr.mxu0 0.0
    %784 = vmatpush1.msra.mxu0 0.0
    %785 = vmatprep.subr.mxu0 0.0
    %786 = vmatpush1.msra.mxu0 0.0
    %787 = vmatprep.subr.mxu0 0.0
    %788 = vmatpush1.msra.mxu0 0.0
    %789 = vmatprep.subr.mxu0 0.0
    %790 = vmatpush1.msra.mxu0 0.0
    %791 = vmatprep.subr.mxu0 0.0
    %792 = vmatpush1.msra.mxu0 0.0
    %793 = vmatprep.subr.mxu0 0.0
    %794 = vmatpush1.msra.mxu0 0.0
    %795 = vmatprep.subr.mxu0 0.0
    %796 = vmatpush1.msra.mxu0 0.0
    %797 = vmatprep.subr.mxu0 0.0
    %798 = vmatpush1.msra.mxu0 0.0
    %799 = vmatprep.subr.mxu0 0.0
    %800 = vmatpush1.msra.mxu0 0.0
    %801 = vmatprep.subr.mxu0 0.0
    %802 = vmatpush1.msra.mxu0 0.0
    %803 = vmatprep.subr.mxu0 0.0
    %804 = vmatpush1.msra.mxu0 0.0
    %805 = vmatprep.subr.mxu0 0.0
    %806 = vmatpush1.msra.mxu0 0.0
    %807 = vmatprep.subr.mxu0 0.0
    %808 = vmatpush1.msra.mxu0 0.0
    %809 = vmatprep.subr.mxu0 0.0
    %810 = vmatpush1.msra.mxu0 0.0
    %811 = vmatprep.subr.mxu0 0.0
    %812 = vmatpush1.msra.mxu0 0.0
    %813 = vmatprep.subr.mxu0 0.0
    %814 = vmatpush1.msra.mxu0 0.0
    %815 = vmatprep.subr.mxu0 0.0
    %816 = vmatpush1.msra.mxu0 0.0
    %817 = vmatprep.subr.mxu0 0.0
    %818 = vmatpush1.msra.mxu0 0.0
    %819 = vmatprep.subr.mxu0 0.0
    %820 = vmatpush1.msra.mxu0 0.0
    %821 = vmatprep.mubr.f32.mxu0 0.0
    %822 = vmatmul.mubr.f32.gmra.mrb[0].mxu0 %v684
    %v823 = vpop.f32.mrb[0].mxu0
    %v824 = vadd.f32 %v353, %v823
    %v825 = vpop.f32.mrb[0].mxu0
    %v826 = vadd.f32 %v357, %v825
    %827 = vdwg.mxu0
    %828 = vmatprep.subr.mxu0 %v57
    %829 = vmatpush1.msra.mxu0 %v56
    %830 = vmatprep.subr.mxu0 %v125
    %831 = vmatpush1.msra.mxu0 %v124
    %832 = vmatprep.subr.mxu0 %v193
    %833 = vmatpush1.msra.mxu0 %v192
    %834 = vmatprep.subr.mxu0 %v261
    %835 = vmatpush1.msra.mxu0 %v260
    %836 = vmatprep.subr.mxu0 0.0
    %837 = vmatpush1.msra.mxu0 0.0
    %838 = vmatprep.subr.mxu0 0.0
    %839 = vmatpush1.msra.mxu0 0.0
    %840 = vmatprep.subr.mxu0 0.0
    %841 = vmatpush1.msra.mxu0 0.0
    %842 = vmatprep.subr.mxu0 0.0
    %843 = vmatpush1.msra.mxu0 0.0
    %844 = vmatprep.subr.mxu0 0.0
    %845 = vmatpush1.msra.mxu0 0.0
    %846 = vmatprep.subr.mxu0 0.0
    %847 = vmatpush1.msra.mxu0 0.0
    %848 = vmatprep.subr.mxu0 0.0
    %849 = vmatpush1.msra.mxu0 0.0
    %850 = vmatprep.subr.mxu0 0.0
    %851 = vmatpush1.msra.mxu0 0.0
    %852 = vmatprep.subr.mxu0 0.0
    %853 = vmatpush1.msra.mxu0 0.0
    %854 = vmatprep.subr.mxu0 0.0
    %855 = vmatpush1.msra.mxu0 0.0
    %856 = vmatprep.subr.mxu0 0.0
    %857 = vmatpush1.msra.mxu0 0.0
    %858 = vmatprep.subr.mxu0 0.0
    %859 = vmatpush1.msra.mxu0 0.0
    %860 = vmatprep.subr.mxu0 0.0
    %861 = vmatpush1.msra.mxu0 0.0
    %862 = vmatprep.subr.mxu0 0.0
    %863 = vmatpush1.msra.mxu0 0.0
    %864 = vmatprep.subr.mxu0 0.0
    %865 = vmatpush1.msra.mxu0 0.0
    %866 = vmatprep.subr.mxu0 0.0
    %867 = vmatpush1.msra.mxu0 0.0
    %868 = vmatprep.subr.mxu0 0.0
    %869 = vmatpush1.msra.mxu0 0.0
    %870 = vmatprep.subr.mxu0 0.0
    %871 = vmatpush1.msra.mxu0 0.0
    %872 = vmatprep.subr.mxu0 0.0
    %873 = vmatpush1.msra.mxu0 0.0
    %874 = vmatprep.subr.mxu0 0.0
    %875 = vmatpush1.msra.mxu0 0.0
    %876 = vmatprep.subr.mxu0 0.0
    %877 = vmatpush1.msra.mxu0 0.0
    %878 = vmatprep.subr.mxu0 0.0
    %879 = vmatpush1.msra.mxu0 0.0
    %880 = vmatprep.subr.mxu0 0.0
    %881 = vmatpush1.msra.mxu0 0.0
    %882 = vmatprep.subr.mxu0 0.0
    %883 = vmatpush1.msra.mxu0 0.0
    %884 = vmatprep.subr.mxu0 0.0
    %885 = vmatpush1.msra.mxu0 0.0
    %886 = vmatprep.subr.mxu0 0.0
    %887 = vmatpush1.msra.mxu0 0.0
    %888 = vmatprep.subr.mxu0 0.0
    %889 = vmatpush1.msra.mxu0 0.0
    %890 = vmatprep.subr.mxu0 0.0
    %891 = vmatpush1.msra.mxu0 0.0
    %892 = vmatprep.mubr.f32.mxu0 0.0
    %893 = vmatmul.mubr.f32.gmra.mrb[0].mxu0 %v684
    %v894 = vpop.f32.mrb[0].mxu0
    %v895 = vadd.f32 %v361, %v894
    %v896 = vpop.f32.mrb[0].mxu0
    %v897 = vadd.f32 %v365, %v896
    %898 = vdwg.mxu0
    %899 = vmatprep.subr.mxu0 %v59
    %900 = vmatpush1.msra.mxu0 %v58
    %901 = vmatprep.subr.mxu0 %v127
    %902 = vmatpush1.msra.mxu0 %v126
    %903 = vmatprep.subr.mxu0 %v195
    %904 = vmatpush1.msra.mxu0 %v194
    %905 = vmatprep.subr.mxu0 %v263
    %906 = vmatpush1.msra.mxu0 %v262
    %907 = vmatprep.subr.mxu0 0.0
    %908 = vmatpush1.msra.mxu0 0.0
    %909 = vmatprep.subr.mxu0 0.0
    %910 = vmatpush1.msra.mxu0 0.0
    %911 = vmatprep.subr.mxu0 0.0
    %912 = vmatpush1.msra.mxu0 0.0
    %913 = vmatprep.subr.mxu0 0.0
    %914 = vmatpush1.msra.mxu0 0.0
    %915 = vmatprep.subr.mxu0 0.0
    %916 = vmatpush1.msra.mxu0 0.0
    %917 = vmatprep.subr.mxu0 0.0
    %918 = vmatpush1.msra.mxu0 0.0
    %919 = vmatprep.subr.mxu0 0.0
    %920 = vmatpush1.msra.mxu0 0.0
    %921 = vmatprep.subr.mxu0 0.0
    %922 = vmatpush1.msra.mxu0 0.0
    %923 = vmatprep.subr.mxu0 0.0
    %924 = vmatpush1.msra.mxu0 0.0
    %925 = vmatprep.subr.mxu0 0.0
    %926 = vmatpush1.msra.mxu0 0.0
    %927 = vmatprep.subr.mxu0 0.0
    %928 = vmatpush1.msra.mxu0 0.0
    %929 = vmatprep.subr.mxu0 0.0
    %930 = vmatpush1.msra.mxu0 0.0
    %931 = vmatprep.subr.mxu0 0.0
    %932 = vmatpush1.msra.mxu0 0.0
    %933 = vmatprep.subr.mxu0 0.0
    %934 = vmatpush1.msra.mxu0 0.0
    %935 = vmatprep.subr.mxu0 0.0
    %936 = vmatpush1.msra.mxu0 0.0
    %937 = vmatprep.subr.mxu0 0.0
    %938 = vmatpush1.msra.mxu0 0.0
    %939 = vmatprep.subr.mxu0 0.0
    %940 = vmatpush1.msra.mxu0 0.0
    %941 = vmatprep.subr.mxu0 0.0
    %942 = vmatpush1.msra.mxu0 0.0
    %943 = vmatprep.subr.mxu0 0.0
    %944 = vmatpush1.msra.mxu0 0.0
    %945 = vmatprep.subr.mxu0 0.0
    %946 = vmatpush1.msra.mxu0 0.0
    %947 = vmatprep.subr.mxu0 0.0
    %948 = vmatpush1.msra.mxu0 0.0
    %949 = vmatprep.subr.mxu0 0.0
    %950 = vmatpush1.msra.mxu0 0.0
    %951 = vmatprep.subr.mxu0 0.0
    %952 = vmatpush1.msra.mxu0 0.0
    %953 = vmatprep.subr.mxu0 0.0
    %954 = vmatpush1.msra.mxu0 0.0
    %955 = vmatprep.subr.mxu0 0.0
    %956 = vmatpush1.msra.mxu0 0.0
    %957 = vmatprep.subr.mxu0 0.0
    %958 = vmatpush1.msra.mxu0 0.0
    %959 = vmatprep.subr.mxu0 0.0
    %960 = vmatpush1.msra.mxu0 0.0
    %961 = vmatprep.subr.mxu0 0.0
    %962 = vmatpush1.msra.mxu0 0.0
    %963 = vmatprep.mubr.f32.mxu0 0.0
    %964 = vmatmul.mubr.f32.gmra.mrb[0].mxu0 %v684
    %v965 = vpop.f32.mrb[0].mxu0
    %v966 = vadd.f32 %v369, %v965
    %v967 = vpop.f32.mrb[0].mxu0
    %v968 = vadd.f32 %v373, %v967
    %969 = vdwg.mxu0
    %970 = vmatprep.subr.mxu0 %v61
    %971 = vmatpush1.msra.mxu0 %v60
    %972 = vmatprep.subr.mxu0 %v129
    %973 = vmatpush1.msra.mxu0 %v128
    %974 = vmatprep.subr.mxu0 %v197
    %975 = vmatpush1.msra.mxu0 %v196
    %976 = vmatprep.subr.mxu0 %v265
    %977 = vmatpush1.msra.mxu0 %v264
    %978 = vmatprep.subr.mxu0 0.0
    %979 = vmatpush1.msra.mxu0 0.0
    %980 = vmatprep.subr.mxu0 0.0
    %981 = vmatpush1.msra.mxu0 0.0
    %982 = vmatprep.subr.mxu0 0.0
    %983 = vmatpush1.msra.mxu0 0.0
    %984 = vmatprep.subr.mxu0 0.0
    %985 = vmatpush1.msra.mxu0 0.0
    %986 = vmatprep.subr.mxu0 0.0
    %987 = vmatpush1.msra.mxu0 0.0
    %988 = vmatprep.subr.mxu0 0.0
    %989 = vmatpush1.msra.mxu0 0.0
    %990 = vmatprep.subr.mxu0 0.0
    %991 = vmatpush1.msra.mxu0 0.0
    %992 = vmatprep.subr.mxu0 0.0
    %993 = vmatpush1.msra.mxu0 0.0
    %994 = vmatprep.subr.mxu0 0.0
    %995 = vmatpush1.msra.mxu0 0.0
    %996 = vmatprep.subr.mxu0 0.0
    %997 = vmatpush1.msra.mxu0 0.0
    %998 = vmatprep.subr.mxu0 0.0
    %999 = vmatpush1.msra.mxu0 0.0
    %1000 = vmatprep.subr.mxu0 0.0
    %1001 = vmatpush1.msra.mxu0 0.0
    %1002 = vmatprep.subr.mxu0 0.0
    %1003 = vmatpush1.msra.mxu0 0.0
    %1004 = vmatprep.subr.mxu0 0.0
    %1005 = vmatpush1.msra.mxu0 0.0
    %1006 = vmatprep.subr.mxu0 0.0
    %1007 = vmatpush1.msra.mxu0 0.0
    %1008 = vmatprep.subr.mxu0 0.0
    %1009 = vmatpush1.msra.mxu0 0.0
    %1010 = vmatprep.subr.mxu0 0.0
    %1011 = vmatpush1.msra.mxu0 0.0
    %1012 = vmatprep.subr.mxu0 0.0
    %1013 = vmatpush1.msra.mxu0 0.0
    %1014 = vmatprep.subr.mxu0 0.0
    %1015 = vmatpush1.msra.mxu0 0.0
    %1016 = vmatprep.subr.mxu0 0.0
    %1017 = vmatpush1.msra.mxu0 0.0
    %1018 = vmatprep.subr.mxu0 0.0
    %1019 = vmatpush1.msra.mxu0 0.0
    %1020 = vmatprep.subr.mxu0 0.0
    %1021 = vmatpush1.msra.mxu0 0.0
    %1022 = vmatprep.subr.mxu0 0.0
    %1023 = vmatpush1.msra.mxu0 0.0
    %1024 = vmatprep.subr.mxu0 0.0
    %1025 = vmatpush1.msra.mxu0 0.0
    %1026 = vmatprep.subr.mxu0 0.0
    %1027 = vmatpush1.msra.mxu0 0.0
    %1028 = vmatprep.subr.mxu0 0.0
    %1029 = vmatpush1.msra.mxu0 0.0
    %1030 = vmatprep.subr.mxu0 0.0
    %1031 = vmatpush1.msra.mxu0 0.0
    %1032 = vmatprep.subr.mxu0 0.0
    %1033 = vmatpush1.msra.mxu0 0.0
    %1034 = vmatprep.mubr.f32.mxu0 0.0
    %1035 = vmatmul.mubr.f32.gmra.mrb[0].mxu0 %v684
    %v1036 = vpop.f32.mrb[0].mxu0
    %v1037 = vadd.f32 %v377, %v1036
    %v1038 = vpop.f32.mrb[0].mxu0
    %v1039 = vadd.f32 %v381, %v1038
    %1040 = vdwg.mxu0
    %1041 = vmatprep.subr.mxu0 %v63
    %1042 = vmatpush1.msra.mxu0 %v62
    %1043 = vmatprep.subr.mxu0 %v131
    %1044 = vmatpush1.msra.mxu0 %v130
    %1045 = vmatprep.subr.mxu0 %v199
    %1046 = vmatpush1.msra.mxu0 %v198
    %1047 = vmatprep.subr.mxu0 %v267
    %1048 = vmatpush1.msra.mxu0 %v266
    %1049 = vmatprep.subr.mxu0 0.0
    %1050 = vmatpush1.msra.mxu0 0.0
    %1051 = vmatprep.subr.mxu0 0.0
    %1052 = vmatpush1.msra.mxu0 0.0
    %1053 = vmatprep.subr.mxu0 0.0
    %1054 = vmatpush1.msra.mxu0 0.0
    %1055 = vmatprep.subr.mxu0 0.0
    %1056 = vmatpush1.msra.mxu0 0.0
    %1057 = vmatprep.subr.mxu0 0.0
    %1058 = vmatpush1.msra.mxu0 0.0
    %1059 = vmatprep.subr.mxu0 0.0
    %1060 = vmatpush1.msra.mxu0 0.0
    %1061 = vmatprep.subr.mxu0 0.0
    %1062 = vmatpush1.msra.mxu0 0.0
    %1063 = vmatprep.subr.mxu0 0.0
    %1064 = vmatpush1.msra.mxu0 0.0
    %1065 = vmatprep.subr.mxu0 0.0
    %1066 = vmatpush1.msra.mxu0 0.0
    %1067 = vmatprep.subr.mxu0 0.0
    %1068 = vmatpush1.msra.mxu0 0.0
    %1069 = vmatprep.subr.mxu0 0.0
    %1070 = vmatpush1.msra.mxu0 0.0
    %1071 = vmatprep.subr.mxu0 0.0
    %1072 = vmatpush1.msra.mxu0 0.0
    %1073 = vmatprep.subr.mxu0 0.0
    %1074 = vmatpush1.msra.mxu0 0.0
    %1075 = vmatprep.subr.mxu0 0.0
    %1076 = vmatpush1.msra.mxu0 0.0
    %1077 = vmatprep.subr.mxu0 0.0
    %1078 = vmatpush1.msra.mxu0 0.0
    %1079 = vmatprep.subr.mxu0 0.0
    %1080 = vmatpush1.msra.mxu0 0.0
    %1081 = vmatprep.subr.mxu0 0.0
    %1082 = vmatpush1.msra.mxu0 0.0
    %1083 = vmatprep.subr.mxu0 0.0
    %1084 = vmatpush1.msra.mxu0 0.0
    %1085 = vmatprep.subr.mxu0 0.0
    %1086 = vmatpush1.msra.mxu0 0.0
    %1087 = vmatprep.subr.mxu0 0.0
    %1088 = vmatpush1.msra.mxu0 0.0
    %1089 = vmatprep.subr.mxu0 0.0
    %1090 = vmatpush1.msra.mxu0 0.0
    %1091 = vmatprep.subr.mxu0 0.0
    %1092 = vmatpush1.msra.mxu0 0.0
    %1093 = vmatprep.subr.mxu0 0.0
    %1094 = vmatpush1.msra.mxu0 0.0
    %1095 = vmatprep.subr.mxu0 0.0
    %1096 = vmatpush1.msra.mxu0 0.0
    %1097 = vmatprep.subr.mxu0 0.0
    %1098 = vmatpush1.msra.mxu0 0.0
    %1099 = vmatprep.subr.mxu0 0.0
    %1100 = vmatpush1.msra.mxu0 0.0
    %1101 = vmatprep.subr.mxu0 0.0
    %1102 = vmatpush1.msra.mxu0 0.0
    %1103 = vmatprep.subr.mxu0 0.0
    %1104 = vmatpush1.msra.mxu0 0.0
    %1105 = vmatprep.mubr.f32.mxu0 0.0
    %1106 = vmatmul.mubr.f32.gmra.mrb[0].mxu0 %v684
    %v1107 = vpop.f32.mrb[0].mxu0
    %v1108 = vadd.f32 %v385, %v1107
    %v1109 = vpop.f32.mrb[0].mxu0
    %v1110 = vadd.f32 %v389, %v1109
    %1111 = vdwg.mxu0
    %1112 = vmatprep.subr.mxu0 %v65
    %1113 = vmatpush1.msra.mxu0 %v64
    %1114 = vmatprep.subr.mxu0 %v133
    %1115 = vmatpush1.msra.mxu0 %v132
    %1116 = vmatprep.subr.mxu0 %v201
    %1117 = vmatpush1.msra.mxu0 %v200
    %1118 = vmatprep.subr.mxu0 %v269
    %1119 = vmatpush1.msra.mxu0 %v268
    %1120 = vmatprep.subr.mxu0 0.0
    %1121 = vmatpush1.msra.mxu0 0.0
    %1122 = vmatprep.subr.mxu0 0.0
    %1123 = vmatpush1.msra.mxu0 0.0
    %1124 = vmatprep.subr.mxu0 0.0
    %1125 = vmatpush1.msra.mxu0 0.0
    %1126 = vmatprep.subr.mxu0 0.0
    %1127 = vmatpush1.msra.mxu0 0.0
    %1128 = vmatprep.subr.mxu0 0.0
    %1129 = vmatpush1.msra.mxu0 0.0
    %1130 = vmatprep.subr.mxu0 0.0
    %1131 = vmatpush1.msra.mxu0 0.0
    %1132 = vmatprep.subr.mxu0 0.0
    %1133 = vmatpush1.msra.mxu0 0.0
    %1134 = vmatprep.subr.mxu0 0.0
    %1135 = vmatpush1.msra.mxu0 0.0
    %1136 = vmatprep.subr.mxu0 0.0
    %1137 = vmatpush1.msra.mxu0 0.0
    %1138 = vmatprep.subr.mxu0 0.0
    %1139 = vmatpush1.msra.mxu0 0.0
    %1140 = vmatprep.subr.mxu0 0.0
    %1141 = vmatpush1.msra.mxu0 0.0
    %1142 = vmatprep.subr.mxu0 0.0
    %1143 = vmatpush1.msra.mxu0 0.0
    %1144 = vmatprep.subr.mxu0 0.0
    %1145 = vmatpush1.msra.mxu0 0.0
    %1146 = vmatprep.subr.mxu0 0.0
    %1147 = vmatpush1.msra.mxu0 0.0
    %1148 = vmatprep.subr.mxu0 0.0
    %1149 = vmatpush1.msra.mxu0 0.0
    %1150 = vmatprep.subr.mxu0 0.0
    %1151 = vmatpush1.msra.mxu0 0.0
    %1152 = vmatprep.subr.mxu0 0.0
    %1153 = vmatpush1.msra.mxu0 0.0
    %1154 = vmatprep.subr.mxu0 0.0
    %1155 = vmatpush1.msra.mxu0 0.0
    %1156 = vmatprep.subr.mxu0 0.0
    %1157 = vmatpush1.msra.mxu0 0.0
    %1158 = vmatprep.subr.mxu0 0.0
    %1159 = vmatpush1.msra.mxu0 0.0
    %1160 = vmatprep.subr.mxu0 0.0
    %1161 = vmatpush1.msra.mxu0 0.0
    %1162 = vmatprep.subr.mxu0 0.0
    %1163 = vmatpush1.msra.mxu0 0.0
    %1164 = vmatprep.subr.mxu0 0.0
    %1165 = vmatpush1.msra.mxu0 0.0
    %1166 = vmatprep.subr.mxu0 0.0
    %1167 = vmatpush1.msra.mxu0 0.0
    %1168 = vmatprep.subr.mxu0 0.0
    %1169 = vmatpush1.msra.mxu0 0.0
    %1170 = vmatprep.subr.mxu0 0.0
    %1171 = vmatpush1.msra.mxu0 0.0
    %1172 = vmatprep.subr.mxu0 0.0
    %1173 = vmatpush1.msra.mxu0 0.0
    %1174 = vmatprep.subr.mxu0 0.0
    %1175 = vmatpush1.msra.mxu0 0.0
    %1176 = vmatprep.mubr.f32.mxu0 0.0
    %1177 = vmatmul.mubr.f32.gmra.mrb[0].mxu0 %v684
    %v1178 = vpop.f32.mrb[0].mxu0
    %v1179 = vadd.f32 %v393, %v1178
    %v1180 = vpop.f32.mrb[0].mxu0
    %v1181 = vadd.f32 %v397, %v1180
    %1182 = vdwg.mxu0
    %1183 = vmatprep.subr.mxu0 %v67
    %1184 = vmatpush1.msra.mxu0 %v66
    %1185 = vmatprep.subr.mxu0 %v135
    %1186 = vmatpush1.msra.mxu0 %v134
    %1187 = vmatprep.subr.mxu0 %v203
    %1188 = vmatpush1.msra.mxu0 %v202
    %1189 = vmatprep.subr.mxu0 %v271
    %1190 = vmatpush1.msra.mxu0 %v270
    %1191 = vmatprep.subr.mxu0 0.0
    %1192 = vmatpush1.msra.mxu0 0.0
    %1193 = vmatprep.subr.mxu0 0.0
    %1194 = vmatpush1.msra.mxu0 0.0
    %1195 = vmatprep.subr.mxu0 0.0
    %1196 = vmatpush1.msra.mxu0 0.0
    %1197 = vmatprep.subr.mxu0 0.0
    %1198 = vmatpush1.msra.mxu0 0.0
    %1199 = vmatprep.subr.mxu0 0.0
    %1200 = vmatpush1.msra.mxu0 0.0
    %1201 = vmatprep.subr.mxu0 0.0
    %1202 = vmatpush1.msra.mxu0 0.0
    %1203 = vmatprep.subr.mxu0 0.0
    %1204 = vmatpush1.msra.mxu0 0.0
    %1205 = vmatprep.subr.mxu0 0.0
    %1206 = vmatpush1.msra.mxu0 0.0
    %1207 = vmatprep.subr.mxu0 0.0
    %1208 = vmatpush1.msra.mxu0 0.0
    %1209 = vmatprep.subr.mxu0 0.0
    %1210 = vmatpush1.msra.mxu0 0.0
    %1211 = vmatprep.subr.mxu0 0.0
    %1212 = vmatpush1.msra.mxu0 0.0
    %1213 = vmatprep.subr.mxu0 0.0
    %1214 = vmatpush1.msra.mxu0 0.0
    %1215 = vmatprep.subr.mxu0 0.0
    %1216 = vmatpush1.msra.mxu0 0.0
    %1217 = vmatprep.subr.mxu0 0.0
    %1218 = vmatpush1.msra.mxu0 0.0
    %1219 = vmatprep.subr.mxu0 0.0
    %1220 = vmatpush1.msra.mxu0 0.0
    %1221 = vmatprep.subr.mxu0 0.0
    %1222 = vmatpush1.msra.mxu0 0.0
    %1223 = vmatprep.subr.mxu0 0.0
    %1224 = vmatpush1.msra.mxu0 0.0
    %1225 = vmatprep.subr.mxu0 0.0
    %1226 = vmatpush1.msra.mxu0 0.0
    %1227 = vmatprep.subr.mxu0 0.0
    %1228 = vmatpush1.msra.mxu0 0.0
    %1229 = vmatprep.subr.mxu0 0.0
    %1230 = vmatpush1.msra.mxu0 0.0
    %1231 = vmatprep.subr.mxu0 0.0
    %1232 = vmatpush1.msra.mxu0 0.0
    %1233 = vmatprep.subr.mxu0 0.0
    %1234 = vmatpush1.msra.mxu0 0.0
    %1235 = vmatprep.subr.mxu0 0.0
    %1236 = vmatpush1.msra.mxu0 0.0
    %1237 = vmatprep.subr.mxu0 0.0
    %1238 = vmatpush1.msra.mxu0 0.0
    %1239 = vmatprep.subr.mxu0 0.0
    %1240 = vmatpush1.msra.mxu0 0.0
    %1241 = vmatprep.subr.mxu0 0.0
    %1242 = vmatpush1.msra.mxu0 0.0
    %1243 = vmatprep.subr.mxu0 0.0
    %1244 = vmatpush1.msra.mxu0 0.0
    %1245 = vmatprep.subr.mxu0 0.0
    %1246 = vmatpush1.msra.mxu0 0.0
    %1247 = vmatprep.mubr.f32.mxu0 0.0
    %1248 = vmatmul.mubr.f32.gmra.mrb[0].mxu0 %v684
    %v1249 = vpop.f32.mrb[0].mxu0
    %v1250 = vadd.f32 %v401, %v1249
    %v1251 = vpop.f32.mrb[0].mxu0
    %v1252 = vadd.f32 %v405, %v1251
    %1253 = vdwg.mxu0
    %1254 = vmatprep.subr.mxu0 %v69
    %1255 = vmatpush1.msra.mxu0 %v68
    %1256 = vmatprep.subr.mxu0 %v137
    %1257 = vmatpush1.msra.mxu0 %v136
    %1258 = vmatprep.subr.mxu0 %v205
    %1259 = vmatpush1.msra.mxu0 %v204
    %1260 = vmatprep.subr.mxu0 %v273
    %1261 = vmatpush1.msra.mxu0 %v272
    %1262 = vmatprep.subr.mxu0 0.0
    %1263 = vmatpush1.msra.mxu0 0.0
    %1264 = vmatprep.subr.mxu0 0.0
    %1265 = vmatpush1.msra.mxu0 0.0
    %1266 = vmatprep.subr.mxu0 0.0
    %1267 = vmatpush1.msra.mxu0 0.0
    %1268 = vmatprep.subr.mxu0 0.0
    %1269 = vmatpush1.msra.mxu0 0.0
    %1270 = vmatprep.subr.mxu0 0.0
    %1271 = vmatpush1.msra.mxu0 0.0
    %1272 = vmatprep.subr.mxu0 0.0
    %1273 = vmatpush1.msra.mxu0 0.0
    %1274 = vmatprep.subr.mxu0 0.0
    %1275 = vmatpush1.msra.mxu0 0.0
    %1276 = vmatprep.subr.mxu0 0.0
    %1277 = vmatpush1.msra.mxu0 0.0
    %1278 = vmatprep.subr.mxu0 0.0
    %1279 = vmatpush1.msra.mxu0 0.0
    %1280 = vmatprep.subr.mxu0 0.0
    %1281 = vmatpush1.msra.mxu0 0.0
    %1282 = vmatprep.subr.mxu0 0.0
    %1283 = vmatpush1.msra.mxu0 0.0
    %1284 = vmatprep.subr.mxu0 0.0
    %1285 = vmatpush1.msra.mxu0 0.0
    %1286 = vmatprep.subr.mxu0 0.0
    %1287 = vmatpush1.msra.mxu0 0.0
    %1288 = vmatprep.subr.mxu0 0.0
    %1289 = vmatpush1.msra.mxu0 0.0
    %1290 = vmatprep.subr.mxu0 0.0
    %1291 = vmatpush1.msra.mxu0 0.0
    %1292 = vmatprep.subr.mxu0 0.0
    %1293 = vmatpush1.msra.mxu0 0.0
    %1294 = vmatprep.subr.mxu0 0.0
    %1295 = vmatpush1.msra.mxu0 0.0
    %1296 = vmatprep.subr.mxu0 0.0
    %1297 = vmatpush1.msra.mxu0 0.0
    %1298 = vmatprep.subr.mxu0 0.0
    %1299 = vmatpush1.msra.mxu0 0.0
    %1300 = vmatprep.subr.mxu0 0.0
    %1301 = vmatpush1.msra.mxu0 0.0
    %1302 = vmatprep.subr.mxu0 0.0
    %1303 = vmatpush1.msra.mxu0 0.0
    %1304 = vmatprep.subr.mxu0 0.0
    %1305 = vmatpush1.msra.mxu0 0.0
    %1306 = vmatprep.subr.mxu0 0.0
    %1307 = vmatpush1.msra.mxu0 0.0
    %1308 = vmatprep.subr.mxu0 0.0
    %1309 = vmatpush1.msra.mxu0 0.0
    %1310 = vmatprep.subr.mxu0 0.0
    %1311 = vmatpush1.msra.mxu0 0.0
    %1312 = vmatprep.subr.mxu0 0.0
    %1313 = vmatpush1.msra.mxu0 0.0
    %1314 = vmatprep.subr.mxu0 0.0
    %1315 = vmatpush1.msra.mxu0 0.0
    %1316 = vmatprep.subr.mxu0 0.0
    %1317 = vmatpush1.msra.mxu0 0.0
    %1318 = vmatprep.mubr.f32.mxu0 0.0
    %1319 = vmatmul.mubr.f32.gmra.mrb[0].mxu0 %v684
    %v1320 = vpop.f32.mrb[0].mxu0
    %v1321 = vadd.f32 %v409, %v1320
    %v1322 = vpop.f32.mrb[0].mxu0
    %v1323 = vadd.f32 %v413, %v1322
    %1324 = vdwg.mxu0
    %1325 = vmatprep.subr.mxu0 %v71
    %1326 = vmatpush1.msra.mxu0 %v70
    %1327 = vmatprep.subr.mxu0 %v139
    %1328 = vmatpush1.msra.mxu0 %v138
    %1329 = vmatprep.subr.mxu0 %v207
    %1330 = vmatpush1.msra.mxu0 %v206
    %1331 = vmatprep.subr.mxu0 %v275
    %1332 = vmatpush1.msra.mxu0 %v274
    %1333 = vmatprep.subr.mxu0 0.0
    %1334 = vmatpush1.msra.mxu0 0.0
    %1335 = vmatprep.subr.mxu0 0.0
    %1336 = vmatpush1.msra.mxu0 0.0
    %1337 = vmatprep.subr.mxu0 0.0
    %1338 = vmatpush1.msra.mxu0 0.0
    %1339 = vmatprep.subr.mxu0 0.0
    %1340 = vmatpush1.msra.mxu0 0.0
    %1341 = vmatprep.subr.mxu0 0.0
    %1342 = vmatpush1.msra.mxu0 0.0
    %1343 = vmatprep.subr.mxu0 0.0
    %1344 = vmatpush1.msra.mxu0 0.0
    %1345 = vmatprep.subr.mxu0 0.0
    %1346 = vmatpush1.msra.mxu0 0.0
    %1347 = vmatprep.subr.mxu0 0.0
    %1348 = vmatpush1.msra.mxu0 0.0
    %1349 = vmatprep.subr.mxu0 0.0
    %1350 = vmatpush1.msra.mxu0 0.0
    %1351 = vmatprep.subr.mxu0 0.0
    %1352 = vmatpush1.msra.mxu0 0.0
    %1353 = vmatprep.subr.mxu0 0.0
    %1354 = vmatpush1.msra.mxu0 0.0
    %1355 = vmatprep.subr.mxu0 0.0
    %1356 = vmatpush1.msra.mxu0 0.0
    %1357 = vmatprep.subr.mxu0 0.0
    %1358 = vmatpush1.msra.mxu0 0.0
    %1359 = vmatprep.subr.mxu0 0.0
    %1360 = vmatpush1.msra.mxu0 0.0
    %1361 = vmatprep.subr.mxu0 0.0
    %1362 = vmatpush1.msra.mxu0 0.0
    %1363 = vmatprep.subr.mxu0 0.0
    %1364 = vmatpush1.msra.mxu0 0.0
    %1365 = vmatprep.subr.mxu0 0.0
    %1366 = vmatpush1.msra.mxu0 0.0
    %1367 = vmatprep.subr.mxu0 0.0
    %1368 = vmatpush1.msra.mxu0 0.0
    %1369 = vmatprep.subr.mxu0 0.0
    %1370 = vmatpush1.msra.mxu0 0.0
    %1371 = vmatprep.subr.mxu0 0.0
    %1372 = vmatpush1.msra.mxu0 0.0
    %1373 = vmatprep.subr.mxu0 0.0
    %1374 = vmatpush1.msra.mxu0 0.0
    %1375 = vmatprep.subr.mxu0 0.0
    %1376 = vmatpush1.msra.mxu0 0.0
    %1377 = vmatprep.subr.mxu0 0.0
    %1378 = vmatpush1.msra.mxu0 0.0
    %1379 = vmatprep.subr.mxu0 0.0
    %1380 = vmatpush1.msra.mxu0 0.0
    %1381 = vmatprep.subr.mxu0 0.0
    %1382 = vmatpush1.msra.mxu0 0.0
    %1383 = vmatprep.subr.mxu0 0.0
    %1384 = vmatpush1.msra.mxu0 0.0
    %1385 = vmatprep.subr.mxu0 0.0
    %1386 = vmatpush1.msra.mxu0 0.0
    %1387 = vmatprep.subr.mxu0 0.0
    %1388 = vmatpush1.msra.mxu0 0.0
    %1389 = vmatprep.mubr.f32.mxu0 0.0
    %1390 = vmatmul.mubr.f32.gmra.mrb[0].mxu0 %v684
    %v1391 = vpop.f32.mrb[0].mxu0
    %v1392 = vadd.f32 %v417, %v1391
    %v1393 = vpop.f32.mrb[0].mxu0
    %v1394 = vadd.f32 %v421, %v1393
    %1395 = vdwg.mxu0
    %1396 = vmatprep.subr.mxu0 %v73
    %1397 = vmatpush1.msra.mxu0 %v72
    %1398 = vmatprep.subr.mxu0 %v141
    %1399 = vmatpush1.msra.mxu0 %v140
    %1400 = vmatprep.subr.mxu0 %v209
    %1401 = vmatpush1.msra.mxu0 %v208
    %1402 = vmatprep.subr.mxu0 %v277
    %1403 = vmatpush1.msra.mxu0 %v276
    %1404 = vmatprep.subr.mxu0 0.0
    %1405 = vmatpush1.msra.mxu0 0.0
    %1406 = vmatprep.subr.mxu0 0.0
    %1407 = vmatpush1.msra.mxu0 0.0
    %1408 = vmatprep.subr.mxu0 0.0
    %1409 = vmatpush1.msra.mxu0 0.0
    %1410 = vmatprep.subr.mxu0 0.0
    %1411 = vmatpush1.msra.mxu0 0.0
    %1412 = vmatprep.subr.mxu0 0.0
    %1413 = vmatpush1.msra.mxu0 0.0
    %1414 = vmatprep.subr.mxu0 0.0
    %1415 = vmatpush1.msra.mxu0 0.0
    %1416 = vmatprep.subr.mxu0 0.0
    %1417 = vmatpush1.msra.mxu0 0.0
    %1418 = vmatprep.subr.mxu0 0.0
    %1419 = vmatpush1.msra.mxu0 0.0
    %1420 = vmatprep.subr.mxu0 0.0
    %1421 = vmatpush1.msra.mxu0 0.0
    %1422 = vmatprep.subr.mxu0 0.0
    %1423 = vmatpush1.msra.mxu0 0.0
    %1424 = vmatprep.subr.mxu0 0.0
    %1425 = vmatpush1.msra.mxu0 0.0
    %1426 = vmatprep.subr.mxu0 0.0
    %1427 = vmatpush1.msra.mxu0 0.0
    %1428 = vmatprep.subr.mxu0 0.0
    %1429 = vmatpush1.msra.mxu0 0.0
    %1430 = vmatprep.subr.mxu0 0.0
    %1431 = vmatpush1.msra.mxu0 0.0
    %1432 = vmatprep.subr.mxu0 0.0
    %1433 = vmatpush1.msra.mxu0 0.0
    %1434 = vmatprep.subr.mxu0 0.0
    %1435 = vmatpush1.msra.mxu0 0.0
    %1436 = vmatprep.subr.mxu0 0.0
    %1437 = vmatpush1.msra.mxu0 0.0
    %1438 = vmatprep.subr.mxu0 0.0
    %1439 = vmatpush1.msra.mxu0 0.0
    %1440 = vmatprep.subr.mxu0 0.0
    %1441 = vmatpush1.msra.mxu0 0.0
    %1442 = vmatprep.subr.mxu0 0.0
    %1443 = vmatpush1.msra.mxu0 0.0
    %1444 = vmatprep.subr.mxu0 0.0
    %1445 = vmatpush1.msra.mxu0 0.0
    %1446 = vmatprep.subr.mxu0 0.0
    %1447 = vmatpush1.msra.mxu0 0.0
    %1448 = vmatprep.subr.mxu0 0.0
    %1449 = vmatpush1.msra.mxu0 0.0
    %1450 = vmatprep.subr.mxu0 0.0
    %1451 = vmatpush1.msra.mxu0 0.0
    %1452 = vmatprep.subr.mxu0 0.0
    %1453 = vmatpush1.msra.mxu0 0.0
    %1454 = vmatprep.subr.mxu0 0.0
    %1455 = vmatpush1.msra.mxu0 0.0
    %1456 = vmatprep.subr.mxu0 0.0
    %1457 = vmatpush1.msra.mxu0 0.0
    %1458 = vmatprep.subr.mxu0 0.0
    %1459 = vmatpush1.msra.mxu0 0.0
    %1460 = vmatprep.mubr.f32.mxu0 0.0
    %1461 = vmatmul.mubr.f32.gmra.mrb[0].mxu0 %v684
    %v1462 = vpop.f32.mrb[0].mxu0
    %v1463 = vadd.f32 %v425, %v1462
    %v1464 = vpop.f32.mrb[0].mxu0
    %v1465 = vadd.f32 %v429, %v1464
    %1466 = vdwg.mxu0
    %1467 = vmatprep.subr.mxu0 %v75
    %1468 = vmatpush1.msra.mxu0 %v74
    %1469 = vmatprep.subr.mxu0 %v143
    %1470 = vmatpush1.msra.mxu0 %v142
    %1471 = vmatprep.subr.mxu0 %v211
    %1472 = vmatpush1.msra.mxu0 %v210
    %1473 = vmatprep.subr.mxu0 %v279
    %1474 = vmatpush1.msra.mxu0 %v278
    %1475 = vmatprep.subr.mxu0 0.0
    %1476 = vmatpush1.msra.mxu0 0.0
    %1477 = vmatprep.subr.mxu0 0.0
    %1478 = vmatpush1.msra.mxu0 0.0
    %1479 = vmatprep.subr.mxu0 0.0
    %1480 = vmatpush1.msra.mxu0 0.0
    %1481 = vmatprep.subr.mxu0 0.0
    %1482 = vmatpush1.msra.mxu0 0.0
    %1483 = vmatprep.subr.mxu0 0.0
    %1484 = vmatpush1.msra.mxu0 0.0
    %1485 = vmatprep.subr.mxu0 0.0
    %1486 = vmatpush1.msra.mxu0 0.0
    %1487 = vmatprep.subr.mxu0 0.0
    %1488 = vmatpush1.msra.mxu0 0.0
    %1489 = vmatprep.subr.mxu0 0.0
    %1490 = vmatpush1.msra.mxu0 0.0
    %1491 = vmatprep.subr.mxu0 0.0
    %1492 = vmatpush1.msra.mxu0 0.0
    %1493 = vmatprep.subr.mxu0 0.0
    %1494 = vmatpush1.msra.mxu0 0.0
    %1495 = vmatprep.subr.mxu0 0.0
    %1496 = vmatpush1.msra.mxu0 0.0
    %1497 = vmatprep.subr.mxu0 0.0
    %1498 = vmatpush1.msra.mxu0 0.0
    %1499 = vmatprep.subr.mxu0 0.0
    %1500 = vmatpush1.msra.mxu0 0.0
    %1501 = vmatprep.subr.mxu0 0.0
    %1502 = vmatpush1.msra.mxu0 0.0
    %1503 = vmatprep.subr.mxu0 0.0
    %1504 = vmatpush1.msra.mxu0 0.0
    %1505 = vmatprep.subr.mxu0 0.0
    %1506 = vmatpush1.msra.mxu0 0.0
    %1507 = vmatprep.subr.mxu0 0.0
    %1508 = vmatpush1.msra.mxu0 0.0
    %1509 = vmatprep.subr.mxu0 0.0
    %1510 = vmatpush1.msra.mxu0 0.0
    %1511 = vmatprep.subr.mxu0 0.0
    %1512 = vmatpush1.msra.mxu0 0.0
    %1513 = vmatprep.subr.mxu0 0.0
    %1514 = vmatpush1.msra.mxu0 0.0
    %1515 = vmatprep.subr.mxu0 0.0
    %1516 = vmatpush1.msra.mxu0 0.0
    %1517 = vmatprep.subr.mxu0 0.0
    %1518 = vmatpush1.msra.mxu0 0.0
    %1519 = vmatprep.subr.mxu0 0.0
    %1520 = vmatpush1.msra.mxu0 0.0
    %1521 = vmatprep.subr.mxu0 0.0
    %1522 = vmatpush1.msra.mxu0 0.0
    %1523 = vmatprep.subr.mxu0 0.0
    %1524 = vmatpush1.msra.mxu0 0.0
    %1525 = vmatprep.subr.mxu0 0.0
    %1526 = vmatpush1.msra.mxu0 0.0
    %1527 = vmatprep.subr.mxu0 0.0
    %1528 = vmatpush1.msra.mxu0 0.0
    %1529 = vmatprep.subr.mxu0 0.0
    %1530 = vmatpush1.msra.mxu0 0.0
    %1531 = vmatprep.mubr.f32.mxu0 0.0
    %1532 = vmatmul.mubr.f32.gmra.mrb[0].mxu0 %v684
    %v1533 = vpop.f32.mrb[0].mxu0
    %v1534 = vadd.f32 %v433, %v1533
    %v1535 = vpop.f32.mrb[0].mxu0
    %v1536 = vadd.f32 %v437, %v1535
    %1537 = vdwg.mxu0
    %1538 = vmatprep.subr.mxu0 %v77
    %1539 = vmatpush1.msra.mxu0 %v76
    %1540 = vmatprep.subr.mxu0 %v145
    %1541 = vmatpush1.msra.mxu0 %v144
    %1542 = vmatprep.subr.mxu0 %v213
    %1543 = vmatpush1.msra.mxu0 %v212
    %1544 = vmatprep.subr.mxu0 %v281
    %1545 = vmatpush1.msra.mxu0 %v280
    %1546 = vmatprep.subr.mxu0 0.0
    %1547 = vmatpush1.msra.mxu0 0.0
    %1548 = vmatprep.subr.mxu0 0.0
    %1549 = vmatpush1.msra.mxu0 0.0
    %1550 = vmatprep.subr.mxu0 0.0
    %1551 = vmatpush1.msra.mxu0 0.0
    %1552 = vmatprep.subr.mxu0 0.0
    %1553 = vmatpush1.msra.mxu0 0.0
    %1554 = vmatprep.subr.mxu0 0.0
    %1555 = vmatpush1.msra.mxu0 0.0
    %1556 = vmatprep.subr.mxu0 0.0
    %1557 = vmatpush1.msra.mxu0 0.0
    %1558 = vmatprep.subr.mxu0 0.0
    %1559 = vmatpush1.msra.mxu0 0.0
    %1560 = vmatprep.subr.mxu0 0.0
    %1561 = vmatpush1.msra.mxu0 0.0
    %1562 = vmatprep.subr.mxu0 0.0
    %1563 = vmatpush1.msra.mxu0 0.0
    %1564 = vmatprep.subr.mxu0 0.0
    %1565 = vmatpush1.msra.mxu0 0.0
    %1566 = vmatprep.subr.mxu0 0.0
    %1567 = vmatpush1.msra.mxu0 0.0
    %1568 = vmatprep.subr.mxu0 0.0
    %1569 = vmatpush1.msra.mxu0 0.0
    %1570 = vmatprep.subr.mxu0 0.0
    %1571 = vmatpush1.msra.mxu0 0.0
    %1572 = vmatprep.subr.mxu0 0.0
    %1573 = vmatpush1.msra.mxu0 0.0
    %1574 = vmatprep.subr.mxu0 0.0
    %1575 = vmatpush1.msra.mxu0 0.0
    %1576 = vmatprep.subr.mxu0 0.0
    %1577 = vmatpush1.msra.mxu0 0.0
    %1578 = vmatprep.subr.mxu0 0.0
    %1579 = vmatpush1.msra.mxu0 0.0
    %1580 = vmatprep.subr.mxu0 0.0
    %1581 = vmatpush1.msra.mxu0 0.0
    %1582 = vmatprep.subr.mxu0 0.0
    %1583 = vmatpush1.msra.mxu0 0.0
    %1584 = vmatprep.subr.mxu0 0.0
    %1585 = vmatpush1.msra.mxu0 0.0
    %1586 = vmatprep.subr.mxu0 0.0
    %1587 = vmatpush1.msra.mxu0 0.0
    %1588 = vmatprep.subr.mxu0 0.0
    %1589 = vmatpush1.msra.mxu0 0.0
    %1590 = vmatprep.subr.mxu0 0.0
    %1591 = vmatpush1.msra.mxu0 0.0
    %1592 = vmatprep.subr.mxu0 0.0
    %1593 = vmatpush1.msra.mxu0 0.0
    %1594 = vmatprep.subr.mxu0 0.0
    %1595 = vmatpush1.msra.mxu0 0.0
    %1596 = vmatprep.subr.mxu0 0.0
    %1597 = vmatpush1.msra.mxu0 0.0
    %1598 = vmatprep.subr.mxu0 0.0
    %1599 = vmatpush1.msra.mxu0 0.0
    %1600 = vmatprep.subr.mxu0 0.0
    %1601 = vmatpush1.msra.mxu0 0.0
    %1602 = vmatprep.mubr.f32.mxu0 0.0
    %1603 = vmatmul.mubr.f32.gmra.mrb[0].mxu0 %v684
    %v1604 = vpop.f32.mrb[0].mxu0
    %v1605 = vadd.f32 %v441, %v1604
    %v1606 = vpop.f32.mrb[0].mxu0
    %v1607 = vadd.f32 %v445, %v1606
    %1608 = vdwg.mxu0
    %1609 = vmatprep.subr.mxu0 %v79
    %1610 = vmatpush1.msra.mxu0 %v78
    %1611 = vmatprep.subr.mxu0 %v147
    %1612 = vmatpush1.msra.mxu0 %v146
    %1613 = vmatprep.subr.mxu0 %v215
    %1614 = vmatpush1.msra.mxu0 %v214
    %1615 = vmatprep.subr.mxu0 %v283
    %1616 = vmatpush1.msra.mxu0 %v282
    %1617 = vmatprep.subr.mxu0 0.0
    %1618 = vmatpush1.msra.mxu0 0.0
    %1619 = vmatprep.subr.mxu0 0.0
    %1620 = vmatpush1.msra.mxu0 0.0
    %1621 = vmatprep.subr.mxu0 0.0
    %1622 = vmatpush1.msra.mxu0 0.0
    %1623 = vmatprep.subr.mxu0 0.0
    %1624 = vmatpush1.msra.mxu0 0.0
    %1625 = vmatprep.subr.mxu0 0.0
    %1626 = vmatpush1.msra.mxu0 0.0
    %1627 = vmatprep.subr.mxu0 0.0
    %1628 = vmatpush1.msra.mxu0 0.0
    %1629 = vmatprep.subr.mxu0 0.0
    %1630 = vmatpush1.msra.mxu0 0.0
    %1631 = vmatprep.subr.mxu0 0.0
    %1632 = vmatpush1.msra.mxu0 0.0
    %1633 = vmatprep.subr.mxu0 0.0
    %1634 = vmatpush1.msra.mxu0 0.0
    %1635 = vmatprep.subr.mxu0 0.0
    %1636 = vmatpush1.msra.mxu0 0.0
    %1637 = vmatprep.subr.mxu0 0.0
    %1638 = vmatpush1.msra.mxu0 0.0
    %1639 = vmatprep.subr.mxu0 0.0
    %1640 = vmatpush1.msra.mxu0 0.0
    %1641 = vmatprep.subr.mxu0 0.0
    %1642 = vmatpush1.msra.mxu0 0.0
    %1643 = vmatprep.subr.mxu0 0.0
    %1644 = vmatpush1.msra.mxu0 0.0
    %1645 = vmatprep.subr.mxu0 0.0
    %1646 = vmatpush1.msra.mxu0 0.0
    %1647 = vmatprep.subr.mxu0 0.0
    %1648 = vmatpush1.msra.mxu0 0.0
    %1649 = vmatprep.subr.mxu0 0.0
    %1650 = vmatpush1.msra.mxu0 0.0
    %1651 = vmatprep.subr.mxu0 0.0
    %1652 = vmatpush1.msra.mxu0 0.0
    %1653 = vmatprep.subr.mxu0 0.0
    %1654 = vmatpush1.msra.mxu0 0.0
    %1655 = vmatprep.subr.mxu0 0.0
    %1656 = vmatpush1.msra.mxu0 0.0
    %1657 = vmatprep.subr.mxu0 0.0
    %1658 = vmatpush1.msra.mxu0 0.0
    %1659 = vmatprep.subr.mxu0 0.0
    %1660 = vmatpush1.msra.mxu0 0.0
    %1661 = vmatprep.subr.mxu0 0.0
    %1662 = vmatpush1.msra.mxu0 0.0
    %1663 = vmatprep.subr.mxu0 0.0
    %1664 = vmatpush1.msra.mxu0 0.0
    %1665 = vmatprep.subr.mxu0 0.0
    %1666 = vmatpush1.msra.mxu0 0.0
    %1667 = vmatprep.subr.mxu0 0.0
    %1668 = vmatpush1.msra.mxu0 0.0
    %1669 = vmatprep.subr.mxu0 0.0
    %1670 = vmatpush1.msra.mxu0 0.0
    %1671 = vmatprep.subr.mxu0 0.0
    %1672 = vmatpush1.msra.mxu0 0.0
    %1673 = vmatprep.mubr.f32.mxu0 0.0
    %1674 = vmatmul.mubr.f32.gmra.mrb[0].mxu0 %v684
    %v1675 = vpop.f32.mrb[0].mxu0
    %v1676 = vadd.f32 %v449, %v1675
    %v1677 = vpop.f32.mrb[0].mxu0
    %v1678 = vadd.f32 %v453, %v1677
    %1679 = vdwg.mxu0
    %1680 = vmatprep.subr.mxu0 %v81
    %1681 = vmatpush1.msra.mxu0 %v80
    %1682 = vmatprep.subr.mxu0 %v149
    %1683 = vmatpush1.msra.mxu0 %v148
    %1684 = vmatprep.subr.mxu0 %v217
    %1685 = vmatpush1.msra.mxu0 %v216
    %1686 = vmatprep.subr.mxu0 %v285
    %1687 = vmatpush1.msra.mxu0 %v284
    %1688 = vmatprep.subr.mxu0 0.0
    %1689 = vmatpush1.msra.mxu0 0.0
    %1690 = vmatprep.subr.mxu0 0.0
    %1691 = vmatpush1.msra.mxu0 0.0
    %1692 = vmatprep.subr.mxu0 0.0
    %1693 = vmatpush1.msra.mxu0 0.0
    %1694 = vmatprep.subr.mxu0 0.0
    %1695 = vmatpush1.msra.mxu0 0.0
    %1696 = vmatprep.subr.mxu0 0.0
    %1697 = vmatpush1.msra.mxu0 0.0
    %1698 = vmatprep.subr.mxu0 0.0
    %1699 = vmatpush1.msra.mxu0 0.0
    %1700 = vmatprep.subr.mxu0 0.0
    %1701 = vmatpush1.msra.mxu0 0.0
    %1702 = vmatprep.subr.mxu0 0.0
    %1703 = vmatpush1.msra.mxu0 0.0
    %1704 = vmatprep.subr.mxu0 0.0
    %1705 = vmatpush1.msra.mxu0 0.0
    %1706 = vmatprep.subr.mxu0 0.0
    %1707 = vmatpush1.msra.mxu0 0.0
    %1708 = vmatprep.subr.mxu0 0.0
    %1709 = vmatpush1.msra.mxu0 0.0
    %1710 = vmatprep.subr.mxu0 0.0
    %1711 = vmatpush1.msra.mxu0 0.0
    %1712 = vmatprep.subr.mxu0 0.0
    %1713 = vmatpush1.msra.mxu0 0.0
    %1714 = vmatprep.subr.mxu0 0.0
    %1715 = vmatpush1.msra.mxu0 0.0
    %1716 = vmatprep.subr.mxu0 0.0
    %1717 = vmatpush1.msra.mxu0 0.0
    %1718 = vmatprep.subr.mxu0 0.0
    %1719 = vmatpush1.msra.mxu0 0.0
    %1720 = vmatprep.subr.mxu0 0.0
    %1721 = vmatpush1.msra.mxu0 0.0
    %1722 = vmatprep.subr.mxu0 0.0
    %1723 = vmatpush1.msra.mxu0 0.0
    %1724 = vmatprep.subr.mxu0 0.0
    %1725 = vmatpush1.msra.mxu0 0.0
    %1726 = vmatprep.subr.mxu0 0.0
    %1727 = vmatpush1.msra.mxu0 0.0
    %1728 = vmatprep.subr.mxu0 0.0
    %1729 = vmatpush1.msra.mxu0 0.0
    %1730 = vmatprep.subr.mxu0 0.0
    %1731 = vmatpush1.msra.mxu0 0.0
    %1732 = vmatprep.subr.mxu0 0.0
    %1733 = vmatpush1.msra.mxu0 0.0
    %1734 = vmatprep.subr.mxu0 0.0
    %1735 = vmatpush1.msra.mxu0 0.0
    %1736 = vmatprep.subr.mxu0 0.0
    %1737 = vmatpush1.msra.mxu0 0.0
    %1738 = vmatprep.subr.mxu0 0.0
    %1739 = vmatpush1.msra.mxu0 0.0
    %1740 = vmatprep.subr.mxu0 0.0
    %1741 = vmatpush1.msra.mxu0 0.0
    %1742 = vmatprep.subr.mxu0 0.0
    %1743 = vmatpush1.msra.mxu0 0.0
    %1744 = vmatprep.mubr.f32.mxu0 0.0
    %1745 = vmatmul.mubr.f32.gmra.mrb[0].mxu0 %v684
    %v1746 = vpop.f32.mrb[0].mxu0
    %v1747 = vadd.f32 %v457, %v1746
    %v1748 = vpop.f32.mrb[0].mxu0
    %v1749 = vadd.f32 %v461, %v1748
    %1750 = vdwg.mxu0
    %1751 = vmatprep.subr.mxu0 %v83
    %1752 = vmatpush1.msra.mxu0 %v82
    %1753 = vmatprep.subr.mxu0 %v151
    %1754 = vmatpush1.msra.mxu0 %v150
    %1755 = vmatprep.subr.mxu0 %v219
    %1756 = vmatpush1.msra.mxu0 %v218
    %1757 = vmatprep.subr.mxu0 %v287
    %1758 = vmatpush1.msra.mxu0 %v286
    %1759 = vmatprep.subr.mxu0 0.0
    %1760 = vmatpush1.msra.mxu0 0.0
    %1761 = vmatprep.subr.mxu0 0.0
    %1762 = vmatpush1.msra.mxu0 0.0
    %1763 = vmatprep.subr.mxu0 0.0
    %1764 = vmatpush1.msra.mxu0 0.0
    %1765 = vmatprep.subr.mxu0 0.0
    %1766 = vmatpush1.msra.mxu0 0.0
    %1767 = vmatprep.subr.mxu0 0.0
    %1768 = vmatpush1.msra.mxu0 0.0
    %1769 = vmatprep.subr.mxu0 0.0
    %1770 = vmatpush1.msra.mxu0 0.0
    %1771 = vmatprep.subr.mxu0 0.0
    %1772 = vmatpush1.msra.mxu0 0.0
    %1773 = vmatprep.subr.mxu0 0.0
    %1774 = vmatpush1.msra.mxu0 0.0
    %1775 = vmatprep.subr.mxu0 0.0
    %1776 = vmatpush1.msra.mxu0 0.0
    %1777 = vmatprep.subr.mxu0 0.0
    %1778 = vmatpush1.msra.mxu0 0.0
    %1779 = vmatprep.subr.mxu0 0.0
    %1780 = vmatpush1.msra.mxu0 0.0
    %1781 = vmatprep.subr.mxu0 0.0
    %1782 = vmatpush1.msra.mxu0 0.0
    %1783 = vmatprep.subr.mxu0 0.0
    %1784 = vmatpush1.msra.mxu0 0.0
    %1785 = vmatprep.subr.mxu0 0.0
    %1786 = vmatpush1.msra.mxu0 0.0
    %1787 = vmatprep.subr.mxu0 0.0
    %1788 = vmatpush1.msra.mxu0 0.0
    %1789 = vmatprep.subr.mxu0 0.0
    %1790 = vmatpush1.msra.mxu0 0.0
    %1791 = vmatprep.subr.mxu0 0.0
    %1792 = vmatpush1.msra.mxu0 0.0
    %1793 = vmatprep.subr.mxu0 0.0
    %1794 = vmatpush1.msra.mxu0 0.0
    %1795 = vmatprep.subr.mxu0 0.0
    %1796 = vmatpush1.msra.mxu0 0.0
    %1797 = vmatprep.subr.mxu0 0.0
    %1798 = vmatpush1.msra.mxu0 0.0
    %1799 = vmatprep.subr.mxu0 0.0
    %1800 = vmatpush1.msra.mxu0 0.0
    %1801 = vmatprep.subr.mxu0 0.0
    %1802 = vmatpush1.msra.mxu0 0.0
    %1803 = vmatprep.subr.mxu0 0.0
    %1804 = vmatpush1.msra.mxu0 0.0
    %1805 = vmatprep.subr.mxu0 0.0
    %1806 = vmatpush1.msra.mxu0 0.0
    %1807 = vmatprep.subr.mxu0 0.0
    %1808 = vmatpush1.msra.mxu0 0.0
    %1809 = vmatprep.subr.mxu0 0.0
    %1810 = vmatpush1.msra.mxu0 0.0
    %1811 = vmatprep.subr.mxu0 0.0
    %1812 = vmatpush1.msra.mxu0 0.0
    %1813 = vmatprep.subr.mxu0 0.0
    %1814 = vmatpush1.msra.mxu0 0.0
    %1815 = vmatprep.mubr.f32.mxu0 0.0
    %1816 = vmatmul.mubr.f32.gmra.mrb[0].mxu0 %v684
    %v1817 = vpop.f32.mrb[0].mxu0
    %v1818 = vadd.f32 %v465, %v1817
    %v1819 = vpop.f32.mrb[0].mxu0
    %v1820 = vadd.f32 %v469, %v1819
    %1821 = vdwg.mxu0
    %1822 = vmatprep.subr.mxu0 %v85
    %1823 = vmatpush1.msra.mxu0 %v84
    %1824 = vmatprep.subr.mxu0 %v153
    %1825 = vmatpush1.msra.mxu0 %v152
    %1826 = vmatprep.subr.mxu0 %v221
    %1827 = vmatpush1.msra.mxu0 %v220
    %1828 = vmatprep.subr.mxu0 %v289
    %1829 = vmatpush1.msra.mxu0 %v288
    %1830 = vmatprep.subr.mxu0 0.0
    %1831 = vmatpush1.msra.mxu0 0.0
    %1832 = vmatprep.subr.mxu0 0.0
    %1833 = vmatpush1.msra.mxu0 0.0
    %1834 = vmatprep.subr.mxu0 0.0
    %1835 = vmatpush1.msra.mxu0 0.0
    %1836 = vmatprep.subr.mxu0 0.0
    %1837 = vmatpush1.msra.mxu0 0.0
    %1838 = vmatprep.subr.mxu0 0.0
    %1839 = vmatpush1.msra.mxu0 0.0
    %1840 = vmatprep.subr.mxu0 0.0
    %1841 = vmatpush1.msra.mxu0 0.0
    %1842 = vmatprep.subr.mxu0 0.0
    %1843 = vmatpush1.msra.mxu0 0.0
    %1844 = vmatprep.subr.mxu0 0.0
    %1845 = vmatpush1.msra.mxu0 0.0
    %1846 = vmatprep.subr.mxu0 0.0
    %1847 = vmatpush1.msra.mxu0 0.0
    %1848 = vmatprep.subr.mxu0 0.0
    %1849 = vmatpush1.msra.mxu0 0.0
    %1850 = vmatprep.subr.mxu0 0.0
    %1851 = vmatpush1.msra.mxu0 0.0
    %1852 = vmatprep.subr.mxu0 0.0
    %1853 = vmatpush1.msra.mxu0 0.0
    %1854 = vmatprep.subr.mxu0 0.0
    %1855 = vmatpush1.msra.mxu0 0.0
    %1856 = vmatprep.subr.mxu0 0.0
    %1857 = vmatpush1.msra.mxu0 0.0
    %1858 = vmatprep.subr.mxu0 0.0
    %1859 = vmatpush1.msra.mxu0 0.0
    %1860 = vmatprep.subr.mxu0 0.0
    %1861 = vmatpush1.msra.mxu0 0.0
    %1862 = vmatprep.subr.mxu0 0.0
    %1863 = vmatpush1.msra.mxu0 0.0
    %1864 = vmatprep.subr.mxu0 0.0
    %1865 = vmatpush1.msra.mxu0 0.0
    %1866 = vmatprep.subr.mxu0 0.0
    %1867 = vmatpush1.msra.mxu0 0.0
    %1868 = vmatprep.subr.mxu0 0.0
    %1869 = vmatpush1.msra.mxu0 0.0
    %1870 = vmatprep.subr.mxu0 0.0
    %1871 = vmatpush1.msra.mxu0 0.0
    %1872 = vmatprep.subr.mxu0 0.0
    %1873 = vmatpush1.msra.mxu0 0.0
    %1874 = vmatprep.subr.mxu0 0.0
    %1875 = vmatpush1.msra.mxu0 0.0
    %1876 = vmatprep.subr.mxu0 0.0
    %1877 = vmatpush1.msra.mxu0 0.0
    %1878 = vmatprep.subr.mxu0 0.0
    %1879 = vmatpush1.msra.mxu0 0.0
    %1880 = vmatprep.subr.mxu0 0.0
    %1881 = vmatpush1.msra.mxu0 0.0
    %1882 = vmatprep.subr.mxu0 0.0
    %1883 = vmatpush1.msra.mxu0 0.0
    %1884 = vmatprep.subr.mxu0 0.0
    %1885 = vmatpush1.msra.mxu0 0.0
    %1886 = vmatprep.mubr.f32.mxu0 0.0
    %1887 = vmatmul.mubr.f32.gmra.mrb[0].mxu0 %v684
    %v1888 = vpop.f32.mrb[0].mxu0
    %v1889 = vadd.f32 %v473, %v1888
    %v1890 = vpop.f32.mrb[0].mxu0
    %v1891 = vadd.f32 %v477, %v1890
    %1892 = vdwg.mxu0
    %1893 = vmatprep.subr.mxu0 %v87
    %1894 = vmatpush1.msra.mxu0 %v86
    %1895 = vmatprep.subr.mxu0 %v155
    %1896 = vmatpush1.msra.mxu0 %v154
    %1897 = vmatprep.subr.mxu0 %v223
    %1898 = vmatpush1.msra.mxu0 %v222
    %1899 = vmatprep.subr.mxu0 %v291
    %1900 = vmatpush1.msra.mxu0 %v290
    %1901 = vmatprep.subr.mxu0 0.0
    %1902 = vmatpush1.msra.mxu0 0.0
    %1903 = vmatprep.subr.mxu0 0.0
    %1904 = vmatpush1.msra.mxu0 0.0
    %1905 = vmatprep.subr.mxu0 0.0
    %1906 = vmatpush1.msra.mxu0 0.0
    %1907 = vmatprep.subr.mxu0 0.0
    %1908 = vmatpush1.msra.mxu0 0.0
    %1909 = vmatprep.subr.mxu0 0.0
    %1910 = vmatpush1.msra.mxu0 0.0
    %1911 = vmatprep.subr.mxu0 0.0
    %1912 = vmatpush1.msra.mxu0 0.0
    %1913 = vmatprep.subr.mxu0 0.0
    %1914 = vmatpush1.msra.mxu0 0.0
    %1915 = vmatprep.subr.mxu0 0.0
    %1916 = vmatpush1.msra.mxu0 0.0
    %1917 = vmatprep.subr.mxu0 0.0
    %1918 = vmatpush1.msra.mxu0 0.0
    %1919 = vmatprep.subr.mxu0 0.0
    %1920 = vmatpush1.msra.mxu0 0.0
    %1921 = vmatprep.subr.mxu0 0.0
    %1922 = vmatpush1.msra.mxu0 0.0
    %1923 = vmatprep.subr.mxu0 0.0
    %1924 = vmatpush1.msra.mxu0 0.0
    %1925 = vmatprep.subr.mxu0 0.0
    %1926 = vmatpush1.msra.mxu0 0.0
    %1927 = vmatprep.subr.mxu0 0.0
    %1928 = vmatpush1.msra.mxu0 0.0
    %1929 = vmatprep.subr.mxu0 0.0
    %1930 = vmatpush1.msra.mxu0 0.0
    %1931 = vmatprep.subr.mxu0 0.0
    %1932 = vmatpush1.msra.mxu0 0.0
    %1933 = vmatprep.subr.mxu0 0.0
    %1934 = vmatpush1.msra.mxu0 0.0
    %1935 = vmatprep.subr.mxu0 0.0
    %1936 = vmatpush1.msra.mxu0 0.0
    %1937 = vmatprep.subr.mxu0 0.0
    %1938 = vmatpush1.msra.mxu0 0.0
    %1939 = vmatprep.subr.mxu0 0.0
    %1940 = vmatpush1.msra.mxu0 0.0
    %1941 = vmatprep.subr.mxu0 0.0
    %1942 = vmatpush1.msra.mxu0 0.0
    %1943 = vmatprep.subr.mxu0 0.0
    %1944 = vmatpush1.msra.mxu0 0.0
    %1945 = vmatprep.subr.mxu0 0.0
    %1946 = vmatpush1.msra.mxu0 0.0
    %1947 = vmatprep.subr.mxu0 0.0
    %1948 = vmatpush1.msra.mxu0 0.0
    %1949 = vmatprep.subr.mxu0 0.0
    %1950 = vmatpush1.msra.mxu0 0.0
    %1951 = vmatprep.subr.mxu0 0.0
    %1952 = vmatpush1.msra.mxu0 0.0
    %1953 = vmatprep.subr.mxu0 0.0
    %1954 = vmatpush1.msra.mxu0 0.0
    %1955 = vmatprep.subr.mxu0 0.0
    %1956 = vmatpush1.msra.mxu0 0.0
    %1957 = vmatprep.mubr.f32.mxu0 0.0
    %1958 = vmatmul.mubr.f32.gmra.mrb[0].mxu0 %v684
    %v1959 = vpop.f32.mrb[0].mxu0
    %v1960 = vadd.f32 %v481, %v1959
    %v1961 = vpop.f32.mrb[0].mxu0
    %v1962 = vadd.f32 %v485, %v1961
    %1963 = vdwg.mxu0
    %1964 = vmatprep.subr.mxu0 %v89
    %1965 = vmatpush1.msra.mxu0 %v88
    %1966 = vmatprep.subr.mxu0 %v157
    %1967 = vmatpush1.msra.mxu0 %v156
    %1968 = vmatprep.subr.mxu0 %v225
    %1969 = vmatpush1.msra.mxu0 %v224
    %1970 = vmatprep.subr.mxu0 %v293
    %1971 = vmatpush1.msra.mxu0 %v292
    %1972 = vmatprep.subr.mxu0 0.0
    %1973 = vmatpush1.msra.mxu0 0.0
    %1974 = vmatprep.subr.mxu0 0.0
    %1975 = vmatpush1.msra.mxu0 0.0
    %1976 = vmatprep.subr.mxu0 0.0
    %1977 = vmatpush1.msra.mxu0 0.0
    %1978 = vmatprep.subr.mxu0 0.0
    %1979 = vmatpush1.msra.mxu0 0.0
    %1980 = vmatprep.subr.mxu0 0.0
    %1981 = vmatpush1.msra.mxu0 0.0
    %1982 = vmatprep.subr.mxu0 0.0
    %1983 = vmatpush1.msra.mxu0 0.0
    %1984 = vmatprep.subr.mxu0 0.0
    %1985 = vmatpush1.msra.mxu0 0.0
    %1986 = vmatprep.subr.mxu0 0.0
    %1987 = vmatpush1.msra.mxu0 0.0
    %1988 = vmatprep.subr.mxu0 0.0
    %1989 = vmatpush1.msra.mxu0 0.0
    %1990 = vmatprep.subr.mxu0 0.0
    %1991 = vmatpush1.msra.mxu0 0.0
    %1992 = vmatprep.subr.mxu0 0.0
    %1993 = vmatpush1.msra.mxu0 0.0
    %1994 = vmatprep.subr.mxu0 0.0
    %1995 = vmatpush1.msra.mxu0 0.0
    %1996 = vmatprep.subr.mxu0 0.0
    %1997 = vmatpush1.msra.mxu0 0.0
    %1998 = vmatprep.subr.mxu0 0.0
    %1999 = vmatpush1.msra.mxu0 0.0
    %2000 = vmatprep.subr.mxu0 0.0
    %2001 = vmatpush1.msra.mxu0 0.0
    %2002 = vmatprep.subr.mxu0 0.0
    %2003 = vmatpush1.msra.mxu0 0.0
    %2004 = vmatprep.subr.mxu0 0.0
    %2005 = vmatpush1.msra.mxu0 0.0
    %2006 = vmatprep.subr.mxu0 0.0
    %2007 = vmatpush1.msra.mxu0 0.0
    %2008 = vmatprep.subr.mxu0 0.0
    %2009 = vmatpush1.msra.mxu0 0.0
    %2010 = vmatprep.subr.mxu0 0.0
    %2011 = vmatpush1.msra.mxu0 0.0
    %2012 = vmatprep.subr.mxu0 0.0
    %2013 = vmatpush1.msra.mxu0 0.0
    %2014 = vmatprep.subr.mxu0 0.0
    %2015 = vmatpush1.msra.mxu0 0.0
    %2016 = vmatprep.subr.mxu0 0.0
    %2017 = vmatpush1.msra.mxu0 0.0
    %2018 = vmatprep.subr.mxu0 0.0
    %2019 = vmatpush1.msra.mxu0 0.0
    %2020 = vmatprep.subr.mxu0 0.0
    %2021 = vmatpush1.msra.mxu0 0.0
    %2022 = vmatprep.subr.mxu0 0.0
    %2023 = vmatpush1.msra.mxu0 0.0
    %2024 = vmatprep.subr.mxu0 0.0
    %2025 = vmatpush1.msra.mxu0 0.0
    %2026 = vmatprep.subr.mxu0 0.0
    %2027 = vmatpush1.msra.mxu0 0.0
    %2028 = vmatprep.mubr.f32.mxu0 0.0
    %2029 = vmatmul.mubr.f32.gmra.mrb[0].mxu0 %v684
    %v2030 = vpop.f32.mrb[0].mxu0
    %v2031 = vadd.f32 %v489, %v2030
    %v2032 = vpop.f32.mrb[0].mxu0
    %v2033 = vadd.f32 %v493, %v2032
    %2034 = vdwg.mxu0
    %2035 = vmatprep.subr.mxu0 %v91
    %2036 = vmatpush1.msra.mxu0 %v90
    %2037 = vmatprep.subr.mxu0 %v159
    %2038 = vmatpush1.msra.mxu0 %v158
    %2039 = vmatprep.subr.mxu0 %v227
    %2040 = vmatpush1.msra.mxu0 %v226
    %2041 = vmatprep.subr.mxu0 %v295
    %2042 = vmatpush1.msra.mxu0 %v294
    %2043 = vmatprep.subr.mxu0 0.0
    %2044 = vmatpush1.msra.mxu0 0.0
    %2045 = vmatprep.subr.mxu0 0.0
    %2046 = vmatpush1.msra.mxu0 0.0
    %2047 = vmatprep.subr.mxu0 0.0
    %2048 = vmatpush1.msra.mxu0 0.0
    %2049 = vmatprep.subr.mxu0 0.0
    %2050 = vmatpush1.msra.mxu0 0.0
    %2051 = vmatprep.subr.mxu0 0.0
    %2052 = vmatpush1.msra.mxu0 0.0
    %2053 = vmatprep.subr.mxu0 0.0
    %2054 = vmatpush1.msra.mxu0 0.0
    %2055 = vmatprep.subr.mxu0 0.0
    %2056 = vmatpush1.msra.mxu0 0.0
    %2057 = vmatprep.subr.mxu0 0.0
    %2058 = vmatpush1.msra.mxu0 0.0
    %2059 = vmatprep.subr.mxu0 0.0
    %2060 = vmatpush1.msra.mxu0 0.0
    %2061 = vmatprep.subr.mxu0 0.0
    %2062 = vmatpush1.msra.mxu0 0.0
    %2063 = vmatprep.subr.mxu0 0.0
    %2064 = vmatpush1.msra.mxu0 0.0
    %2065 = vmatprep.subr.mxu0 0.0
    %2066 = vmatpush1.msra.mxu0 0.0
    %2067 = vmatprep.subr.mxu0 0.0
    %2068 = vmatpush1.msra.mxu0 0.0
    %2069 = vmatprep.subr.mxu0 0.0
    %2070 = vmatpush1.msra.mxu0 0.0
    %2071 = vmatprep.subr.mxu0 0.0
    %2072 = vmatpush1.msra.mxu0 0.0
    %2073 = vmatprep.subr.mxu0 0.0
    %2074 = vmatpush1.msra.mxu0 0.0
    %2075 = vmatprep.subr.mxu0 0.0
    %2076 = vmatpush1.msra.mxu0 0.0
    %2077 = vmatprep.subr.mxu0 0.0
    %2078 = vmatpush1.msra.mxu0 0.0
    %2079 = vmatprep.subr.mxu0 0.0
    %2080 = vmatpush1.msra.mxu0 0.0
    %2081 = vmatprep.subr.mxu0 0.0
    %2082 = vmatpush1.msra.mxu0 0.0
    %2083 = vmatprep.subr.mxu0 0.0
    %2084 = vmatpush1.msra.mxu0 0.0
    %2085 = vmatprep.subr.mxu0 0.0
    %2086 = vmatpush1.msra.mxu0 0.0
    %2087 = vmatprep.subr.mxu0 0.0
    %2088 = vmatpush1.msra.mxu0 0.0
    %2089 = vmatprep.subr.mxu0 0.0
    %2090 = vmatpush1.msra.mxu0 0.0
    %2091 = vmatprep.subr.mxu0 0.0
    %2092 = vmatpush1.msra.mxu0 0.0
    %2093 = vmatprep.subr.mxu0 0.0
    %2094 = vmatpush1.msra.mxu0 0.0
    %2095 = vmatprep.subr.mxu0 0.0
    %2096 = vmatpush1.msra.mxu0 0.0
    %2097 = vmatprep.subr.mxu0 0.0
    %2098 = vmatpush1.msra.mxu0 0.0
    %2099 = vmatprep.mubr.f32.mxu0 0.0
    %2100 = vmatmul.mubr.f32.gmra.mrb[0].mxu0 %v684
    %v2101 = vpop.f32.mrb[0].mxu0
    %v2102 = vadd.f32 %v497, %v2101
    %v2103 = vpop.f32.mrb[0].mxu0
    %v2104 = vadd.f32 %v501, %v2103
    %2105 = vdwg.mxu0
    %2106 = vmatprep.subr.mxu0 %v93
    %2107 = vmatpush1.msra.mxu0 %v92
    %2108 = vmatprep.subr.mxu0 %v161
    %2109 = vmatpush1.msra.mxu0 %v160
    %2110 = vmatprep.subr.mxu0 %v229
    %2111 = vmatpush1.msra.mxu0 %v228
    %2112 = vmatprep.subr.mxu0 %v297
    %2113 = vmatpush1.msra.mxu0 %v296
    %2114 = vmatprep.subr.mxu0 0.0
    %2115 = vmatpush1.msra.mxu0 0.0
    %2116 = vmatprep.subr.mxu0 0.0
    %2117 = vmatpush1.msra.mxu0 0.0
    %2118 = vmatprep.subr.mxu0 0.0
    %2119 = vmatpush1.msra.mxu0 0.0
    %2120 = vmatprep.subr.mxu0 0.0
    %2121 = vmatpush1.msra.mxu0 0.0
    %2122 = vmatprep.subr.mxu0 0.0
    %2123 = vmatpush1.msra.mxu0 0.0
    %2124 = vmatprep.subr.mxu0 0.0
    %2125 = vmatpush1.msra.mxu0 0.0
    %2126 = vmatprep.subr.mxu0 0.0
    %2127 = vmatpush1.msra.mxu0 0.0
    %2128 = vmatprep.subr.mxu0 0.0
    %2129 = vmatpush1.msra.mxu0 0.0
    %2130 = vmatprep.subr.mxu0 0.0
    %2131 = vmatpush1.msra.mxu0 0.0
    %2132 = vmatprep.subr.mxu0 0.0
    %2133 = vmatpush1.msra.mxu0 0.0
    %2134 = vmatprep.subr.mxu0 0.0
    %2135 = vmatpush1.msra.mxu0 0.0
    %2136 = vmatprep.subr.mxu0 0.0
    %2137 = vmatpush1.msra.mxu0 0.0
    %2138 = vmatprep.subr.mxu0 0.0
    %2139 = vmatpush1.msra.mxu0 0.0
    %2140 = vmatprep.subr.mxu0 0.0
    %2141 = vmatpush1.msra.mxu0 0.0
    %2142 = vmatprep.subr.mxu0 0.0
    %2143 = vmatpush1.msra.mxu0 0.0
    %2144 = vmatprep.subr.mxu0 0.0
    %2145 = vmatpush1.msra.mxu0 0.0
    %2146 = vmatprep.subr.mxu0 0.0
    %2147 = vmatpush1.msra.mxu0 0.0
    %2148 = vmatprep.subr.mxu0 0.0
    %2149 = vmatpush1.msra.mxu0 0.0
    %2150 = vmatprep.subr.mxu0 0.0
    %2151 = vmatpush1.msra.mxu0 0.0
    %2152 = vmatprep.subr.mxu0 0.0
    %2153 = vmatpush1.msra.mxu0 0.0
    %2154 = vmatprep.subr.mxu0 0.0
    %2155 = vmatpush1.msra.mxu0 0.0
    %2156 = vmatprep.subr.mxu0 0.0
    %2157 = vmatpush1.msra.mxu0 0.0
    %2158 = vmatprep.subr.mxu0 0.0
    %2159 = vmatpush1.msra.mxu0 0.0
    %2160 = vmatprep.subr.mxu0 0.0
    %2161 = vmatpush1.msra.mxu0 0.0
    %2162 = vmatprep.subr.mxu0 0.0
    %2163 = vmatpush1.msra.mxu0 0.0
    %2164 = vmatprep.subr.mxu0 0.0
    %2165 = vmatpush1.msra.mxu0 0.0
    %2166 = vmatprep.subr.mxu0 0.0
    %2167 = vmatpush1.msra.mxu0 0.0
    %2168 = vmatprep.subr.mxu0 0.0
    %2169 = vmatpush1.msra.mxu0 0.0
    %2170 = vmatprep.mubr.f32.mxu0 0.0
    %2171 = vmatmul.mubr.f32.gmra.mrb[0].mxu0 %v684
    %v2172 = vpop.f32.mrb[0].mxu0
    %v2173 = vadd.f32 %v505, %v2172
    %v2174 = vpop.f32.mrb[0].mxu0
    %v2175 = vadd.f32 %v509, %v2174
    %2176 = vdwg.mxu0
    %2177 = vmatprep.subr.mxu0 %v95
    %2178 = vmatpush1.msra.mxu0 %v94
    %2179 = vmatprep.subr.mxu0 %v163
    %2180 = vmatpush1.msra.mxu0 %v162
    %2181 = vmatprep.subr.mxu0 %v231
    %2182 = vmatpush1.msra.mxu0 %v230
    %2183 = vmatprep.subr.mxu0 %v299
    %2184 = vmatpush1.msra.mxu0 %v298
    %2185 = vmatprep.subr.mxu0 0.0
    %2186 = vmatpush1.msra.mxu0 0.0
    %2187 = vmatprep.subr.mxu0 0.0
    %2188 = vmatpush1.msra.mxu0 0.0
    %2189 = vmatprep.subr.mxu0 0.0
    %2190 = vmatpush1.msra.mxu0 0.0
    %2191 = vmatprep.subr.mxu0 0.0
    %2192 = vmatpush1.msra.mxu0 0.0
    %2193 = vmatprep.subr.mxu0 0.0
    %2194 = vmatpush1.msra.mxu0 0.0
    %2195 = vmatprep.subr.mxu0 0.0
    %2196 = vmatpush1.msra.mxu0 0.0
    %2197 = vmatprep.subr.mxu0 0.0
    %2198 = vmatpush1.msra.mxu0 0.0
    %2199 = vmatprep.subr.mxu0 0.0
    %2200 = vmatpush1.msra.mxu0 0.0
    %2201 = vmatprep.subr.mxu0 0.0
    %2202 = vmatpush1.msra.mxu0 0.0
    %2203 = vmatprep.subr.mxu0 0.0
    %2204 = vmatpush1.msra.mxu0 0.0
    %2205 = vmatprep.subr.mxu0 0.0
    %2206 = vmatpush1.msra.mxu0 0.0
    %2207 = vmatprep.subr.mxu0 0.0
    %2208 = vmatpush1.msra.mxu0 0.0
    %2209 = vmatprep.subr.mxu0 0.0
    %2210 = vmatpush1.msra.mxu0 0.0
    %2211 = vmatprep.subr.mxu0 0.0
    %2212 = vmatpush1.msra.mxu0 0.0
    %2213 = vmatprep.subr.mxu0 0.0
    %2214 = vmatpush1.msra.mxu0 0.0
    %2215 = vmatprep.subr.mxu0 0.0
    %2216 = vmatpush1.msra.mxu0 0.0
    %2217 = vmatprep.subr.mxu0 0.0
    %2218 = vmatpush1.msra.mxu0 0.0
    %2219 = vmatprep.subr.mxu0 0.0
    %2220 = vmatpush1.msra.mxu0 0.0
    %2221 = vmatprep.subr.mxu0 0.0
    %2222 = vmatpush1.msra.mxu0 0.0
    %2223 = vmatprep.subr.mxu0 0.0
    %2224 = vmatpush1.msra.mxu0 0.0
    %2225 = vmatprep.subr.mxu0 0.0
    %2226 = vmatpush1.msra.mxu0 0.0
    %2227 = vmatprep.subr.mxu0 0.0
    %2228 = vmatpush1.msra.mxu0 0.0
    %2229 = vmatprep.subr.mxu0 0.0
    %2230 = vmatpush1.msra.mxu0 0.0
    %2231 = vmatprep.subr.mxu0 0.0
    %2232 = vmatpush1.msra.mxu0 0.0
    %2233 = vmatprep.subr.mxu0 0.0
    %2234 = vmatpush1.msra.mxu0 0.0
    %2235 = vmatprep.subr.mxu0 0.0
    %2236 = vmatpush1.msra.mxu0 0.0
    %2237 = vmatprep.subr.mxu0 0.0
    %2238 = vmatpush1.msra.mxu0 0.0
    %2239 = vmatprep.subr.mxu0 0.0
    %2240 = vmatpush1.msra.mxu0 0.0
    %2241 = vmatprep.mubr.f32.mxu0 0.0
    %2242 = vmatmul.mubr.f32.gmra.mrb[0].mxu0 %v684
    %v2243 = vpop.f32.mrb[0].mxu0
    %v2244 = vadd.f32 %v513, %v2243
    %v2245 = vpop.f32.mrb[0].mxu0
    %v2246 = vadd.f32 %v517, %v2245
    %2247 = vdwg.mxu0
    %2248 = vmatprep.subr.mxu0 %v97
    %2249 = vmatpush1.msra.mxu0 %v96
    %2250 = vmatprep.subr.mxu0 %v165
    %2251 = vmatpush1.msra.mxu0 %v164
    %2252 = vmatprep.subr.mxu0 %v233
    %2253 = vmatpush1.msra.mxu0 %v232
    %2254 = vmatprep.subr.mxu0 %v301
    %2255 = vmatpush1.msra.mxu0 %v300
    %2256 = vmatprep.subr.mxu0 0.0
    %2257 = vmatpush1.msra.mxu0 0.0
    %2258 = vmatprep.subr.mxu0 0.0
    %2259 = vmatpush1.msra.mxu0 0.0
    %2260 = vmatprep.subr.mxu0 0.0
    %2261 = vmatpush1.msra.mxu0 0.0
    %2262 = vmatprep.subr.mxu0 0.0
    %2263 = vmatpush1.msra.mxu0 0.0
    %2264 = vmatprep.subr.mxu0 0.0
    %2265 = vmatpush1.msra.mxu0 0.0
    %2266 = vmatprep.subr.mxu0 0.0
    %2267 = vmatpush1.msra.mxu0 0.0
    %2268 = vmatprep.subr.mxu0 0.0
    %2269 = vmatpush1.msra.mxu0 0.0
    %2270 = vmatprep.subr.mxu0 0.0
    %2271 = vmatpush1.msra.mxu0 0.0
    %2272 = vmatprep.subr.mxu0 0.0
    %2273 = vmatpush1.msra.mxu0 0.0
    %2274 = vmatprep.subr.mxu0 0.0
    %2275 = vmatpush1.msra.mxu0 0.0
    %2276 = vmatprep.subr.mxu0 0.0
    %2277 = vmatpush1.msra.mxu0 0.0
    %2278 = vmatprep.subr.mxu0 0.0
    %2279 = vmatpush1.msra.mxu0 0.0
    %2280 = vmatprep.subr.mxu0 0.0
    %2281 = vmatpush1.msra.mxu0 0.0
    %2282 = vmatprep.subr.mxu0 0.0
    %2283 = vmatpush1.msra.mxu0 0.0
    %2284 = vmatprep.subr.mxu0 0.0
    %2285 = vmatpush1.msra.mxu0 0.0
    %2286 = vmatprep.subr.mxu0 0.0
    %2287 = vmatpush1.msra.mxu0 0.0
    %2288 = vmatprep.subr.mxu0 0.0
    %2289 = vmatpush1.msra.mxu0 0.0
    %2290 = vmatprep.subr.mxu0 0.0
    %2291 = vmatpush1.msra.mxu0 0.0
    %2292 = vmatprep.subr.mxu0 0.0
    %2293 = vmatpush1.msra.mxu0 0.0
    %2294 = vmatprep.subr.mxu0 0.0
    %2295 = vmatpush1.msra.mxu0 0.0
    %2296 = vmatprep.subr.mxu0 0.0
    %2297 = vmatpush1.msra.mxu0 0.0
    %2298 = vmatprep.subr.mxu0 0.0
    %2299 = vmatpush1.msra.mxu0 0.0
    %2300 = vmatprep.subr.mxu0 0.0
    %2301 = vmatpush1.msra.mxu0 0.0
    %2302 = vmatprep.subr.mxu0 0.0
    %2303 = vmatpush1.msra.mxu0 0.0
    %2304 = vmatprep.subr.mxu0 0.0
    %2305 = vmatpush1.msra.mxu0 0.0
    %2306 = vmatprep.subr.mxu0 0.0
    %2307 = vmatpush1.msra.mxu0 0.0
    %2308 = vmatprep.subr.mxu0 0.0
    %2309 = vmatpush1.msra.mxu0 0.0
    %2310 = vmatprep.subr.mxu0 0.0
    %2311 = vmatpush1.msra.mxu0 0.0
    %2312 = vmatprep.mubr.f32.mxu0 0.0
    %2313 = vmatmul.mubr.f32.gmra.mrb[0].mxu0 %v684
    %v2314 = vpop.f32.mrb[0].mxu0
    %v2315 = vadd.f32 %v521, %v2314
    %v2316 = vpop.f32.mrb[0].mxu0
    %v2317 = vadd.f32 %v525, %v2316
    %2318 = vdwg.mxu0
    %2319 = vmatprep.subr.mxu0 %v99
    %2320 = vmatpush1.msra.mxu0 %v98
    %2321 = vmatprep.subr.mxu0 %v167
    %2322 = vmatpush1.msra.mxu0 %v166
    %2323 = vmatprep.subr.mxu0 %v235
    %2324 = vmatpush1.msra.mxu0 %v234
    %2325 = vmatprep.subr.mxu0 %v303
    %2326 = vmatpush1.msra.mxu0 %v302
    %2327 = vmatprep.subr.mxu0 0.0
    %2328 = vmatpush1.msra.mxu0 0.0
    %2329 = vmatprep.subr.mxu0 0.0
    %2330 = vmatpush1.msra.mxu0 0.0
    %2331 = vmatprep.subr.mxu0 0.0
    %2332 = vmatpush1.msra.mxu0 0.0
    %2333 = vmatprep.subr.mxu0 0.0
    %2334 = vmatpush1.msra.mxu0 0.0
    %2335 = vmatprep.subr.mxu0 0.0
    %2336 = vmatpush1.msra.mxu0 0.0
    %2337 = vmatprep.subr.mxu0 0.0
    %2338 = vmatpush1.msra.mxu0 0.0
    %2339 = vmatprep.subr.mxu0 0.0
    %2340 = vmatpush1.msra.mxu0 0.0
    %2341 = vmatprep.subr.mxu0 0.0
    %2342 = vmatpush1.msra.mxu0 0.0
    %2343 = vmatprep.subr.mxu0 0.0
    %2344 = vmatpush1.msra.mxu0 0.0
    %2345 = vmatprep.subr.mxu0 0.0
    %2346 = vmatpush1.msra.mxu0 0.0
    %2347 = vmatprep.subr.mxu0 0.0
    %2348 = vmatpush1.msra.mxu0 0.0
    %2349 = vmatprep.subr.mxu0 0.0
    %2350 = vmatpush1.msra.mxu0 0.0
    %2351 = vmatprep.subr.mxu0 0.0
    %2352 = vmatpush1.msra.mxu0 0.0
    %2353 = vmatprep.subr.mxu0 0.0
    %2354 = vmatpush1.msra.mxu0 0.0
    %2355 = vmatprep.subr.mxu0 0.0
    %2356 = vmatpush1.msra.mxu0 0.0
    %2357 = vmatprep.subr.mxu0 0.0
    %2358 = vmatpush1.msra.mxu0 0.0
    %2359 = vmatprep.subr.mxu0 0.0
    %2360 = vmatpush1.msra.mxu0 0.0
    %2361 = vmatprep.subr.mxu0 0.0
    %2362 = vmatpush1.msra.mxu0 0.0
    %2363 = vmatprep.subr.mxu0 0.0
    %2364 = vmatpush1.msra.mxu0 0.0
    %2365 = vmatprep.subr.mxu0 0.0
    %2366 = vmatpush1.msra.mxu0 0.0
    %2367 = vmatprep.subr.mxu0 0.0
    %2368 = vmatpush1.msra.mxu0 0.0
    %2369 = vmatprep.subr.mxu0 0.0
    %2370 = vmatpush1.msra.mxu0 0.0
    %2371 = vmatprep.subr.mxu0 0.0
    %2372 = vmatpush1.msra.mxu0 0.0
    %2373 = vmatprep.subr.mxu0 0.0
    %2374 = vmatpush1.msra.mxu0 0.0
    %2375 = vmatprep.subr.mxu0 0.0
    %2376 = vmatpush1.msra.mxu0 0.0
    %2377 = vmatprep.subr.mxu0 0.0
    %2378 = vmatpush1.msra.mxu0 0.0
    %2379 = vmatprep.subr.mxu0 0.0
    %2380 = vmatpush1.msra.mxu0 0.0
    %2381 = vmatprep.subr.mxu0 0.0
    %2382 = vmatpush1.msra.mxu0 0.0
    %2383 = vmatprep.mubr.f32.mxu0 0.0
    %2384 = vmatmul.mubr.f32.gmra.mrb[0].mxu0 %v684
    %v2385 = vpop.f32.mrb[0].mxu0
    %v2386 = vadd.f32 %v529, %v2385
    %v2387 = vpop.f32.mrb[0].mxu0
    %v2388 = vadd.f32 %v533, %v2387
    %2389 = vdwg.mxu0
    %2390 = vmatprep.subr.mxu0 %v101
    %2391 = vmatpush1.msra.mxu0 %v100
    %2392 = vmatprep.subr.mxu0 %v169
    %2393 = vmatpush1.msra.mxu0 %v168
    %2394 = vmatprep.subr.mxu0 %v237
    %2395 = vmatpush1.msra.mxu0 %v236
    %2396 = vmatprep.subr.mxu0 %v305
    %2397 = vmatpush1.msra.mxu0 %v304
    %2398 = vmatprep.subr.mxu0 0.0
    %2399 = vmatpush1.msra.mxu0 0.0
    %2400 = vmatprep.subr.mxu0 0.0
    %2401 = vmatpush1.msra.mxu0 0.0
    %2402 = vmatprep.subr.mxu0 0.0
    %2403 = vmatpush1.msra.mxu0 0.0
    %2404 = vmatprep.subr.mxu0 0.0
    %2405 = vmatpush1.msra.mxu0 0.0
    %2406 = vmatprep.subr.mxu0 0.0
    %2407 = vmatpush1.msra.mxu0 0.0
    %2408 = vmatprep.subr.mxu0 0.0
    %2409 = vmatpush1.msra.mxu0 0.0
    %2410 = vmatprep.subr.mxu0 0.0
    %2411 = vmatpush1.msra.mxu0 0.0
    %2412 = vmatprep.subr.mxu0 0.0
    %2413 = vmatpush1.msra.mxu0 0.0
    %2414 = vmatprep.subr.mxu0 0.0
    %2415 = vmatpush1.msra.mxu0 0.0
    %2416 = vmatprep.subr.mxu0 0.0
    %2417 = vmatpush1.msra.mxu0 0.0
    %2418 = vmatprep.subr.mxu0 0.0
    %2419 = vmatpush1.msra.mxu0 0.0
    %2420 = vmatprep.subr.mxu0 0.0
    %2421 = vmatpush1.msra.mxu0 0.0
    %2422 = vmatprep.subr.mxu0 0.0
    %2423 = vmatpush1.msra.mxu0 0.0
    %2424 = vmatprep.subr.mxu0 0.0
    %2425 = vmatpush1.msra.mxu0 0.0
    %2426 = vmatprep.subr.mxu0 0.0
    %2427 = vmatpush1.msra.mxu0 0.0
    %2428 = vmatprep.subr.mxu0 0.0
    %2429 = vmatpush1.msra.mxu0 0.0
    %2430 = vmatprep.subr.mxu0 0.0
    %2431 = vmatpush1.msra.mxu0 0.0
    %2432 = vmatprep.subr.mxu0 0.0
    %2433 = vmatpush1.msra.mxu0 0.0
    %2434 = vmatprep.subr.mxu0 0.0
    %2435 = vmatpush1.msra.mxu0 0.0
    %2436 = vmatprep.subr.mxu0 0.0
    %2437 = vmatpush1.msra.mxu0 0.0
    %2438 = vmatprep.subr.mxu0 0.0
    %2439 = vmatpush1.msra.mxu0 0.0
    %2440 = vmatprep.subr.mxu0 0.0
    %2441 = vmatpush1.msra.mxu0 0.0
    %2442 = vmatprep.subr.mxu0 0.0
    %2443 = vmatpush1.msra.mxu0 0.0
    %2444 = vmatprep.subr.mxu0 0.0
    %2445 = vmatpush1.msra.mxu0 0.0
    %2446 = vmatprep.subr.mxu0 0.0
    %2447 = vmatpush1.msra.mxu0 0.0
    %2448 = vmatprep.subr.mxu0 0.0
    %2449 = vmatpush1.msra.mxu0 0.0
    %2450 = vmatprep.subr.mxu0 0.0
    %2451 = vmatpush1.msra.mxu0 0.0
    %2452 = vmatprep.subr.mxu0 0.0
    %2453 = vmatpush1.msra.mxu0 0.0
    %2454 = vmatprep.mubr.f32.mxu0 0.0
    %2455 = vmatmul.mubr.f32.gmra.mrb[0].mxu0 %v684
    %v2456 = vpop.f32.mrb[0].mxu0
    %v2457 = vadd.f32 %v537, %v2456
    %v2458 = vpop.f32.mrb[0].mxu0
    %v2459 = vadd.f32 %v541, %v2458
    %2460 = vdwg.mxu0
    %2461 = vmatprep.subr.mxu0 %v103
    %2462 = vmatpush1.msra.mxu0 %v102
    %2463 = vmatprep.subr.mxu0 %v171
    %2464 = vmatpush1.msra.mxu0 %v170
    %2465 = vmatprep.subr.mxu0 %v239
    %2466 = vmatpush1.msra.mxu0 %v238
    %2467 = vmatprep.subr.mxu0 %v307
    %2468 = vmatpush1.msra.mxu0 %v306
    %2469 = vmatprep.subr.mxu0 0.0
    %2470 = vmatpush1.msra.mxu0 0.0
    %2471 = vmatprep.subr.mxu0 0.0
    %2472 = vmatpush1.msra.mxu0 0.0
    %2473 = vmatprep.subr.mxu0 0.0
    %2474 = vmatpush1.msra.mxu0 0.0
    %2475 = vmatprep.subr.mxu0 0.0
    %2476 = vmatpush1.msra.mxu0 0.0
    %2477 = vmatprep.subr.mxu0 0.0
    %2478 = vmatpush1.msra.mxu0 0.0
    %2479 = vmatprep.subr.mxu0 0.0
    %2480 = vmatpush1.msra.mxu0 0.0
    %2481 = vmatprep.subr.mxu0 0.0
    %2482 = vmatpush1.msra.mxu0 0.0
    %2483 = vmatprep.subr.mxu0 0.0
    %2484 = vmatpush1.msra.mxu0 0.0
    %2485 = vmatprep.subr.mxu0 0.0
    %2486 = vmatpush1.msra.mxu0 0.0
    %2487 = vmatprep.subr.mxu0 0.0
    %2488 = vmatpush1.msra.mxu0 0.0
    %2489 = vmatprep.subr.mxu0 0.0
    %2490 = vmatpush1.msra.mxu0 0.0
    %2491 = vmatprep.subr.mxu0 0.0
    %2492 = vmatpush1.msra.mxu0 0.0
    %2493 = vmatprep.subr.mxu0 0.0
    %2494 = vmatpush1.msra.mxu0 0.0
    %2495 = vmatprep.subr.mxu0 0.0
    %2496 = vmatpush1.msra.mxu0 0.0
    %2497 = vmatprep.subr.mxu0 0.0
    %2498 = vmatpush1.msra.mxu0 0.0
    %2499 = vmatprep.subr.mxu0 0.0
    %2500 = vmatpush1.msra.mxu0 0.0
    %2501 = vmatprep.subr.mxu0 0.0
    %2502 = vmatpush1.msra.mxu0 0.0
    %2503 = vmatprep.subr.mxu0 0.0
    %2504 = vmatpush1.msra.mxu0 0.0
    %2505 = vmatprep.subr.mxu0 0.0
    %2506 = vmatpush1.msra.mxu0 0.0
    %2507 = vmatprep.subr.mxu0 0.0
    %2508 = vmatpush1.msra.mxu0 0.0
    %2509 = vmatprep.subr.mxu0 0.0
    %2510 = vmatpush1.msra.mxu0 0.0
    %2511 = vmatprep.subr.mxu0 0.0
    %2512 = vmatpush1.msra.mxu0 0.0
    %2513 = vmatprep.subr.mxu0 0.0
    %2514 = vmatpush1.msra.mxu0 0.0
    %2515 = vmatprep.subr.mxu0 0.0
    %2516 = vmatpush1.msra.mxu0 0.0
    %2517 = vmatprep.subr.mxu0 0.0
    %2518 = vmatpush1.msra.mxu0 0.0
    %2519 = vmatprep.subr.mxu0 0.0
    %2520 = vmatpush1.msra.mxu0 0.0
    %2521 = vmatprep.subr.mxu0 0.0
    %2522 = vmatpush1.msra.mxu0 0.0
    %2523 = vmatprep.subr.mxu0 0.0
    %2524 = vmatpush1.msra.mxu0 0.0
    %2525 = vmatprep.mubr.f32.mxu0 0.0
    %2526 = vmatmul.mubr.f32.gmra.mrb[0].mxu0 %v684
    %v2527 = vpop.f32.mrb[0].mxu0
    %v2528 = vadd.f32 %v545, %v2527
    %v2529 = vpop.f32.mrb[0].mxu0
    %v2530 = vadd.f32 %v549, %v2529
    %2531 = vdwg.mxu0
    %2532 = vmatprep.subr.mxu0 %v105
    %2533 = vmatpush1.msra.mxu0 %v104
    %2534 = vmatprep.subr.mxu0 %v173
    %2535 = vmatpush1.msra.mxu0 %v172
    %2536 = vmatprep.subr.mxu0 %v241
    %2537 = vmatpush1.msra.mxu0 %v240
    %2538 = vmatprep.subr.mxu0 %v309
    %2539 = vmatpush1.msra.mxu0 %v308
    %2540 = vmatprep.subr.mxu0 0.0
    %2541 = vmatpush1.msra.mxu0 0.0
    %2542 = vmatprep.subr.mxu0 0.0
    %2543 = vmatpush1.msra.mxu0 0.0
    %2544 = vmatprep.subr.mxu0 0.0
    %2545 = vmatpush1.msra.mxu0 0.0
    %2546 = vmatprep.subr.mxu0 0.0
    %2547 = vmatpush1.msra.mxu0 0.0
    %2548 = vmatprep.subr.mxu0 0.0
    %2549 = vmatpush1.msra.mxu0 0.0
    %2550 = vmatprep.subr.mxu0 0.0
    %2551 = vmatpush1.msra.mxu0 0.0
    %2552 = vmatprep.subr.mxu0 0.0
    %2553 = vmatpush1.msra.mxu0 0.0
    %2554 = vmatprep.subr.mxu0 0.0
    %2555 = vmatpush1.msra.mxu0 0.0
    %2556 = vmatprep.subr.mxu0 0.0
    %2557 = vmatpush1.msra.mxu0 0.0
    %2558 = vmatprep.subr.mxu0 0.0
    %2559 = vmatpush1.msra.mxu0 0.0
    %2560 = vmatprep.subr.mxu0 0.0
    %2561 = vmatpush1.msra.mxu0 0.0
    %2562 = vmatprep.subr.mxu0 0.0
    %2563 = vmatpush1.msra.mxu0 0.0
    %2564 = vmatprep.subr.mxu0 0.0
    %2565 = vmatpush1.msra.mxu0 0.0
    %2566 = vmatprep.subr.mxu0 0.0
    %2567 = vmatpush1.msra.mxu0 0.0
    %2568 = vmatprep.subr.mxu0 0.0
    %2569 = vmatpush1.msra.mxu0 0.0
    %2570 = vmatprep.subr.mxu0 0.0
    %2571 = vmatpush1.msra.mxu0 0.0
    %2572 = vmatprep.subr.mxu0 0.0
    %2573 = vmatpush1.msra.mxu0 0.0
    %2574 = vmatprep.subr.mxu0 0.0
    %2575 = vmatpush1.msra.mxu0 0.0
    %2576 = vmatprep.subr.mxu0 0.0
    %2577 = vmatpush1.msra.mxu0 0.0
    %2578 = vmatprep.subr.mxu0 0.0
    %2579 = vmatpush1.msra.mxu0 0.0
    %2580 = vmatprep.subr.mxu0 0.0
    %2581 = vmatpush1.msra.mxu0 0.0
    %2582 = vmatprep.subr.mxu0 0.0
    %2583 = vmatpush1.msra.mxu0 0.0
    %2584 = vmatprep.subr.mxu0 0.0
    %2585 = vmatpush1.msra.mxu0 0.0
    %2586 = vmatprep.subr.mxu0 0.0
    %2587 = vmatpush1.msra.mxu0 0.0
    %2588 = vmatprep.subr.mxu0 0.0
    %2589 = vmatpush1.msra.mxu0 0.0
    %2590 = vmatprep.subr.mxu0 0.0
    %2591 = vmatpush1.msra.mxu0 0.0
    %2592 = vmatprep.subr.mxu0 0.0
    %2593 = vmatpush1.msra.mxu0 0.0
    %2594 = vmatprep.subr.mxu0 0.0
    %2595 = vmatpush1.msra.mxu0 0.0
    %2596 = vmatprep.mubr.f32.mxu0 0.0
    %2597 = vmatmul.mubr.f32.gmra.mrb[0].mxu0 %v684
    %v2598 = vpop.f32.mrb[0].mxu0
    %v2599 = vadd.f32 %v553, %v2598
    %v2600 = vpop.f32.mrb[0].mxu0
    %v2601 = vadd.f32 %v557, %v2600
    %2602 = vdwg.mxu0
    %2603 = vmatprep.subr.mxu0 %v107
    %2604 = vmatpush1.msra.mxu0 %v106
    %2605 = vmatprep.subr.mxu0 %v175
    %2606 = vmatpush1.msra.mxu0 %v174
    %2607 = vmatprep.subr.mxu0 %v243
    %2608 = vmatpush1.msra.mxu0 %v242
    %2609 = vmatprep.subr.mxu0 %v311
    %2610 = vmatpush1.msra.mxu0 %v310
    %2611 = vmatprep.subr.mxu0 0.0
    %2612 = vmatpush1.msra.mxu0 0.0
    %2613 = vmatprep.subr.mxu0 0.0
    %2614 = vmatpush1.msra.mxu0 0.0
    %2615 = vmatprep.subr.mxu0 0.0
    %2616 = vmatpush1.msra.mxu0 0.0
    %2617 = vmatprep.subr.mxu0 0.0
    %2618 = vmatpush1.msra.mxu0 0.0
    %2619 = vmatprep.subr.mxu0 0.0
    %2620 = vmatpush1.msra.mxu0 0.0
    %2621 = vmatprep.subr.mxu0 0.0
    %2622 = vmatpush1.msra.mxu0 0.0
    %2623 = vmatprep.subr.mxu0 0.0
    %2624 = vmatpush1.msra.mxu0 0.0
    %2625 = vmatprep.subr.mxu0 0.0
    %2626 = vmatpush1.msra.mxu0 0.0
    %2627 = vmatprep.subr.mxu0 0.0
    %2628 = vmatpush1.msra.mxu0 0.0
    %2629 = vmatprep.subr.mxu0 0.0
    %2630 = vmatpush1.msra.mxu0 0.0
    %2631 = vmatprep.subr.mxu0 0.0
    %2632 = vmatpush1.msra.mxu0 0.0
    %2633 = vmatprep.subr.mxu0 0.0
    %2634 = vmatpush1.msra.mxu0 0.0
    %2635 = vmatprep.subr.mxu0 0.0
    %2636 = vmatpush1.msra.mxu0 0.0
    %2637 = vmatprep.subr.mxu0 0.0
    %2638 = vmatpush1.msra.mxu0 0.0
    %2639 = vmatprep.subr.mxu0 0.0
    %2640 = vmatpush1.msra.mxu0 0.0
    %2641 = vmatprep.subr.mxu0 0.0
    %2642 = vmatpush1.msra.mxu0 0.0
    %2643 = vmatprep.subr.mxu0 0.0
    %2644 = vmatpush1.msra.mxu0 0.0
    %2645 = vmatprep.subr.mxu0 0.0
    %2646 = vmatpush1.msra.mxu0 0.0
    %2647 = vmatprep.subr.mxu0 0.0
    %2648 = vmatpush1.msra.mxu0 0.0
    %2649 = vmatprep.subr.mxu0 0.0
    %2650 = vmatpush1.msra.mxu0 0.0
    %2651 = vmatprep.subr.mxu0 0.0
    %2652 = vmatpush1.msra.mxu0 0.0
    %2653 = vmatprep.subr.mxu0 0.0
    %2654 = vmatpush1.msra.mxu0 0.0
    %2655 = vmatprep.subr.mxu0 0.0
    %2656 = vmatpush1.msra.mxu0 0.0
    %2657 = vmatprep.subr.mxu0 0.0
    %2658 = vmatpush1.msra.mxu0 0.0
    %2659 = vmatprep.subr.mxu0 0.0
    %2660 = vmatpush1.msra.mxu0 0.0
    %2661 = vmatprep.subr.mxu0 0.0
    %2662 = vmatpush1.msra.mxu0 0.0
    %2663 = vmatprep.subr.mxu0 0.0
    %2664 = vmatpush1.msra.mxu0 0.0
    %2665 = vmatprep.subr.mxu0 0.0
    %2666 = vmatpush1.msra.mxu0 0.0
    %2667 = vmatprep.mubr.f32.mxu0 0.0
    %2668 = vmatmul.mubr.f32.gmra.mrb[0].mxu0 %v684
    %v2669 = vpop.f32.mrb[0].mxu0
    %v2670 = vadd.f32 %v561, %v2669
    %v2671 = vpop.f32.mrb[0].mxu0
    %v2672 = vadd.f32 %v565, %v2671
    %2673 = vdwg.mxu0
    %2674 = vmatprep.subr.mxu0 %v109
    %2675 = vmatpush1.msra.mxu0 %v108
    %2676 = vmatprep.subr.mxu0 %v177
    %2677 = vmatpush1.msra.mxu0 %v176
    %2678 = vmatprep.subr.mxu0 %v245
    %2679 = vmatpush1.msra.mxu0 %v244
    %2680 = vmatprep.subr.mxu0 %v313
    %2681 = vmatpush1.msra.mxu0 %v312
    %2682 = vmatprep.subr.mxu0 0.0
    %2683 = vmatpush1.msra.mxu0 0.0
    %2684 = vmatprep.subr.mxu0 0.0
    %2685 = vmatpush1.msra.mxu0 0.0
    %2686 = vmatprep.subr.mxu0 0.0
    %2687 = vmatpush1.msra.mxu0 0.0
    %2688 = vmatprep.subr.mxu0 0.0
    %2689 = vmatpush1.msra.mxu0 0.0
    %2690 = vmatprep.subr.mxu0 0.0
    %2691 = vmatpush1.msra.mxu0 0.0
    %2692 = vmatprep.subr.mxu0 0.0
    %2693 = vmatpush1.msra.mxu0 0.0
    %2694 = vmatprep.subr.mxu0 0.0
    %2695 = vmatpush1.msra.mxu0 0.0
    %2696 = vmatprep.subr.mxu0 0.0
    %2697 = vmatpush1.msra.mxu0 0.0
    %2698 = vmatprep.subr.mxu0 0.0
    %2699 = vmatpush1.msra.mxu0 0.0
    %2700 = vmatprep.subr.mxu0 0.0
    %2701 = vmatpush1.msra.mxu0 0.0
    %2702 = vmatprep.subr.mxu0 0.0
    %2703 = vmatpush1.msra.mxu0 0.0
    %2704 = vmatprep.subr.mxu0 0.0
    %2705 = vmatpush1.msra.mxu0 0.0
    %2706 = vmatprep.subr.mxu0 0.0
    %2707 = vmatpush1.msra.mxu0 0.0
    %2708 = vmatprep.subr.mxu0 0.0
    %2709 = vmatpush1.msra.mxu0 0.0
    %2710 = vmatprep.subr.mxu0 0.0
    %2711 = vmatpush1.msra.mxu0 0.0
    %2712 = vmatprep.subr.mxu0 0.0
    %2713 = vmatpush1.msra.mxu0 0.0
    %2714 = vmatprep.subr.mxu0 0.0
    %2715 = vmatpush1.msra.mxu0 0.0
    %2716 = vmatprep.subr.mxu0 0.0
    %2717 = vmatpush1.msra.mxu0 0.0
    %2718 = vmatprep.subr.mxu0 0.0
    %2719 = vmatpush1.msra.mxu0 0.0
    %2720 = vmatprep.subr.mxu0 0.0
    %2721 = vmatpush1.msra.mxu0 0.0
    %2722 = vmatprep.subr.mxu0 0.0
    %2723 = vmatpush1.msra.mxu0 0.0
    %2724 = vmatprep.subr.mxu0 0.0
    %2725 = vmatpush1.msra.mxu0 0.0
    %2726 = vmatprep.subr.mxu0 0.0
    %2727 = vmatpush1.msra.mxu0 0.0
    %2728 = vmatprep.subr.mxu0 0.0
    %2729 = vmatpush1.msra.mxu0 0.0
    %2730 = vmatprep.subr.mxu0 0.0
    %2731 = vmatpush1.msra.mxu0 0.0
    %2732 = vmatprep.subr.mxu0 0.0
    %2733 = vmatpush1.msra.mxu0 0.0
    %2734 = vmatprep.subr.mxu0 0.0
    %2735 = vmatpush1.msra.mxu0 0.0
    %2736 = vmatprep.subr.mxu0 0.0
    %2737 = vmatpush1.msra.mxu0 0.0
    %2738 = vmatprep.mubr.f32.mxu0 0.0
    %2739 = vmatmul.mubr.f32.gmra.mrb[0].mxu0 %v684
    %v2740 = vpop.f32.mrb[0].mxu0
    %v2741 = vadd.f32 %v569, %v2740
    %v2742 = vpop.f32.mrb[0].mxu0
    %v2743 = vadd.f32 %v573, %v2742
    %2744 = vdwg.mxu0
    %2745 = vmatprep.subr.mxu0 %v111
    %2746 = vmatpush1.msra.mxu0 %v110
    %2747 = vmatprep.subr.mxu0 %v179
    %2748 = vmatpush1.msra.mxu0 %v178
    %2749 = vmatprep.subr.mxu0 %v247
    %2750 = vmatpush1.msra.mxu0 %v246
    %2751 = vmatprep.subr.mxu0 %v315
    %2752 = vmatpush1.msra.mxu0 %v314
    %2753 = vmatprep.subr.mxu0 0.0
    %2754 = vmatpush1.msra.mxu0 0.0
    %2755 = vmatprep.subr.mxu0 0.0
    %2756 = vmatpush1.msra.mxu0 0.0
    %2757 = vmatprep.subr.mxu0 0.0
    %2758 = vmatpush1.msra.mxu0 0.0
    %2759 = vmatprep.subr.mxu0 0.0
    %2760 = vmatpush1.msra.mxu0 0.0
    %2761 = vmatprep.subr.mxu0 0.0
    %2762 = vmatpush1.msra.mxu0 0.0
    %2763 = vmatprep.subr.mxu0 0.0
    %2764 = vmatpush1.msra.mxu0 0.0
    %2765 = vmatprep.subr.mxu0 0.0
    %2766 = vmatpush1.msra.mxu0 0.0
    %2767 = vmatprep.subr.mxu0 0.0
    %2768 = vmatpush1.msra.mxu0 0.0
    %2769 = vmatprep.subr.mxu0 0.0
    %2770 = vmatpush1.msra.mxu0 0.0
    %2771 = vmatprep.subr.mxu0 0.0
    %2772 = vmatpush1.msra.mxu0 0.0
    %2773 = vmatprep.subr.mxu0 0.0
    %2774 = vmatpush1.msra.mxu0 0.0
    %2775 = vmatprep.subr.mxu0 0.0
    %2776 = vmatpush1.msra.mxu0 0.0
    %2777 = vmatprep.subr.mxu0 0.0
    %2778 = vmatpush1.msra.mxu0 0.0
    %2779 = vmatprep.subr.mxu0 0.0
    %2780 = vmatpush1.msra.mxu0 0.0
    %2781 = vmatprep.subr.mxu0 0.0
    %2782 = vmatpush1.msra.mxu0 0.0
    %2783 = vmatprep.subr.mxu0 0.0
    %2784 = vmatpush1.msra.mxu0 0.0
    %2785 = vmatprep.subr.mxu0 0.0
    %2786 = vmatpush1.msra.mxu0 0.0
    %2787 = vmatprep.subr.mxu0 0.0
    %2788 = vmatpush1.msra.mxu0 0.0
    %2789 = vmatprep.subr.mxu0 0.0
    %2790 = vmatpush1.msra.mxu0 0.0
    %2791 = vmatprep.subr.mxu0 0.0
    %2792 = vmatpush1.msra.mxu0 0.0
    %2793 = vmatprep.subr.mxu0 0.0
    %2794 = vmatpush1.msra.mxu0 0.0
    %2795 = vmatprep.subr.mxu0 0.0
    %2796 = vmatpush1.msra.mxu0 0.0
    %2797 = vmatprep.subr.mxu0 0.0
    %2798 = vmatpush1.msra.mxu0 0.0
    %2799 = vmatprep.subr.mxu0 0.0
    %2800 = vmatpush1.msra.mxu0 0.0
    %2801 = vmatprep.subr.mxu0 0.0
    %2802 = vmatpush1.msra.mxu0 0.0
    %2803 = vmatprep.subr.mxu0 0.0
    %2804 = vmatpush1.msra.mxu0 0.0
    %2805 = vmatprep.subr.mxu0 0.0
    %2806 = vmatpush1.msra.mxu0 0.0
    %2807 = vmatprep.subr.mxu0 0.0
    %2808 = vmatpush1.msra.mxu0 0.0
    %2809 = vmatprep.mubr.f32.mxu0 0.0
    %2810 = vmatmul.mubr.f32.gmra.mrb[0].mxu0 %v684
    %v2811 = vpop.f32.mrb[0].mxu0
    %v2812 = vadd.f32 %v577, %v2811
    %v2813 = vpop.f32.mrb[0].mxu0
    %v2814 = vadd.f32 %v581, %v2813
    %2815 = vdwg.mxu0
    %2816 = vmatprep.subr.mxu0 %v113
    %2817 = vmatpush1.msra.mxu0 %v112
    %2818 = vmatprep.subr.mxu0 %v181
    %2819 = vmatpush1.msra.mxu0 %v180
    %2820 = vmatprep.subr.mxu0 %v249
    %2821 = vmatpush1.msra.mxu0 %v248
    %2822 = vmatprep.subr.mxu0 %v317
    %2823 = vmatpush1.msra.mxu0 %v316
    %2824 = vmatprep.subr.mxu0 0.0
    %2825 = vmatpush1.msra.mxu0 0.0
    %2826 = vmatprep.subr.mxu0 0.0
    %2827 = vmatpush1.msra.mxu0 0.0
    %2828 = vmatprep.subr.mxu0 0.0
    %2829 = vmatpush1.msra.mxu0 0.0
    %2830 = vmatprep.subr.mxu0 0.0
    %2831 = vmatpush1.msra.mxu0 0.0
    %2832 = vmatprep.subr.mxu0 0.0
    %2833 = vmatpush1.msra.mxu0 0.0
    %2834 = vmatprep.subr.mxu0 0.0
    %2835 = vmatpush1.msra.mxu0 0.0
    %2836 = vmatprep.subr.mxu0 0.0
    %2837 = vmatpush1.msra.mxu0 0.0
    %2838 = vmatprep.subr.mxu0 0.0
    %2839 = vmatpush1.msra.mxu0 0.0
    %2840 = vmatprep.subr.mxu0 0.0
    %2841 = vmatpush1.msra.mxu0 0.0
    %2842 = vmatprep.subr.mxu0 0.0
    %2843 = vmatpush1.msra.mxu0 0.0
    %2844 = vmatprep.subr.mxu0 0.0
    %2845 = vmatpush1.msra.mxu0 0.0
    %2846 = vmatprep.subr.mxu0 0.0
    %2847 = vmatpush1.msra.mxu0 0.0
    %2848 = vmatprep.subr.mxu0 0.0
    %2849 = vmatpush1.msra.mxu0 0.0
    %2850 = vmatprep.subr.mxu0 0.0
    %2851 = vmatpush1.msra.mxu0 0.0
    %2852 = vmatprep.subr.mxu0 0.0
    %2853 = vmatpush1.msra.mxu0 0.0
    %2854 = vmatprep.subr.mxu0 0.0
    %2855 = vmatpush1.msra.mxu0 0.0
    %2856 = vmatprep.subr.mxu0 0.0
    %2857 = vmatpush1.msra.mxu0 0.0
    %2858 = vmatprep.subr.mxu0 0.0
    %2859 = vmatpush1.msra.mxu0 0.0
    %2860 = vmatprep.subr.mxu0 0.0
    %2861 = vmatpush1.msra.mxu0 0.0
    %2862 = vmatprep.subr.mxu0 0.0
    %2863 = vmatpush1.msra.mxu0 0.0
    %2864 = vmatprep.subr.mxu0 0.0
    %2865 = vmatpush1.msra.mxu0 0.0
    %2866 = vmatprep.subr.mxu0 0.0
    %2867 = vmatpush1.msra.mxu0 0.0
    %2868 = vmatprep.subr.mxu0 0.0
    %2869 = vmatpush1.msra.mxu0 0.0
    %2870 = vmatprep.subr.mxu0 0.0
    %2871 = vmatpush1.msra.mxu0 0.0
    %2872 = vmatprep.subr.mxu0 0.0
    %2873 = vmatpush1.msra.mxu0 0.0
    %2874 = vmatprep.subr.mxu0 0.0
    %2875 = vmatpush1.msra.mxu0 0.0
    %2876 = vmatprep.subr.mxu0 0.0
    %2877 = vmatpush1.msra.mxu0 0.0
    %2878 = vmatprep.subr.mxu0 0.0
    %2879 = vmatpush1.msra.mxu0 0.0
    %2880 = vmatprep.mubr.f32.mxu0 0.0
    %2881 = vmatmul.mubr.f32.gmra.mrb[0].mxu0 %v684
    %v2882 = vpop.f32.mrb[0].mxu0
    %v2883 = vadd.f32 %v585, %v2882
    %v2884 = vpop.f32.mrb[0].mxu0
    %v2885 = vadd.f32 %v589, %v2884
    %2886 = vdwg.mxu0
    %2887 = vmatprep.subr.mxu0 %v115
    %2888 = vmatpush1.msra.mxu0 %v114
    %2889 = vmatprep.subr.mxu0 %v183
    %2890 = vmatpush1.msra.mxu0 %v182
    %2891 = vmatprep.subr.mxu0 %v251
    %2892 = vmatpush1.msra.mxu0 %v250
    %2893 = vmatprep.subr.mxu0 %v319
    %2894 = vmatpush1.msra.mxu0 %v318
    %2895 = vmatprep.subr.mxu0 0.0
    %2896 = vmatpush1.msra.mxu0 0.0
    %2897 = vmatprep.subr.mxu0 0.0
    %2898 = vmatpush1.msra.mxu0 0.0
    %2899 = vmatprep.subr.mxu0 0.0
    %2900 = vmatpush1.msra.mxu0 0.0
    %2901 = vmatprep.subr.mxu0 0.0
    %2902 = vmatpush1.msra.mxu0 0.0
    %2903 = vmatprep.subr.mxu0 0.0
    %2904 = vmatpush1.msra.mxu0 0.0
    %2905 = vmatprep.subr.mxu0 0.0
    %2906 = vmatpush1.msra.mxu0 0.0
    %2907 = vmatprep.subr.mxu0 0.0
    %2908 = vmatpush1.msra.mxu0 0.0
    %2909 = vmatprep.subr.mxu0 0.0
    %2910 = vmatpush1.msra.mxu0 0.0
    %2911 = vmatprep.subr.mxu0 0.0
    %2912 = vmatpush1.msra.mxu0 0.0
    %2913 = vmatprep.subr.mxu0 0.0
    %2914 = vmatpush1.msra.mxu0 0.0
    %2915 = vmatprep.subr.mxu0 0.0
    %2916 = vmatpush1.msra.mxu0 0.0
    %2917 = vmatprep.subr.mxu0 0.0
    %2918 = vmatpush1.msra.mxu0 0.0
    %2919 = vmatprep.subr.mxu0 0.0
    %2920 = vmatpush1.msra.mxu0 0.0
    %2921 = vmatprep.subr.mxu0 0.0
    %2922 = vmatpush1.msra.mxu0 0.0
    %2923 = vmatprep.subr.mxu0 0.0
    %2924 = vmatpush1.msra.mxu0 0.0
    %2925 = vmatprep.subr.mxu0 0.0
    %2926 = vmatpush1.msra.mxu0 0.0
    %2927 = vmatprep.subr.mxu0 0.0
    %2928 = vmatpush1.msra.mxu0 0.0
    %2929 = vmatprep.subr.mxu0 0.0
    %2930 = vmatpush1.msra.mxu0 0.0
    %2931 = vmatprep.subr.mxu0 0.0
    %2932 = vmatpush1.msra.mxu0 0.0
    %2933 = vmatprep.subr.mxu0 0.0
    %2934 = vmatpush1.msra.mxu0 0.0
    %2935 = vmatprep.subr.mxu0 0.0
    %2936 = vmatpush1.msra.mxu0 0.0
    %2937 = vmatprep.subr.mxu0 0.0
    %2938 = vmatpush1.msra.mxu0 0.0
    %2939 = vmatprep.subr.mxu0 0.0
    %2940 = vmatpush1.msra.mxu0 0.0
    %2941 = vmatprep.subr.mxu0 0.0
    %2942 = vmatpush1.msra.mxu0 0.0
    %2943 = vmatprep.subr.mxu0 0.0
    %2944 = vmatpush1.msra.mxu0 0.0
    %2945 = vmatprep.subr.mxu0 0.0
    %2946 = vmatpush1.msra.mxu0 0.0
    %2947 = vmatprep.subr.mxu0 0.0
    %2948 = vmatpush1.msra.mxu0 0.0
    %2949 = vmatprep.subr.mxu0 0.0
    %2950 = vmatpush1.msra.mxu0 0.0
    %2951 = vmatprep.mubr.f32.mxu0 0.0
    %2952 = vmatmul.mubr.f32.gmra.mrb[0].mxu0 %v684
    %v2953 = vpop.f32.mrb[0].mxu0
    %v2954 = vadd.f32 %v593, %v2953
    %v2955 = vpop.f32.mrb[0].mxu0
    %v2956 = vadd.f32 %v597, %v2955
    %2957 = vdwg.mxu0
    %2958 = vmatprep.subr.mxu0 %v117
    %2959 = vmatpush1.msra.mxu0 %v116
    %2960 = vmatprep.subr.mxu0 %v185
    %2961 = vmatpush1.msra.mxu0 %v184
    %2962 = vmatprep.subr.mxu0 %v253
    %2963 = vmatpush1.msra.mxu0 %v252
    %2964 = vmatprep.subr.mxu0 %v321
    %2965 = vmatpush1.msra.mxu0 %v320
    %2966 = vmatprep.subr.mxu0 0.0
    %2967 = vmatpush1.msra.mxu0 0.0
    %2968 = vmatprep.subr.mxu0 0.0
    %2969 = vmatpush1.msra.mxu0 0.0
    %2970 = vmatprep.subr.mxu0 0.0
    %2971 = vmatpush1.msra.mxu0 0.0
    %2972 = vmatprep.subr.mxu0 0.0
    %2973 = vmatpush1.msra.mxu0 0.0
    %2974 = vmatprep.subr.mxu0 0.0
    %2975 = vmatpush1.msra.mxu0 0.0
    %2976 = vmatprep.subr.mxu0 0.0
    %2977 = vmatpush1.msra.mxu0 0.0
    %2978 = vmatprep.subr.mxu0 0.0
    %2979 = vmatpush1.msra.mxu0 0.0
    %2980 = vmatprep.subr.mxu0 0.0
    %2981 = vmatpush1.msra.mxu0 0.0
    %2982 = vmatprep.subr.mxu0 0.0
    %2983 = vmatpush1.msra.mxu0 0.0
    %2984 = vmatprep.subr.mxu0 0.0
    %2985 = vmatpush1.msra.mxu0 0.0
    %2986 = vmatprep.subr.mxu0 0.0
    %2987 = vmatpush1.msra.mxu0 0.0
    %2988 = vmatprep.subr.mxu0 0.0
    %2989 = vmatpush1.msra.mxu0 0.0
    %2990 = vmatprep.subr.mxu0 0.0
    %2991 = vmatpush1.msra.mxu0 0.0
    %2992 = vmatprep.subr.mxu0 0.0
    %2993 = vmatpush1.msra.mxu0 0.0
    %2994 = vmatprep.subr.mxu0 0.0
    %2995 = vmatpush1.msra.mxu0 0.0
    %2996 = vmatprep.subr.mxu0 0.0
    %2997 = vmatpush1.msra.mxu0 0.0
    %2998 = vmatprep.subr.mxu0 0.0
    %2999 = vmatpush1.msra.mxu0 0.0
    %3000 = vmatprep.subr.mxu0 0.0
    %3001 = vmatpush1.msra.mxu0 0.0
    %3002 = vmatprep.subr.mxu0 0.0
    %3003 = vmatpush1.msra.mxu0 0.0
    %3004 = vmatprep.subr.mxu0 0.0
    %3005 = vmatpush1.msra.mxu0 0.0
    %3006 = vmatprep.subr.mxu0 0.0
    %3007 = vmatpush1.msra.mxu0 0.0
    %3008 = vmatprep.subr.mxu0 0.0
    %3009 = vmatpush1.msra.mxu0 0.0
    %3010 = vmatprep.subr.mxu0 0.0
    %3011 = vmatpush1.msra.mxu0 0.0
    %3012 = vmatprep.subr.mxu0 0.0
    %3013 = vmatpush1.msra.mxu0 0.0
    %3014 = vmatprep.subr.mxu0 0.0
    %3015 = vmatpush1.msra.mxu0 0.0
    %3016 = vmatprep.subr.mxu0 0.0
    %3017 = vmatpush1.msra.mxu0 0.0
    %3018 = vmatprep.subr.mxu0 0.0
    %3019 = vmatpush1.msra.mxu0 0.0
    %3020 = vmatprep.subr.mxu0 0.0
    %3021 = vmatpush1.msra.mxu0 0.0
    %3022 = vmatprep.mubr.f32.mxu0 0.0
    %3023 = vmatmul.mubr.f32.gmra.mrb[0].mxu0 %v684
    %v3024 = vpop.f32.mrb[0].mxu0
    %v3025 = vadd.f32 %v601, %v3024
    %v3026 = vpop.f32.mrb[0].mxu0
    %v3027 = vadd.f32 %v605, %v3026
    %3028 = vdwg.mxu0
    %3029 = vmatprep.subr.mxu0 %v119
    %3030 = vmatpush1.msra.mxu0 %v118
    %3031 = vmatprep.subr.mxu0 %v187
    %3032 = vmatpush1.msra.mxu0 %v186
    %3033 = vmatprep.subr.mxu0 %v255
    %3034 = vmatpush1.msra.mxu0 %v254
    %3035 = vmatprep.subr.mxu0 %v323
    %3036 = vmatpush1.msra.mxu0 %v322
    %3037 = vmatprep.subr.mxu0 0.0
    %3038 = vmatpush1.msra.mxu0 0.0
    %3039 = vmatprep.subr.mxu0 0.0
    %3040 = vmatpush1.msra.mxu0 0.0
    %3041 = vmatprep.subr.mxu0 0.0
    %3042 = vmatpush1.msra.mxu0 0.0
    %3043 = vmatprep.subr.mxu0 0.0
    %3044 = vmatpush1.msra.mxu0 0.0
    %3045 = vmatprep.subr.mxu0 0.0
    %3046 = vmatpush1.msra.mxu0 0.0
    %3047 = vmatprep.subr.mxu0 0.0
    %3048 = vmatpush1.msra.mxu0 0.0
    %3049 = vmatprep.subr.mxu0 0.0
    %3050 = vmatpush1.msra.mxu0 0.0
    %3051 = vmatprep.subr.mxu0 0.0
    %3052 = vmatpush1.msra.mxu0 0.0
    %3053 = vmatprep.subr.mxu0 0.0
    %3054 = vmatpush1.msra.mxu0 0.0
    %3055 = vmatprep.subr.mxu0 0.0
    %3056 = vmatpush1.msra.mxu0 0.0
    %3057 = vmatprep.subr.mxu0 0.0
    %3058 = vmatpush1.msra.mxu0 0.0
    %3059 = vmatprep.subr.mxu0 0.0
    %3060 = vmatpush1.msra.mxu0 0.0
    %3061 = vmatprep.subr.mxu0 0.0
    %3062 = vmatpush1.msra.mxu0 0.0
    %3063 = vmatprep.subr.mxu0 0.0
    %3064 = vmatpush1.msra.mxu0 0.0
    %3065 = vmatprep.subr.mxu0 0.0
    %3066 = vmatpush1.msra.mxu0 0.0
    %3067 = vmatprep.subr.mxu0 0.0
    %3068 = vmatpush1.msra.mxu0 0.0
    %3069 = vmatprep.subr.mxu0 0.0
    %3070 = vmatpush1.msra.mxu0 0.0
    %3071 = vmatprep.subr.mxu0 0.0
    %3072 = vmatpush1.msra.mxu0 0.0
    %3073 = vmatprep.subr.mxu0 0.0
    %3074 = vmatpush1.msra.mxu0 0.0
    %3075 = vmatprep.subr.mxu0 0.0
    %3076 = vmatpush1.msra.mxu0 0.0
    %3077 = vmatprep.subr.mxu0 0.0
    %3078 = vmatpush1.msra.mxu0 0.0
    %3079 = vmatprep.subr.mxu0 0.0
    %3080 = vmatpush1.msra.mxu0 0.0
    %3081 = vmatprep.subr.mxu0 0.0
    %3082 = vmatpush1.msra.mxu0 0.0
    %3083 = vmatprep.subr.mxu0 0.0
    %3084 = vmatpush1.msra.mxu0 0.0
    %3085 = vmatprep.subr.mxu0 0.0
    %3086 = vmatpush1.msra.mxu0 0.0
    %3087 = vmatprep.subr.mxu0 0.0
    %3088 = vmatpush1.msra.mxu0 0.0
    %3089 = vmatprep.subr.mxu0 0.0
    %3090 = vmatpush1.msra.mxu0 0.0
    %3091 = vmatprep.subr.mxu0 0.0
    %3092 = vmatpush1.msra.mxu0 0.0
    %3093 = vmatprep.mubr.f32.mxu0 0.0
    %3094 = vmatmul.mubr.f32.gmra.mrb[0].mxu0 %v684
    %v3095 = vpop.f32.mrb[0].mxu0
    %v3096 = vadd.f32 %v609, %v3095
    %v3097 = vpop.f32.mrb[0].mxu0
    %v3098 = vadd.f32 %v613, %v3097
    %3099 = vdwg.mxu0
    %v3100 = vmax.f32 %v753, 0.0
    %v3101 = vmax.f32 %v755, 0.0
    %v3102 = vmax.f32 %v824, 0.0
    %v3103 = vmax.f32 %v826, 0.0
    %v3104 = vmax.f32 %v895, 0.0
    %v3105 = vmax.f32 %v897, 0.0
    %v3106 = vmax.f32 %v966, 0.0
    %v3107 = vmax.f32 %v968, 0.0
    %v3108 = vmax.f32 %v1037, 0.0
    %v3109 = vmax.f32 %v1039, 0.0
    %v3110 = vmax.f32 %v1108, 0.0
    %v3111 = vmax.f32 %v1110, 0.0
    %v3112 = vmax.f32 %v1179, 0.0
    %v3113 = vmax.f32 %v1181, 0.0
    %v3114 = vmax.f32 %v1250, 0.0
    %v3115 = vmax.f32 %v1252, 0.0
    %v3116 = vmax.f32 %v1321, 0.0
    %v3117 = vmax.f32 %v1323, 0.0
    %v3118 = vmax.f32 %v1392, 0.0
    %v3119 = vmax.f32 %v1394, 0.0
    %v3120 = vmax.f32 %v1463, 0.0
    %v3121 = vmax.f32 %v1465, 0.0
    %v3122 = vmax.f32 %v1534, 0.0
    %v3123 = vmax.f32 %v1536, 0.0
    %v3124 = vmax.f32 %v1605, 0.0
    %v3125 = vmax.f32 %v1607, 0.0
    %v3126 = vmax.f32 %v1676, 0.0
    %v3127 = vmax.f32 %v1678, 0.0
    %v3128 = vmax.f32 %v1747, 0.0
    %v3129 = vmax.f32 %v1749, 0.0
    %v3130 = vmax.f32 %v1818, 0.0
    %v3131 = vmax.f32 %v1820, 0.0
    %v3132 = vmax.f32 %v1889, 0.0
    %v3133 = vmax.f32 %v1891, 0.0
    %v3134 = vmax.f32 %v1960, 0.0
    %v3135 = vmax.f32 %v1962, 0.0
    %v3136 = vmax.f32 %v2031, 0.0
    %v3137 = vmax.f32 %v2033, 0.0
    %v3138 = vmax.f32 %v2102, 0.0
    %v3139 = vmax.f32 %v2104, 0.0
    %v3140 = vmax.f32 %v2173, 0.0
    %v3141 = vmax.f32 %v2175, 0.0
    %v3142 = vmax.f32 %v2244, 0.0
    %v3143 = vmax.f32 %v2246, 0.0
    %v3144 = vmax.f32 %v2315, 0.0
    %v3145 = vmax.f32 %v2317, 0.0
    %v3146 = vmax.f32 %v2386, 0.0
    %v3147 = vmax.f32 %v2388, 0.0
    %v3148 = vmax.f32 %v2457, 0.0
    %v3149 = vmax.f32 %v2459, 0.0
    %v3150 = vmax.f32 %v2528, 0.0
    %v3151 = vmax.f32 %v2530, 0.0
    %v3152 = vmax.f32 %v2599, 0.0
    %v3153 = vmax.f32 %v2601, 0.0
    %v3154 = vmax.f32 %v2670, 0.0
    %v3155 = vmax.f32 %v2672, 0.0
    %v3156 = vmax.f32 %v2741, 0.0
    %v3157 = vmax.f32 %v2743, 0.0
    %v3158 = vmax.f32 %v2812, 0.0
    %v3159 = vmax.f32 %v2814, 0.0
    %v3160 = vmax.f32 %v2883, 0.0
    %v3161 = vmax.f32 %v2885, 0.0
    %v3162 = vmax.f32 %v2954, 0.0
    %v3163 = vmax.f32 %v2956, 0.0
    %v3164 = vmax.f32 %v3025, 0.0
    %v3165 = vmax.f32 %v3027, 0.0
    %v3166 = vmax.f32 %v3096, 0.0
    %v3167 = vmax.f32 %v3098, 0.0
    %v3236 = vcombine.low %v3100, %v3101
    %v3237 = vcombine.low %v3102, %v3103
    %v3239 = vunpack.c.l.s4 1983009808
    %v3240 = vunpack.c.0.s8 %v3239
    %v3241 = vlaneseq
    %v3242 = vshrl.u32 %v3241, 7
    %v3243 = vsub.s32 %v3240, %v3242
    %v3244 = vrot.slane %v3236, %v3243
    %v3246 = vunpack.c.l.s4 1983009808
    %v3247 = vunpack.c.0.s8 %v3246
    %v3248 = vlaneseq
    %v3249 = vshrl.u32 %v3248, 7
    %v3250 = vsub.s32 %v3247, %v3249
    %v3251 = vrot.slane %v3237, %v3250
    %v3252 = vcombine.low %v3244, %v3251
    %v3253 = vcombine.low %v3104, %v3105
    %v3254 = vcombine.low %v3106, %v3107
    %v3256 = vunpack.c.l.s4 1983009808
    %v3257 = vunpack.c.0.s8 %v3256
    %v3258 = vlaneseq
    %v3259 = vshrl.u32 %v3258, 7
    %v3260 = vsub.s32 %v3257, %v3259
    %v3261 = vrot.slane %v3253, %v3260
    %v3263 = vunpack.c.l.s4 1983009808
    %v3264 = vunpack.c.0.s8 %v3263
    %v3265 = vlaneseq
    %v3266 = vshrl.u32 %v3265, 7
    %v3267 = vsub.s32 %v3264, %v3266
    %v3268 = vrot.slane %v3254, %v3267
    %v3269 = vcombine.low %v3261, %v3268
    %v3270 = vcombine.low %v3108, %v3109
    %v3271 = vcombine.low %v3110, %v3111
    %v3273 = vunpack.c.l.s4 1983009808
    %v3274 = vunpack.c.0.s8 %v3273
    %v3275 = vlaneseq
    %v3276 = vshrl.u32 %v3275, 7
    %v3277 = vsub.s32 %v3274, %v3276
    %v3278 = vrot.slane %v3270, %v3277
    %v3280 = vunpack.c.l.s4 1983009808
    %v3281 = vunpack.c.0.s8 %v3280
    %v3282 = vlaneseq
    %v3283 = vshrl.u32 %v3282, 7
    %v3284 = vsub.s32 %v3281, %v3283
    %v3285 = vrot.slane %v3271, %v3284
    %v3286 = vcombine.low %v3278, %v3285
    %v3287 = vcombine.low %v3112, %v3113
    %v3288 = vcombine.low %v3114, %v3115
    %v3290 = vunpack.c.l.s4 1983009808
    %v3291 = vunpack.c.0.s8 %v3290
    %v3292 = vlaneseq
    %v3293 = vshrl.u32 %v3292, 7
    %v3294 = vsub.s32 %v3291, %v3293
    %v3295 = vrot.slane %v3287, %v3294
    %v3297 = vunpack.c.l.s4 1983009808
    %v3298 = vunpack.c.0.s8 %v3297
    %v3299 = vlaneseq
    %v3300 = vshrl.u32 %v3299, 7
    %v3301 = vsub.s32 %v3298, %v3300
    %v3302 = vrot.slane %v3288, %v3301
    %v3303 = vcombine.low %v3295, %v3302
    %v3304 = vcombine.low %v3116, %v3117
    %v3305 = vcombine.low %v3118, %v3119
    %v3307 = vunpack.c.l.s4 1983009808
    %v3308 = vunpack.c.0.s8 %v3307
    %v3309 = vlaneseq
    %v3310 = vshrl.u32 %v3309, 7
    %v3311 = vsub.s32 %v3308, %v3310
    %v3312 = vrot.slane %v3304, %v3311
    %v3314 = vunpack.c.l.s4 1983009808
    %v3315 = vunpack.c.0.s8 %v3314
    %v3316 = vlaneseq
    %v3317 = vshrl.u32 %v3316, 7
    %v3318 = vsub.s32 %v3315, %v3317
    %v3319 = vrot.slane %v3305, %v3318
    %v3320 = vcombine.low %v3312, %v3319
    %v3321 = vcombine.low %v3120, %v3121
    %v3322 = vcombine.low %v3122, %v3123
    %v3324 = vunpack.c.l.s4 1983009808
    %v3325 = vunpack.c.0.s8 %v3324
    %v3326 = vlaneseq
    %v3327 = vshrl.u32 %v3326, 7
    %v3328 = vsub.s32 %v3325, %v3327
    %v3329 = vrot.slane %v3321, %v3328
    %v3331 = vunpack.c.l.s4 1983009808
    %v3332 = vunpack.c.0.s8 %v3331
    %v3333 = vlaneseq
    %v3334 = vshrl.u32 %v3333, 7
    %v3335 = vsub.s32 %v3332, %v3334
    %v3336 = vrot.slane %v3322, %v3335
    %v3337 = vcombine.low %v3329, %v3336
    %v3338 = vcombine.low %v3124, %v3125
    %v3339 = vcombine.low %v3126, %v3127
    %v3341 = vunpack.c.l.s4 1983009808
    %v3342 = vunpack.c.0.s8 %v3341
    %v3343 = vlaneseq
    %v3344 = vshrl.u32 %v3343, 7
    %v3345 = vsub.s32 %v3342, %v3344
    %v3346 = vrot.slane %v3338, %v3345
    %v3348 = vunpack.c.l.s4 1983009808
    %v3349 = vunpack.c.0.s8 %v3348
    %v3350 = vlaneseq
    %v3351 = vshrl.u32 %v3350, 7
    %v3352 = vsub.s32 %v3349, %v3351
    %v3353 = vrot.slane %v3339, %v3352
    %v3354 = vcombine.low %v3346, %v3353
    %v3355 = vcombine.low %v3128, %v3129
    %v3356 = vcombine.low %v3130, %v3131
    %v3358 = vunpack.c.l.s4 1983009808
    %v3359 = vunpack.c.0.s8 %v3358
    %v3360 = vlaneseq
    %v3361 = vshrl.u32 %v3360, 7
    %v3362 = vsub.s32 %v3359, %v3361
    %v3363 = vrot.slane %v3355, %v3362
    %v3365 = vunpack.c.l.s4 1983009808
    %v3366 = vunpack.c.0.s8 %v3365
    %v3367 = vlaneseq
    %v3368 = vshrl.u32 %v3367, 7
    %v3369 = vsub.s32 %v3366, %v3368
    %v3370 = vrot.slane %v3356, %v3369
    %v3371 = vcombine.low %v3363, %v3370
    %v3372 = vcombine.low %v3132, %v3133
    %v3373 = vcombine.low %v3134, %v3135
    %v3375 = vunpack.c.l.s4 1983009808
    %v3376 = vunpack.c.0.s8 %v3375
    %v3377 = vlaneseq
    %v3378 = vshrl.u32 %v3377, 7
    %v3379 = vsub.s32 %v3376, %v3378
    %v3380 = vrot.slane %v3372, %v3379
    %v3382 = vunpack.c.l.s4 1983009808
    %v3383 = vunpack.c.0.s8 %v3382
    %v3384 = vlaneseq
    %v3385 = vshrl.u32 %v3384, 7
    %v3386 = vsub.s32 %v3383, %v3385
    %v3387 = vrot.slane %v3373, %v3386
    %v3388 = vcombine.low %v3380, %v3387
    %v3389 = vcombine.low %v3136, %v3137
    %v3390 = vcombine.low %v3138, %v3139
    %v3392 = vunpack.c.l.s4 1983009808
    %v3393 = vunpack.c.0.s8 %v3392
    %v3394 = vlaneseq
    %v3395 = vshrl.u32 %v3394, 7
    %v3396 = vsub.s32 %v3393, %v3395
    %v3397 = vrot.slane %v3389, %v3396
    %v3399 = vunpack.c.l.s4 1983009808
    %v3400 = vunpack.c.0.s8 %v3399
    %v3401 = vlaneseq
    %v3402 = vshrl.u32 %v3401, 7
    %v3403 = vsub.s32 %v3400, %v3402
    %v3404 = vrot.slane %v3390, %v3403
    %v3405 = vcombine.low %v3397, %v3404
    %v3406 = vcombine.low %v3140, %v3141
    %v3407 = vcombine.low %v3142, %v3143
    %v3409 = vunpack.c.l.s4 1983009808
    %v3410 = vunpack.c.0.s8 %v3409
    %v3411 = vlaneseq
    %v3412 = vshrl.u32 %v3411, 7
    %v3413 = vsub.s32 %v3410, %v3412
    %v3414 = vrot.slane %v3406, %v3413
    %v3416 = vunpack.c.l.s4 1983009808
    %v3417 = vunpack.c.0.s8 %v3416
    %v3418 = vlaneseq
    %v3419 = vshrl.u32 %v3418, 7
    %v3420 = vsub.s32 %v3417, %v3419
    %v3421 = vrot.slane %v3407, %v3420
    %v3422 = vcombine.low %v3414, %v3421
    %v3423 = vcombine.low %v3144, %v3145
    %v3424 = vcombine.low %v3146, %v3147
    %v3426 = vunpack.c.l.s4 1983009808
    %v3427 = vunpack.c.0.s8 %v3426
    %v3428 = vlaneseq
    %v3429 = vshrl.u32 %v3428, 7
    %v3430 = vsub.s32 %v3427, %v3429
    %v3431 = vrot.slane %v3423, %v3430
    %v3433 = vunpack.c.l.s4 1983009808
    %v3434 = vunpack.c.0.s8 %v3433
    %v3435 = vlaneseq
    %v3436 = vshrl.u32 %v3435, 7
    %v3437 = vsub.s32 %v3434, %v3436
    %v3438 = vrot.slane %v3424, %v3437
    %v3439 = vcombine.low %v3431, %v3438
    %v3440 = vcombine.low %v3148, %v3149
    %v3441 = vcombine.low %v3150, %v3151
    %v3443 = vunpack.c.l.s4 1983009808
    %v3444 = vunpack.c.0.s8 %v3443
    %v3445 = vlaneseq
    %v3446 = vshrl.u32 %v3445, 7
    %v3447 = vsub.s32 %v3444, %v3446
    %v3448 = vrot.slane %v3440, %v3447
    %v3450 = vunpack.c.l.s4 1983009808
    %v3451 = vunpack.c.0.s8 %v3450
    %v3452 = vlaneseq
    %v3453 = vshrl.u32 %v3452, 7
    %v3454 = vsub.s32 %v3451, %v3453
    %v3455 = vrot.slane %v3441, %v3454
    %v3456 = vcombine.low %v3448, %v3455
    %v3457 = vcombine.low %v3152, %v3153
    %v3458 = vcombine.low %v3154, %v3155
    %v3460 = vunpack.c.l.s4 1983009808
    %v3461 = vunpack.c.0.s8 %v3460
    %v3462 = vlaneseq
    %v3463 = vshrl.u32 %v3462, 7
    %v3464 = vsub.s32 %v3461, %v3463
    %v3465 = vrot.slane %v3457, %v3464
    %v3467 = vunpack.c.l.s4 1983009808
    %v3468 = vunpack.c.0.s8 %v3467
    %v3469 = vlaneseq
    %v3470 = vshrl.u32 %v3469, 7
    %v3471 = vsub.s32 %v3468, %v3470
    %v3472 = vrot.slane %v3458, %v3471
    %v3473 = vcombine.low %v3465, %v3472
    %v3474 = vcombine.low %v3156, %v3157
    %v3475 = vcombine.low %v3158, %v3159
    %v3477 = vunpack.c.l.s4 1983009808
    %v3478 = vunpack.c.0.s8 %v3477
    %v3479 = vlaneseq
    %v3480 = vshrl.u32 %v3479, 7
    %v3481 = vsub.s32 %v3478, %v3480
    %v3482 = vrot.slane %v3474, %v3481
    %v3484 = vunpack.c.l.s4 1983009808
    %v3485 = vunpack.c.0.s8 %v3484
    %v3486 = vlaneseq
    %v3487 = vshrl.u32 %v3486, 7
    %v3488 = vsub.s32 %v3485, %v3487
    %v3489 = vrot.slane %v3475, %v3488
    %v3490 = vcombine.low %v3482, %v3489
    %v3491 = vcombine.low %v3160, %v3161
    %v3492 = vcombine.low %v3162, %v3163
    %v3494 = vunpack.c.l.s4 1983009808
    %v3495 = vunpack.c.0.s8 %v3494
    %v3496 = vlaneseq
    %v3497 = vshrl.u32 %v3496, 7
    %v3498 = vsub.s32 %v3495, %v3497
    %v3499 = vrot.slane %v3491, %v3498
    %v3501 = vunpack.c.l.s4 1983009808
    %v3502 = vunpack.c.0.s8 %v3501
    %v3503 = vlaneseq
    %v3504 = vshrl.u32 %v3503, 7
    %v3505 = vsub.s32 %v3502, %v3504
    %v3506 = vrot.slane %v3492, %v3505
    %v3507 = vcombine.low %v3499, %v3506
    %v3508 = vcombine.low %v3164, %v3165
    %v3509 = vcombine.low %v3166, %v3167
    %v3511 = vunpack.c.l.s4 1983009808
    %v3512 = vunpack.c.0.s8 %v3511
    %v3513 = vlaneseq
    %v3514 = vshrl.u32 %v3513, 7
    %v3515 = vsub.s32 %v3512, %v3514
    %v3516 = vrot.slane %v3508, %v3515
    %v3518 = vunpack.c.l.s4 1983009808
    %v3519 = vunpack.c.0.s8 %v3518
    %v3520 = vlaneseq
    %v3521 = vshrl.u32 %v3520, 7
    %v3522 = vsub.s32 %v3519, %v3521
    %v3523 = vrot.slane %v3509, %v3522
    %v3524 = vcombine.low %v3516, %v3523
    %3542 = vst [vmem:[%s3] sm:$0xff] %v3252
    %3543 = vst [vmem:[%s3 + $0x8] sm:$0xff] %v3269
    %3544 = vst [vmem:[%s3 + $0x10] sm:$0xff] %v3286
    %3545 = vst [vmem:[%s3 + $0x18] sm:$0xff] %v3303
    %3546 = vst [vmem:[%s3 + $0x20] sm:$0xff] %v3320
    %3547 = vst [vmem:[%s3 + $0x28] sm:$0xff] %v3337
    %3548 = vst [vmem:[%s3 + $0x30] sm:$0xff] %v3354
    %3549 = vst [vmem:[%s3 + $0x38] sm:$0xff] %v3371
    %3550 = vst [vmem:[%s3 + $0x40] sm:$0xff] %v3388
    %3551 = vst [vmem:[%s3 + $0x48] sm:$0xff] %v3405
    %3552 = vst [vmem:[%s3 + $0x50] sm:$0xff] %v3422
    %3553 = vst [vmem:[%s3 + $0x58] sm:$0xff] %v3439
    %3554 = vst [vmem:[%s3 + $0x60] sm:$0xff] %v3456
    %3555 = vst [vmem:[%s3 + $0x68] sm:$0xff] %v3473
    %3556 = vst [vmem:[%s3 + $0x70] sm:$0xff] %v3490
    %3557 = vst [vmem:[%s3 + $0x78] sm:$0xff] %v3507
    %3558 = vst [vmem:[%s3 + $0x80] sm:$0xff] %v3524
    // Predicated region
    $region26: #{graph_decoder_forward.1} parent=1 // pred_check
      _
    $region27: #{graph_decoder_forward.1} parent=1 // pred_check_branch
      %3560 = sbr.rel (0) target = $region29
    $region28: #{graph_decoder_forward.1} parent=1 // pred_region
      _
    $region29: #{graph_decoder_forward.1} parent=1 // pred_fallthru
      _
    // Predicated region
    $region30: #{graph_decoder_forward.1} parent=1 // pred_check
      _
    $region31: #{graph_decoder_forward.1} parent=1 // pred_check_branch
      %3562 = sbr.rel (0) target = $region33
    $region32: #{graph_decoder_forward.1} parent=1 // pred_region
      _
    $region33: #{graph_decoder_forward.1} parent=1 // pred_fallthru
      _
    %3563 = vsyncpa [#allocation3], 1
    %3564 = vsyncpa [#allocation5], 1

</llo_original>
